<compile_context>
chip_gen: v6e
topology: v6e:2x2x1
jax: 0.10.0
libtpu: 0.0.40
codegen_flags: <defaults>
</compile_context>

<pallas_src>
import math
import numpy as np
import jax
import jax.numpy as jnp
from jax.experimental import pallas as pl
from jax.experimental.pallas import tpu as pltpu


# ------------------------------------------------------------------ kernel
def _make_lfr_kernel(H, W, Wp, LP):
    """Fused LFRModule forward for one batch element.

    Block layout (all f32):
      xp_ref        (1, C, LP)  zero-padded image, padded rows flattened into lanes
      mask_ref      (1, LP)     1.0 on interior pixels, 0.0 on halo / tail pad
      scale0/shift0 (C, 1)      folded pre_bn affine
      wdw_ref       (C, 49)     folded (s7*w7 + s3*pad(w3)) depthwise taps
      bdw_ref       (C, 1)      folded depthwise bias (BN shifts)
      w1_ref        (C, hid)    fc1 weight (torch Linear weight transposed)
      w2t_ref       (C, hid)    fc2 weight (torch Linear layout)
      o_ref         (1, C, LP)  output in the same padded layout
    """
    inv_hw = 1.0 / float(H * W)

    def kernel(xp_ref, mask_ref, scale0_ref, shift0_ref, wdw_ref, bdw_ref,
               w1_ref, w2t_ref, o_ref):
        xp = xp_ref[0]                               # (C, LP)
        mask = mask_ref[...]                         # (1, LP)

        # pre_bn (eval) = per-channel affine; re-zero the halo so the
        # depthwise conv sees proper zero padding.
        y = (xp * scale0_ref[...] + shift0_ref[...]) * mask

        # Merged 7x7 depthwise stencil: 49 taps, each tap = lane roll (XLU)
        # + per-channel broadcast FMA (VPU). No unaligned sub-tile slices.
        wdw = wdw_ref[...]                           # (C, 49)
        acc = jnp.zeros_like(xp)
        for t in range(49):
            dy, dx = divmod(t, 7)
            sh = ((3 - dy) * Wp + (3 - dx)) % LP     # static shift, no wrap on interior
            rolled = y if sh == 0 else pltpu.roll(y, shift=sh, axis=1)
            acc = acc + rolled * wdw[:, t:t + 1]

        # bias + ReLU, masked back to the interior, then residual add.
        d = jnp.maximum(acc + bdw_ref[...], 0.0) * mask
        x2 = xp + d                                  # halo stays exactly zero

        # Channle_Mix squeeze-excite, fully on the VPU (no tiny-K matmuls):
        g = jnp.sum(x2, axis=1, keepdims=True) * inv_hw                          # (C, 1)  GAP
        h1 = jnp.maximum(jnp.sum(g * w1_ref[...], axis=0, keepdims=True), 0.0)   # (1, hid)
        s = jax.nn.sigmoid(jnp.sum(h1 * w2t_ref[...], axis=1, keepdims=True))    # (C, 1)

        o_ref[0] = x2 * (1.0 + s)                    # cm(x2) + x2

    return kernel


# ------------------------------------------------------------------ wrapper
@jax.jit
def lfr_forward(x_nchw, p):
    N, C, H, W = x_nchw.shape
    Hp, Wp = H + 6, W + 6
    L = Hp * Wp
    LP = ((L + 127) // 128) * 128                    # lane-dense padded length
    hid = p['w1'].shape[1]

    xf = x_nchw.astype(jnp.float32)
    # Build the lane-dense padded layout once (cheap XLA glue on 128 KiB).
    xp = jnp.pad(xf, ((0, 0), (0, 0), (3, 3), (3, 3))).reshape(N, C, L)
    xp = jnp.pad(xp, ((0, 0), (0, 0), (0, LP - L)))

    mask = jnp.pad(jnp.ones((H, W), jnp.float32), ((3, 3), (3, 3))).reshape(1, L)
    mask = jnp.pad(mask, ((0, 0), (0, LP - L)))

    kernel = _make_lfr_kernel(H, W, Wp, LP)
    cost = pl.CostEstimate(
        flops=int(N * C * H * W * (49 * 2 + 10) + N * C * hid * 4),
        transcendentals=int(N * C + N * hid),
        bytes_accessed=int(2 * N * C * LP * 4))

    out_flat = pl.pallas_call(
        kernel,
        out_shape=jax.ShapeDtypeStruct((N, C, LP), jnp.float32),
        grid_spec=pltpu.PrefetchScalarGridSpec(
            num_scalar_prefetch=0,
            grid=(N,),
            in_specs=[
                pl.BlockSpec((1, C, LP), lambda n: (n, 0, 0)),   # xp
                pl.BlockSpec((1, LP),    lambda n: (0, 0)),      # mask
                pl.BlockSpec((C, 1),     lambda n: (0, 0)),      # scale0
                pl.BlockSpec((C, 1),     lambda n: (0, 0)),      # shift0
                pl.BlockSpec((C, 49),    lambda n: (0, 0)),      # merged dw taps
                pl.BlockSpec((C, 1),     lambda n: (0, 0)),      # merged dw bias
                pl.BlockSpec((C, hid),   lambda n: (0, 0)),      # fc1
                pl.BlockSpec((C, hid),   lambda n: (0, 0)),      # fc2
            ],
            out_specs=pl.BlockSpec((1, C, LP), lambda n: (n, 0, 0)),
        ),
        compiler_params=pltpu.CompilerParams(
            dimension_semantics=("parallel",),
            vmem_limit_bytes=32 * 1024 * 1024),
        cost_estimate=cost,
    )(xp, mask, p['scale0'], p['shift0'], p['wdw'], p['bdw'], p['w1'], p['w2t'])

    out = out_flat[:, :, :L].reshape(N, C, Hp, Wp)[:, :, 3:3 + H, 3:3 + W]
    return out


# ------------------------------------------------------------------ params
def init_params(key, C, ratio=16):
    """Deterministic eval-mode parameters: raw (for the reference) and folded
    (for the kernel: BN folded into affines, 3x3 merged into the 7x7 taps)."""
    hid = max(C // ratio, 1)
    eps = 1e-5
    ks = jax.random.split(key, 16)

    def bn_params(k0, k1, k2, k3):
        g = 1.0 + 0.1 * jax.random.normal(k0, (C,), jnp.float32)
        b = 0.1 * jax.random.normal(k1, (C,), jnp.float32)
        m = 0.1 * jax.random.normal(k2, (C,), jnp.float32)
        v = 1.0 + 0.1 * jnp.abs(jax.random.normal(k3, (C,), jnp.float32))
        return g, b, m, v

    g0, b0, m0, v0 = bn_params(*ks[0:4])          # pre_bn
    g7, b7, m7, v7 = bn_params(*ks[4:8])          # BN after dw 7x7
    g3, b3, m3, v3 = bn_params(*ks[8:12])         # BN after dw 3x3
    w7 = jax.random.normal(ks[12], (C, 7, 7), jnp.float32) / math.sqrt(49.0)
    w3 = jax.random.normal(ks[13], (C, 3, 3), jnp.float32) / math.sqrt(9.0)
    wfc1 = jax.random.normal(ks[14], (hid, C), jnp.float32) / math.sqrt(C)
    wfc2 = jax.random.normal(ks[15], (C, hid), jnp.float32) / math.sqrt(hid)

    raw = dict(g0=g0, b0=b0, m0=m0, v0=v0,
               w7=w7, g7=g7, b7=b7, m7=m7, v7=v7,
               w3=w3, g3=g3, b3=b3, m3=m3, v3=v3,
               wfc1=wfc1, wfc2=wfc2)

    def aff(g, b, m, v):
        s = g / jnp.sqrt(v + eps)
        return s, b - m * s

    s0, t0 = aff(g0, b0, m0, v0)
    s7, t7 = aff(g7, b7, m7, v7)
    s3, t3 = aff(g3, b3, m3, v3)
    w3p = jnp.pad(w3, ((0, 0), (2, 2), (2, 2)))                      # 3x3 -> 7x7
    wdw = (w7 * s7[:, None, None] + w3p * s3[:, None, None]).reshape(C, 49)
    folded = dict(scale0=s0.reshape(C, 1), shift0=t0.reshape(C, 1),
                  wdw=wdw, bdw=(t7 + t3).reshape(C, 1),
                  w1=wfc1.T,          # (C, hid)
                  w2t=wfc2)           # (C, hid)
    return raw, folded


# ------------------------------------------------------------------ reference
def reference_forward(x, raw):
    """Pure-JAX, unfused reference of LFRModule.forward (eval mode)."""
    eps = 1e-5
    N, C, H, W = x.shape
    hp = jax.lax.Precision.HIGHEST

    def aff(g, b, m, v):
        s = g / jnp.sqrt(v + eps)
        return s, b - m * s

    def dwconv(inp, w, pad):
        return jax.lax.conv_general_dilated(
            inp, w[:, None, :, :], (1, 1), ((pad, pad), (pad, pad)),
            dimension_numbers=('NCHW', 'OIHW', 'NCHW'),
            feature_group_count=C, precision=hp)

    s0, t0 = aff(raw['g0'], raw['b0'], raw['m0'], raw['v0'])
    y = x * s0[None, :, None, None] + t0[None, :, None, None]

    s7, t7 = aff(raw['g7'], raw['b7'], raw['m7'], raw['v7'])
    s3, t3 = aff(raw['g3'], raw['b3'], raw['m3'], raw['v3'])
    d = (dwconv(y, raw['w7'], 3) * s7[None, :, None, None] + t7[None, :, None, None]
         + dwconv(y, raw['w3'], 1) * s3[None, :, None, None] + t3[None, :, None, None])
    x2 = x + jnp.maximum(d, 0.0)

    g = jnp.mean(x2, axis=(2, 3))                                     # (N, C)
    h1 = jnp.maximum(jnp.einsum('nc,hc->nh', g, raw['wfc1'], precision=hp), 0.0)
    s = jax.nn.sigmoid(jnp.einsum('nh,ch->nc', h1, raw['wfc2'], precision=hp))
    return x2 * (1.0 + s)[:, :, None, None]


# ------------------------------------------------------------------ main
if __name__ == "__main__":
    batch, channels, size = 2, 32, 16          # hid = channels // 16 = 2
    key = jax.random.PRNGKey(0)
    kx, kp = jax.random.split(key)
    x = jax.random.normal(kx, (batch, channels, size, size), jnp.float32)
    raw, params = init_params(kp, channels)

    out = jax.block_until_ready(lfr_forward(x, params))
    assert out.shape == (batch, channels, size, size)

    ref = jax.block_until_ready(reference_forward(x, raw))
    np.testing.assert_allclose(np.asarray(out), np.asarray(ref), rtol=2e-3, atol=2e-3)
    print("KERNEL_OK")
</pallas_src>

<mosaic_0001>
module attributes {stable_mosaic.version = 11 : i64} {
  func.func @kernel(%arg0: i32, %arg1: memref<1x32x512xf32, #tpu.memory_space<vmem>>, %arg2: memref<1x512xf32, #tpu.memory_space<vmem>>, %arg3: memref<32x1xf32, #tpu.memory_space<vmem>>, %arg4: memref<32x1xf32, #tpu.memory_space<vmem>>, %arg5: memref<32x49xf32, #tpu.memory_space<vmem>>, %arg6: memref<32x1xf32, #tpu.memory_space<vmem>>, %arg7: memref<32x2xf32, #tpu.memory_space<vmem>>, %arg8: memref<32x2xf32, #tpu.memory_space<vmem>>, %arg9: memref<1x32x512xf32, #tpu.memory_space<vmem>>) attributes {dimension_semantics = [#tpu.dimension_semantics<parallel>], iteration_bounds = array<i64: 2>, scalar_prefetch = 0 : i64, scratch_operands = 0 : i64, tpu.core_type = #tpu.core_type<tc>, window_params = [{transform_indices = @transform_0, window_bounds = array<i64: 1, 32, 512>}, {pipeline_mode = #tpu.pipeline_mode<synchronous>, transform_indices = @transform_1, window_bounds = array<i64: 1, 512>}, {pipeline_mode = #tpu.pipeline_mode<synchronous>, transform_indices = @transform_2, window_bounds = array<i64: 32, 1>}, {pipeline_mode = #tpu.pipeline_mode<synchronous>, transform_indices = @transform_3, window_bounds = array<i64: 32, 1>}, {pipeline_mode = #tpu.pipeline_mode<synchronous>, transform_indices = @transform_4, window_bounds = array<i64: 32, 49>}, {pipeline_mode = #tpu.pipeline_mode<synchronous>, transform_indices = @transform_5, window_bounds = array<i64: 32, 1>}, {pipeline_mode = #tpu.pipeline_mode<synchronous>, transform_indices = @transform_6, window_bounds = array<i64: 32, 2>}, {pipeline_mode = #tpu.pipeline_mode<synchronous>, transform_indices = @transform_7, window_bounds = array<i64: 32, 2>}, {transform_indices = @transform_8, window_bounds = array<i64: 1, 32, 512>}]} {
    %c0 = arith.constant 0 : index
    %c0_0 = arith.constant 0 : index
    %c0_1 = arith.constant 0 : index
    %0 = vector.load %arg1[%c0, %c0_0, %c0_1] : memref<1x32x512xf32, #tpu.memory_space<vmem>>, vector<1x32x512xf32>
    %1 = vector.shape_cast %0 : vector<1x32x512xf32> to vector<32x512xf32>
    %c0_2 = arith.constant 0 : index
    %c0_3 = arith.constant 0 : index
    %2 = vector.load %arg2[%c0_2, %c0_3] : memref<1x512xf32, #tpu.memory_space<vmem>>, vector<1x512xf32>
    %c0_4 = arith.constant 0 : index
    %c0_5 = arith.constant 0 : index
    %3 = vector.load %arg3[%c0_4, %c0_5] : memref<32x1xf32, #tpu.memory_space<vmem>>, vector<32x1xf32>
    %4 = vector.broadcast %3 : vector<32x1xf32> to vector<32x512xf32>
    %5 = arith.mulf %1, %4 : vector<32x512xf32>
    %c0_6 = arith.constant 0 : index
    %c0_7 = arith.constant 0 : index
    %6 = vector.load %arg4[%c0_6, %c0_7] : memref<32x1xf32, #tpu.memory_space<vmem>>, vector<32x1xf32>
    %7 = vector.broadcast %6 : vector<32x1xf32> to vector<32x512xf32>
    %8 = arith.addf %5, %7 : vector<32x512xf32>
    %9 = vector.broadcast %2 : vector<1x512xf32> to vector<32x512xf32>
    %10 = arith.mulf %8, %9 : vector<32x512xf32>
    %c0_8 = arith.constant 0 : index
    %c0_9 = arith.constant 0 : index
    %11 = vector.load %arg5[%c0_8, %c0_9] : memref<32x49xf32, #tpu.memory_space<vmem>>, vector<32x49xf32>
    %cst = arith.constant 0.000000e+00 : f32
    %12 = vector.broadcast %cst : f32 to vector<32x512xf32>
    %c69_i32 = arith.constant 69 : i32
    %13 = tpu.dynamic_rotate %10 by %c69_i32 dim 1 : vector<32x512xf32>, i32 -> vector<32x512xf32>
    %14 = vector.extract_strided_slice %11 {offsets = [0, 0], sizes = [32, 1], strides = [1, 1]} : vector<32x49xf32> to vector<32x1xf32>
    %15 = vector.broadcast %14 : vector<32x1xf32> to vector<32x512xf32>
    %16 = arith.mulf %13, %15 : vector<32x512xf32>
    %17 = arith.addf %12, %16 : vector<32x512xf32>
    %c68_i32 = arith.constant 68 : i32
    %18 = tpu.dynamic_rotate %10 by %c68_i32 dim 1 : vector<32x512xf32>, i32 -> vector<32x512xf32>
    %19 = vector.extract_strided_slice %11 {offsets = [0, 1], sizes = [32, 1], strides = [1, 1]} : vector<32x49xf32> to vector<32x1xf32>
    %20 = vector.broadcast %19 : vector<32x1xf32> to vector<32x512xf32>
    %21 = arith.mulf %18, %20 : vector<32x512xf32>
    %22 = arith.addf %17, %21 : vector<32x512xf32>
    %c67_i32 = arith.constant 67 : i32
    %23 = tpu.dynamic_rotate %10 by %c67_i32 dim 1 : vector<32x512xf32>, i32 -> vector<32x512xf32>
    %24 = vector.extract_strided_slice %11 {offsets = [0, 2], sizes = [32, 1], strides = [1, 1]} : vector<32x49xf32> to vector<32x1xf32>
    %25 = vector.broadcast %24 : vector<32x1xf32> to vector<32x512xf32>
    %26 = arith.mulf %23, %25 : vector<32x512xf32>
    %27 = arith.addf %22, %26 : vector<32x512xf32>
    %c66_i32 = arith.constant 66 : i32
    %28 = tpu.dynamic_rotate %10 by %c66_i32 dim 1 : vector<32x512xf32>, i32 -> vector<32x512xf32>
    %29 = vector.extract_strided_slice %11 {offsets = [0, 3], sizes = [32, 1], strides = [1, 1]} : vector<32x49xf32> to vector<32x1xf32>
    %30 = vector.broadcast %29 : vector<32x1xf32> to vector<32x512xf32>
    %31 = arith.mulf %28, %30 : vector<32x512xf32>
    %32 = arith.addf %27, %31 : vector<32x512xf32>
    %c65_i32 = arith.constant 65 : i32
    %33 = tpu.dynamic_rotate %10 by %c65_i32 dim 1 : vector<32x512xf32>, i32 -> vector<32x512xf32>
    %34 = vector.extract_strided_slice %11 {offsets = [0, 4], sizes = [32, 1], strides = [1, 1]} : vector<32x49xf32> to vector<32x1xf32>
    %35 = vector.broadcast %34 : vector<32x1xf32> to vector<32x512xf32>
    %36 = arith.mulf %33, %35 : vector<32x512xf32>
    %37 = arith.addf %32, %36 : vector<32x512xf32>
    %c64_i32 = arith.constant 64 : i32
    %38 = tpu.dynamic_rotate %10 by %c64_i32 dim 1 : vector<32x512xf32>, i32 -> vector<32x512xf32>
    %39 = vector.extract_strided_slice %11 {offsets = [0, 5], sizes = [32, 1], strides = [1, 1]} : vector<32x49xf32> to vector<32x1xf32>
    %40 = vector.broadcast %39 : vector<32x1xf32> to vector<32x512xf32>
    %41 = arith.mulf %38, %40 : vector<32x512xf32>
    %42 = arith.addf %37, %41 : vector<32x512xf32>
    %c63_i32 = arith.constant 63 : i32
    %43 = tpu.dynamic_rotate %10 by %c63_i32 dim 1 : vector<32x512xf32>, i32 -> vector<32x512xf32>
    %44 = vector.extract_strided_slice %11 {offsets = [0, 6], sizes = [32, 1], strides = [1, 1]} : vector<32x49xf32> to vector<32x1xf32>
    %45 = vector.broadcast %44 : vector<32x1xf32> to vector<32x512xf32>
    %46 = arith.mulf %43, %45 : vector<32x512xf32>
    %47 = arith.addf %42, %46 : vector<32x512xf32>
    %c47_i32 = arith.constant 47 : i32
    %48 = tpu.dynamic_rotate %10 by %c47_i32 dim 1 : vector<32x512xf32>, i32 -> vector<32x512xf32>
    %49 = vector.extract_strided_slice %11 {offsets = [0, 7], sizes = [32, 1], strides = [1, 1]} : vector<32x49xf32> to vector<32x1xf32>
    %50 = vector.broadcast %49 : vector<32x1xf32> to vector<32x512xf32>
    %51 = arith.mulf %48, %50 : vector<32x512xf32>
    %52 = arith.addf %47, %51 : vector<32x512xf32>
    %c46_i32 = arith.constant 46 : i32
    %53 = tpu.dynamic_rotate %10 by %c46_i32 dim 1 : vector<32x512xf32>, i32 -> vector<32x512xf32>
    %54 = vector.extract_strided_slice %11 {offsets = [0, 8], sizes = [32, 1], strides = [1, 1]} : vector<32x49xf32> to vector<32x1xf32>
    %55 = vector.broadcast %54 : vector<32x1xf32> to vector<32x512xf32>
    %56 = arith.mulf %53, %55 : vector<32x512xf32>
    %57 = arith.addf %52, %56 : vector<32x512xf32>
    %c45_i32 = arith.constant 45 : i32
    %58 = tpu.dynamic_rotate %10 by %c45_i32 dim 1 : vector<32x512xf32>, i32 -> vector<32x512xf32>
    %59 = vector.extract_strided_slice %11 {offsets = [0, 9], sizes = [32, 1], strides = [1, 1]} : vector<32x49xf32> to vector<32x1xf32>
    %60 = vector.broadcast %59 : vector<32x1xf32> to vector<32x512xf32>
    %61 = arith.mulf %58, %60 : vector<32x512xf32>
    %62 = arith.addf %57, %61 : vector<32x512xf32>
    %c44_i32 = arith.constant 44 : i32
    %63 = tpu.dynamic_rotate %10 by %c44_i32 dim 1 : vector<32x512xf32>, i32 -> vector<32x512xf32>
    %64 = vector.extract_strided_slice %11 {offsets = [0, 10], sizes = [32, 1], strides = [1, 1]} : vector<32x49xf32> to vector<32x1xf32>
    %65 = vector.broadcast %64 : vector<32x1xf32> to vector<32x512xf32>
    %66 = arith.mulf %63, %65 : vector<32x512xf32>
    %67 = arith.addf %62, %66 : vector<32x512xf32>
    %c43_i32 = arith.constant 43 : i32
    %68 = tpu.dynamic_rotate %10 by %c43_i32 dim 1 : vector<32x512xf32>, i32 -> vector<32x512xf32>
    %69 = vector.extract_strided_slice %11 {offsets = [0, 11], sizes = [32, 1], strides = [1, 1]} : vector<32x49xf32> to vector<32x1xf32>
    %70 = vector.broadcast %69 : vector<32x1xf32> to vector<32x512xf32>
    %71 = arith.mulf %68, %70 : vector<32x512xf32>
    %72 = arith.addf %67, %71 : vector<32x512xf32>
    %c42_i32 = arith.constant 42 : i32
    %73 = tpu.dynamic_rotate %10 by %c42_i32 dim 1 : vector<32x512xf32>, i32 -> vector<32x512xf32>
    %74 = vector.extract_strided_slice %11 {offsets = [0, 12], sizes = [32, 1], strides = [1, 1]} : vector<32x49xf32> to vector<32x1xf32>
    %75 = vector.broadcast %74 : vector<32x1xf32> to vector<32x512xf32>
    %76 = arith.mulf %73, %75 : vector<32x512xf32>
    %77 = arith.addf %72, %76 : vector<32x512xf32>
    %c41_i32 = arith.constant 41 : i32
    %78 = tpu.dynamic_rotate %10 by %c41_i32 dim 1 : vector<32x512xf32>, i32 -> vector<32x512xf32>
    %79 = vector.extract_strided_slice %11 {offsets = [0, 13], sizes = [32, 1], strides = [1, 1]} : vector<32x49xf32> to vector<32x1xf32>
    %80 = vector.broadcast %79 : vector<32x1xf32> to vector<32x512xf32>
    %81 = arith.mulf %78, %80 : vector<32x512xf32>
    %82 = arith.addf %77, %81 : vector<32x512xf32>
    %c25_i32 = arith.constant 25 : i32
    %83 = tpu.dynamic_rotate %10 by %c25_i32 dim 1 : vector<32x512xf32>, i32 -> vector<32x512xf32>
    %84 = vector.extract_strided_slice %11 {offsets = [0, 14], sizes = [32, 1], strides = [1, 1]} : vector<32x49xf32> to vector<32x1xf32>
    %85 = vector.broadcast %84 : vector<32x1xf32> to vector<32x512xf32>
    %86 = arith.mulf %83, %85 : vector<32x512xf32>
    %87 = arith.addf %82, %86 : vector<32x512xf32>
    %c24_i32 = arith.constant 24 : i32
    %88 = tpu.dynamic_rotate %10 by %c24_i32 dim 1 : vector<32x512xf32>, i32 -> vector<32x512xf32>
    %89 = vector.extract_strided_slice %11 {offsets = [0, 15], sizes = [32, 1], strides = [1, 1]} : vector<32x49xf32> to vector<32x1xf32>
    %90 = vector.broadcast %89 : vector<32x1xf32> to vector<32x512xf32>
    %91 = arith.mulf %88, %90 : vector<32x512xf32>
    %92 = arith.addf %87, %91 : vector<32x512xf32>
    %c23_i32 = arith.constant 23 : i32
    %93 = tpu.dynamic_rotate %10 by %c23_i32 dim 1 : vector<32x512xf32>, i32 -> vector<32x512xf32>
    %94 = vector.extract_strided_slice %11 {offsets = [0, 16], sizes = [32, 1], strides = [1, 1]} : vector<32x49xf32> to vector<32x1xf32>
    %95 = vector.broadcast %94 : vector<32x1xf32> to vector<32x512xf32>
    %96 = arith.mulf %93, %95 : vector<32x512xf32>
    %97 = arith.addf %92, %96 : vector<32x512xf32>
    %c22_i32 = arith.constant 22 : i32
    %98 = tpu.dynamic_rotate %10 by %c22_i32 dim 1 : vector<32x512xf32>, i32 -> vector<32x512xf32>
    %99 = vector.extract_strided_slice %11 {offsets = [0, 17], sizes = [32, 1], strides = [1, 1]} : vector<32x49xf32> to vector<32x1xf32>
    %100 = vector.broadcast %99 : vector<32x1xf32> to vector<32x512xf32>
    %101 = arith.mulf %98, %100 : vector<32x512xf32>
    %102 = arith.addf %97, %101 : vector<32x512xf32>
    %c21_i32 = arith.constant 21 : i32
    %103 = tpu.dynamic_rotate %10 by %c21_i32 dim 1 : vector<32x512xf32>, i32 -> vector<32x512xf32>
    %104 = vector.extract_strided_slice %11 {offsets = [0, 18], sizes = [32, 1], strides = [1, 1]} : vector<32x49xf32> to vector<32x1xf32>
    %105 = vector.broadcast %104 : vector<32x1xf32> to vector<32x512xf32>
    %106 = arith.mulf %103, %105 : vector<32x512xf32>
    %107 = arith.addf %102, %106 : vector<32x512xf32>
    %c20_i32 = arith.constant 20 : i32
    %108 = tpu.dynamic_rotate %10 by %c20_i32 dim 1 : vector<32x512xf32>, i32 -> vector<32x512xf32>
    %109 = vector.extract_strided_slice %11 {offsets = [0, 19], sizes = [32, 1], strides = [1, 1]} : vector<32x49xf32> to vector<32x1xf32>
    %110 = vector.broadcast %109 : vector<32x1xf32> to vector<32x512xf32>
    %111 = arith.mulf %108, %110 : vector<32x512xf32>
    %112 = arith.addf %107, %111 : vector<32x512xf32>
    %c19_i32 = arith.constant 19 : i32
    %113 = tpu.dynamic_rotate %10 by %c19_i32 dim 1 : vector<32x512xf32>, i32 -> vector<32x512xf32>
    %114 = vector.extract_strided_slice %11 {offsets = [0, 20], sizes = [32, 1], strides = [1, 1]} : vector<32x49xf32> to vector<32x1xf32>
    %115 = vector.broadcast %114 : vector<32x1xf32> to vector<32x512xf32>
    %116 = arith.mulf %113, %115 : vector<32x512xf32>
    %117 = arith.addf %112, %116 : vector<32x512xf32>
    %c3_i32 = arith.constant 3 : i32
    %118 = tpu.dynamic_rotate %10 by %c3_i32 dim 1 : vector<32x512xf32>, i32 -> vector<32x512xf32>
    %119 = vector.extract_strided_slice %11 {offsets = [0, 21], sizes = [32, 1], strides = [1, 1]} : vector<32x49xf32> to vector<32x1xf32>
    %120 = vector.broadcast %119 : vector<32x1xf32> to vector<32x512xf32>
    %121 = arith.mulf %118, %120 : vector<32x512xf32>
    %122 = arith.addf %117, %121 : vector<32x512xf32>
    %c2_i32 = arith.constant 2 : i32
    %123 = tpu.dynamic_rotate %10 by %c2_i32 dim 1 : vector<32x512xf32>, i32 -> vector<32x512xf32>
    %124 = vector.extract_strided_slice %11 {offsets = [0, 22], sizes = [32, 1], strides = [1, 1]} : vector<32x49xf32> to vector<32x1xf32>
    %125 = vector.broadcast %124 : vector<32x1xf32> to vector<32x512xf32>
    %126 = arith.mulf %123, %125 : vector<32x512xf32>
    %127 = arith.addf %122, %126 : vector<32x512xf32>
    %c1_i32 = arith.constant 1 : i32
    %128 = tpu.dynamic_rotate %10 by %c1_i32 dim 1 : vector<32x512xf32>, i32 -> vector<32x512xf32>
    %129 = vector.extract_strided_slice %11 {offsets = [0, 23], sizes = [32, 1], strides = [1, 1]} : vector<32x49xf32> to vector<32x1xf32>
    %130 = vector.broadcast %129 : vector<32x1xf32> to vector<32x512xf32>
    %131 = arith.mulf %128, %130 : vector<32x512xf32>
    %132 = arith.addf %127, %131 : vector<32x512xf32>
    %133 = vector.extract_strided_slice %11 {offsets = [0, 24], sizes = [32, 1], strides = [1, 1]} : vector<32x49xf32> to vector<32x1xf32>
    %134 = vector.broadcast %133 : vector<32x1xf32> to vector<32x512xf32>
    %135 = arith.mulf %10, %134 : vector<32x512xf32>
    %136 = arith.addf %132, %135 : vector<32x512xf32>
    %c511_i32 = arith.constant 511 : i32
    %137 = tpu.dynamic_rotate %10 by %c511_i32 dim 1 : vector<32x512xf32>, i32 -> vector<32x512xf32>
    %138 = vector.extract_strided_slice %11 {offsets = [0, 25], sizes = [32, 1], strides = [1, 1]} : vector<32x49xf32> to vector<32x1xf32>
    %139 = vector.broadcast %138 : vector<32x1xf32> to vector<32x512xf32>
    %140 = arith.mulf %137, %139 : vector<32x512xf32>
    %141 = arith.addf %136, %140 : vector<32x512xf32>
    %c510_i32 = arith.constant 510 : i32
    %142 = tpu.dynamic_rotate %10 by %c510_i32 dim 1 : vector<32x512xf32>, i32 -> vector<32x512xf32>
    %143 = vector.extract_strided_slice %11 {offsets = [0, 26], sizes = [32, 1], strides = [1, 1]} : vector<32x49xf32> to vector<32x1xf32>
    %144 = vector.broadcast %143 : vector<32x1xf32> to vector<32x512xf32>
    %145 = arith.mulf %142, %144 : vector<32x512xf32>
    %146 = arith.addf %141, %145 : vector<32x512xf32>
    %c509_i32 = arith.constant 509 : i32
    %147 = tpu.dynamic_rotate %10 by %c509_i32 dim 1 : vector<32x512xf32>, i32 -> vector<32x512xf32>
    %148 = vector.extract_strided_slice %11 {offsets = [0, 27], sizes = [32, 1], strides = [1, 1]} : vector<32x49xf32> to vector<32x1xf32>
    %149 = vector.broadcast %148 : vector<32x1xf32> to vector<32x512xf32>
    %150 = arith.mulf %147, %149 : vector<32x512xf32>
    %151 = arith.addf %146, %150 : vector<32x512xf32>
    %c493_i32 = arith.constant 493 : i32
    %152 = tpu.dynamic_rotate %10 by %c493_i32 dim 1 : vector<32x512xf32>, i32 -> vector<32x512xf32>
    %153 = vector.extract_strided_slice %11 {offsets = [0, 28], sizes = [32, 1], strides = [1, 1]} : vector<32x49xf32> to vector<32x1xf32>
    %154 = vector.broadcast %153 : vector<32x1xf32> to vector<32x512xf32>
    %155 = arith.mulf %152, %154 : vector<32x512xf32>
    %156 = arith.addf %151, %155 : vector<32x512xf32>
    %c492_i32 = arith.constant 492 : i32
    %157 = tpu.dynamic_rotate %10 by %c492_i32 dim 1 : vector<32x512xf32>, i32 -> vector<32x512xf32>
    %158 = vector.extract_strided_slice %11 {offsets = [0, 29], sizes = [32, 1], strides = [1, 1]} : vector<32x49xf32> to vector<32x1xf32>
    %159 = vector.broadcast %158 : vector<32x1xf32> to vector<32x512xf32>
    %160 = arith.mulf %157, %159 : vector<32x512xf32>
    %161 = arith.addf %156, %160 : vector<32x512xf32>
    %c491_i32 = arith.constant 491 : i32
    %162 = tpu.dynamic_rotate %10 by %c491_i32 dim 1 : vector<32x512xf32>, i32 -> vector<32x512xf32>
    %163 = vector.extract_strided_slice %11 {offsets = [0, 30], sizes = [32, 1], strides = [1, 1]} : vector<32x49xf32> to vector<32x1xf32>
    %164 = vector.broadcast %163 : vector<32x1xf32> to vector<32x512xf32>
    %165 = arith.mulf %162, %164 : vector<32x512xf32>
    %166 = arith.addf %161, %165 : vector<32x512xf32>
    %c490_i32 = arith.constant 490 : i32
    %167 = tpu.dynamic_rotate %10 by %c490_i32 dim 1 : vector<32x512xf32>, i32 -> vector<32x512xf32>
    %168 = vector.extract_strided_slice %11 {offsets = [0, 31], sizes = [32, 1], strides = [1, 1]} : vector<32x49xf32> to vector<32x1xf32>
    %169 = vector.broadcast %168 : vector<32x1xf32> to vector<32x512xf32>
    %170 = arith.mulf %167, %169 : vector<32x512xf32>
    %171 = arith.addf %166, %170 : vector<32x512xf32>
    %c489_i32 = arith.constant 489 : i32
    %172 = tpu.dynamic_rotate %10 by %c489_i32 dim 1 : vector<32x512xf32>, i32 -> vector<32x512xf32>
    %173 = vector.extract_strided_slice %11 {offsets = [0, 32], sizes = [32, 1], strides = [1, 1]} : vector<32x49xf32> to vector<32x1xf32>
    %174 = vector.broadcast %173 : vector<32x1xf32> to vector<32x512xf32>
    %175 = arith.mulf %172, %174 : vector<32x512xf32>
    %176 = arith.addf %171, %175 : vector<32x512xf32>
    %c488_i32 = arith.constant 488 : i32
    %177 = tpu.dynamic_rotate %10 by %c488_i32 dim 1 : vector<32x512xf32>, i32 -> vector<32x512xf32>
    %178 = vector.extract_strided_slice %11 {offsets = [0, 33], sizes = [32, 1], strides = [1, 1]} : vector<32x49xf32> to vector<32x1xf32>
    %179 = vector.broadcast %178 : vector<32x1xf32> to vector<32x512xf32>
    %180 = arith.mulf %177, %179 : vector<32x512xf32>
    %181 = arith.addf %176, %180 : vector<32x512xf32>
    %c487_i32 = arith.constant 487 : i32
    %182 = tpu.dynamic_rotate %10 by %c487_i32 dim 1 : vector<32x512xf32>, i32 -> vector<32x512xf32>
    %183 = vector.extract_strided_slice %11 {offsets = [0, 34], sizes = [32, 1], strides = [1, 1]} : vector<32x49xf32> to vector<32x1xf32>
    %184 = vector.broadcast %183 : vector<32x1xf32> to vector<32x512xf32>
    %185 = arith.mulf %182, %184 : vector<32x512xf32>
    %186 = arith.addf %181, %185 : vector<32x512xf32>
    %c471_i32 = arith.constant 471 : i32
    %187 = tpu.dynamic_rotate %10 by %c471_i32 dim 1 : vector<32x512xf32>, i32 -> vector<32x512xf32>
    %188 = vector.extract_strided_slice %11 {offsets = [0, 35], sizes = [32, 1], strides = [1, 1]} : vector<32x49xf32> to vector<32x1xf32>
    %189 = vector.broadcast %188 : vector<32x1xf32> to vector<32x512xf32>
    %190 = arith.mulf %187, %189 : vector<32x512xf32>
    %191 = arith.addf %186, %190 : vector<32x512xf32>
    %c470_i32 = arith.constant 470 : i32
    %192 = tpu.dynamic_rotate %10 by %c470_i32 dim 1 : vector<32x512xf32>, i32 -> vector<32x512xf32>
    %193 = vector.extract_strided_slice %11 {offsets = [0, 36], sizes = [32, 1], strides = [1, 1]} : vector<32x49xf32> to vector<32x1xf32>
    %194 = vector.broadcast %193 : vector<32x1xf32> to vector<32x512xf32>
    %195 = arith.mulf %192, %194 : vector<32x512xf32>
    %196 = arith.addf %191, %195 : vector<32x512xf32>
    %c469_i32 = arith.constant 469 : i32
    %197 = tpu.dynamic_rotate %10 by %c469_i32 dim 1 : vector<32x512xf32>, i32 -> vector<32x512xf32>
    %198 = vector.extract_strided_slice %11 {offsets = [0, 37], sizes = [32, 1], strides = [1, 1]} : vector<32x49xf32> to vector<32x1xf32>
    %199 = vector.broadcast %198 : vector<32x1xf32> to vector<32x512xf32>
    %200 = arith.mulf %197, %199 : vector<32x512xf32>
    %201 = arith.addf %196, %200 : vector<32x512xf32>
    %c468_i32 = arith.constant 468 : i32
    %202 = tpu.dynamic_rotate %10 by %c468_i32 dim 1 : vector<32x512xf32>, i32 -> vector<32x512xf32>
    %203 = vector.extract_strided_slice %11 {offsets = [0, 38], sizes = [32, 1], strides = [1, 1]} : vector<32x49xf32> to vector<32x1xf32>
    %204 = vector.broadcast %203 : vector<32x1xf32> to vector<32x512xf32>
    %205 = arith.mulf %202, %204 : vector<32x512xf32>
    %206 = arith.addf %201, %205 : vector<32x512xf32>
    %c467_i32 = arith.constant 467 : i32
    %207 = tpu.dynamic_rotate %10 by %c467_i32 dim 1 : vector<32x512xf32>, i32 -> vector<32x512xf32>
    %208 = vector.extract_strided_slice %11 {offsets = [0, 39], sizes = [32, 1], strides = [1, 1]} : vector<32x49xf32> to vector<32x1xf32>
    %209 = vector.broadcast %208 : vector<32x1xf32> to vector<32x512xf32>
    %210 = arith.mulf %207, %209 : vector<32x512xf32>
    %211 = arith.addf %206, %210 : vector<32x512xf32>
    %c466_i32 = arith.constant 466 : i32
    %212 = tpu.dynamic_rotate %10 by %c466_i32 dim 1 : vector<32x512xf32>, i32 -> vector<32x512xf32>
    %213 = vector.extract_strided_slice %11 {offsets = [0, 40], sizes = [32, 1], strides = [1, 1]} : vector<32x49xf32> to vector<32x1xf32>
    %214 = vector.broadcast %213 : vector<32x1xf32> to vector<32x512xf32>
    %215 = arith.mulf %212, %214 : vector<32x512xf32>
    %216 = arith.addf %211, %215 : vector<32x512xf32>
    %c465_i32 = arith.constant 465 : i32
    %217 = tpu.dynamic_rotate %10 by %c465_i32 dim 1 : vector<32x512xf32>, i32 -> vector<32x512xf32>
    %218 = vector.extract_strided_slice %11 {offsets = [0, 41], sizes = [32, 1], strides = [1, 1]} : vector<32x49xf32> to vector<32x1xf32>
    %219 = vector.broadcast %218 : vector<32x1xf32> to vector<32x512xf32>
    %220 = arith.mulf %217, %219 : vector<32x512xf32>
    %221 = arith.addf %216, %220 : vector<32x512xf32>
    %c449_i32 = arith.constant 449 : i32
    %222 = tpu.dynamic_rotate %10 by %c449_i32 dim 1 : vector<32x512xf32>, i32 -> vector<32x512xf32>
    %223 = vector.extract_strided_slice %11 {offsets = [0, 42], sizes = [32, 1], strides = [1, 1]} : vector<32x49xf32> to vector<32x1xf32>
    %224 = vector.broadcast %223 : vector<32x1xf32> to vector<32x512xf32>
    %225 = arith.mulf %222, %224 : vector<32x512xf32>
    %226 = arith.addf %221, %225 : vector<32x512xf32>
    %c448_i32 = arith.constant 448 : i32
    %227 = tpu.dynamic_rotate %10 by %c448_i32 dim 1 : vector<32x512xf32>, i32 -> vector<32x512xf32>
    %228 = vector.extract_strided_slice %11 {offsets = [0, 43], sizes = [32, 1], strides = [1, 1]} : vector<32x49xf32> to vector<32x1xf32>
    %229 = vector.broadcast %228 : vector<32x1xf32> to vector<32x512xf32>
    %230 = arith.mulf %227, %229 : vector<32x512xf32>
    %231 = arith.addf %226, %230 : vector<32x512xf32>
    %c447_i32 = arith.constant 447 : i32
    %232 = tpu.dynamic_rotate %10 by %c447_i32 dim 1 : vector<32x512xf32>, i32 -> vector<32x512xf32>
    %233 = vector.extract_strided_slice %11 {offsets = [0, 44], sizes = [32, 1], strides = [1, 1]} : vector<32x49xf32> to vector<32x1xf32>
    %234 = vector.broadcast %233 : vector<32x1xf32> to vector<32x512xf32>
    %235 = arith.mulf %232, %234 : vector<32x512xf32>
    %236 = arith.addf %231, %235 : vector<32x512xf32>
    %c446_i32 = arith.constant 446 : i32
    %237 = tpu.dynamic_rotate %10 by %c446_i32 dim 1 : vector<32x512xf32>, i32 -> vector<32x512xf32>
    %238 = vector.extract_strided_slice %11 {offsets = [0, 45], sizes = [32, 1], strides = [1, 1]} : vector<32x49xf32> to vector<32x1xf32>
    %239 = vector.broadcast %238 : vector<32x1xf32> to vector<32x512xf32>
    %240 = arith.mulf %237, %239 : vector<32x512xf32>
    %241 = arith.addf %236, %240 : vector<32x512xf32>
    %c445_i32 = arith.constant 445 : i32
    %242 = tpu.dynamic_rotate %10 by %c445_i32 dim 1 : vector<32x512xf32>, i32 -> vector<32x512xf32>
    %243 = vector.extract_strided_slice %11 {offsets = [0, 46], sizes = [32, 1], strides = [1, 1]} : vector<32x49xf32> to vector<32x1xf32>
    %244 = vector.broadcast %243 : vector<32x1xf32> to vector<32x512xf32>
    %245 = arith.mulf %242, %244 : vector<32x512xf32>
    %246 = arith.addf %241, %245 : vector<32x512xf32>
    %c444_i32 = arith.constant 444 : i32
    %247 = tpu.dynamic_rotate %10 by %c444_i32 dim 1 : vector<32x512xf32>, i32 -> vector<32x512xf32>
    %248 = vector.extract_strided_slice %11 {offsets = [0, 47], sizes = [32, 1], strides = [1, 1]} : vector<32x49xf32> to vector<32x1xf32>
    %249 = vector.broadcast %248 : vector<32x1xf32> to vector<32x512xf32>
    %250 = arith.mulf %247, %249 : vector<32x512xf32>
    %251 = arith.addf %246, %250 : vector<32x512xf32>
    %c443_i32 = arith.constant 443 : i32
    %252 = tpu.dynamic_rotate %10 by %c443_i32 dim 1 : vector<32x512xf32>, i32 -> vector<32x512xf32>
    %253 = vector.extract_strided_slice %11 {offsets = [0, 48], sizes = [32, 1], strides = [1, 1]} : vector<32x49xf32> to vector<32x1xf32>
    %254 = vector.broadcast %253 : vector<32x1xf32> to vector<32x512xf32>
    %255 = arith.mulf %252, %254 : vector<32x512xf32>
    %256 = arith.addf %251, %255 : vector<32x512xf32>
    %c0_10 = arith.constant 0 : index
    %c0_11 = arith.constant 0 : index
    %257 = vector.load %arg6[%c0_10, %c0_11] : memref<32x1xf32, #tpu.memory_space<vmem>>, vector<32x1xf32>
    %258 = vector.broadcast %257 : vector<32x1xf32> to vector<32x512xf32>
    %259 = arith.addf %256, %258 : vector<32x512xf32>
    %cst_12 = arith.constant 0.000000e+00 : f32
    %260 = vector.broadcast %cst_12 : f32 to vector<32x512xf32>
    %261 = arith.maximumf %259, %260 : vector<32x512xf32>
    %262 = vector.broadcast %2 : vector<1x512xf32> to vector<32x512xf32>
    %263 = arith.mulf %261, %262 : vector<32x512xf32>
    %264 = arith.addf %1, %263 : vector<32x512xf32>
    %cst_13 = arith.constant dense<0.000000e+00> : vector<32xf32>
    %265 = vector.multi_reduction <add>, %264, %cst_13 [1] : vector<32x512xf32> to vector<32xf32>
    %266 = vector.shape_cast %265 : vector<32xf32> to vector<32x1xf32>
    %cst_14 = arith.constant 3.906250e-03 : f32
    %267 = vector.broadcast %cst_14 : f32 to vector<32x1xf32>
    %268 = arith.mulf %266, %267 : vector<32x1xf32>
    %c0_15 = arith.constant 0 : index
    %c0_16 = arith.constant 0 : index
    %269 = vector.load %arg7[%c0_15, %c0_16] : memref<32x2xf32, #tpu.memory_space<vmem>>, vector<32x2xf32>
    %270 = vector.broadcast %268 : vector<32x1xf32> to vector<32x2xf32>
    %271 = arith.mulf %270, %269 : vector<32x2xf32>
    %cst_17 = arith.constant dense<0.000000e+00> : vector<2xf32>
    %272 = vector.multi_reduction <add>, %271, %cst_17 [0] : vector<32x2xf32> to vector<2xf32>
    %273 = vector.shape_cast %272 : vector<2xf32> to vector<1x2xf32>
    %cst_18 = arith.constant 0.000000e+00 : f32
    %274 = vector.broadcast %cst_18 : f32 to vector<1x2xf32>
    %275 = arith.maximumf %273, %274 : vector<1x2xf32>
    %c0_19 = arith.constant 0 : index
    %c0_20 = arith.constant 0 : index
    %276 = vector.load %arg8[%c0_19, %c0_20] : memref<32x2xf32, #tpu.memory_space<vmem>>, vector<32x2xf32>
    %277 = vector.broadcast %275 : vector<1x2xf32> to vector<32x2xf32>
    %278 = arith.mulf %277, %276 : vector<32x2xf32>
    %cst_21 = arith.constant dense<0.000000e+00> : vector<32xf32>
    %279 = vector.multi_reduction <add>, %278, %cst_21 [1] : vector<32x2xf32> to vector<32xf32>
    %280 = vector.shape_cast %279 : vector<32xf32> to vector<32x1xf32>
    %281 = arith.negf %280 : vector<32x1xf32>
    %282 = math.exp %281 : vector<32x1xf32>
    %cst_22 = arith.constant 1.000000e+00 : f32
    %283 = vector.broadcast %cst_22 : f32 to vector<32x1xf32>
    %284 = arith.addf %283, %282 : vector<32x1xf32>
    %285 = arith.divf %283, %284 : vector<32x1xf32>
    %cst_23 = arith.constant 1.000000e+00 : f32
    %286 = vector.broadcast %cst_23 : f32 to vector<32x1xf32>
    %287 = arith.addf %286, %285 : vector<32x1xf32>
    %288 = vector.broadcast %287 : vector<32x1xf32> to vector<32x512xf32>
    %289 = arith.mulf %264, %288 : vector<32x512xf32>
    %c0_24 = arith.constant 0 : index
    %c0_25 = arith.constant 0 : index
    %c0_26 = arith.constant 0 : index
    %290 = vector.load %arg9[%c0_24, %c0_25, %c0_26] : memref<1x32x512xf32, #tpu.memory_space<vmem>>, vector<1x32x512xf32>
    %291 = vector.shape_cast %290 : vector<1x32x512xf32> to vector<32x512xf32>
    %292 = vector.shape_cast %289 : vector<32x512xf32> to vector<1x32x512xf32>
    tpu.vector_store %arg9[%c0_24, %c0_25, %c0_26], %292 {strides = array<i32>} : memref<1x32x512xf32, #tpu.memory_space<vmem>>, vector<1x32x512xf32>,
    return
  }
  func.func @transform_0(%arg0: i32) -> (i32, i32, i32) {
    %c0_i32 = arith.constant 0 : i32
    %c0_i32_0 = arith.constant 0 : i32
    %c0_i32_1 = arith.constant 0 : i32
    return %arg0, %c0_i32, %c0_i32_0 : i32, i32, i32
  }
  func.func @transform_1(%arg0: i32) -> (i32, i32) {
    %c0_i32 = arith.constant 0 : i32
    %c0_i32_0 = arith.constant 0 : i32
    %c0_i32_1 = arith.constant 0 : i32
    return %c0_i32, %c0_i32_0 : i32, i32
  }
  func.func @transform_2(%arg0: i32) -> (i32, i32) {
    %c0_i32 = arith.constant 0 : i32
    %c0_i32_0 = arith.constant 0 : i32
    %c0_i32_1 = arith.constant 0 : i32
    return %c0_i32, %c0_i32_0 : i32, i32
  }
  func.func @transform_3(%arg0: i32) -> (i32, i32) {
    %c0_i32 = arith.constant 0 : i32
    %c0_i32_0 = arith.constant 0 : i32
    %c0_i32_1 = arith.constant 0 : i32
    return %c0_i32, %c0_i32_0 : i32, i32
  }
  func.func @transform_4(%arg0: i32) -> (i32, i32) {
    %c0_i32 = arith.constant 0 : i32
    %c0_i32_0 = arith.constant 0 : i32
    %c0_i32_1 = arith.constant 0 : i32
    return %c0_i32, %c0_i32_0 : i32, i32
  }
  func.func @transform_5(%arg0: i32) -> (i32, i32) {
    %c0_i32 = arith.constant 0 : i32
    %c0_i32_0 = arith.constant 0 : i32
    %c0_i32_1 = arith.constant 0 : i32
    return %c0_i32, %c0_i32_0 : i32, i32
  }
  func.func @transform_6(%arg0: i32) -> (i32, i32) {
    %c0_i32 = arith.constant 0 : i32
    %c0_i32_0 = arith.constant 0 : i32
    %c0_i32_1 = arith.constant 0 : i32
    return %c0_i32, %c0_i32_0 : i32, i32
  }
  func.func @transform_7(%arg0: i32) -> (i32, i32) {
    %c0_i32 = arith.constant 0 : i32
    %c0_i32_0 = arith.constant 0 : i32
    %c0_i32_1 = arith.constant 0 : i32
    return %c0_i32, %c0_i32_0 : i32, i32
  }
  func.func @transform_8(%arg0: i32) -> (i32, i32, i32) {
    %c0_i32 = arith.constant 0 : i32
    %c0_i32_0 = arith.constant 0 : i32
    %c0_i32_1 = arith.constant 0 : i32
    return %arg0, %c0_i32, %c0_i32_0 : i32, i32, i32
  }
}

</mosaic_0001>

<llo_original>
// kernel: lfr_forward.1
$region0: #{lfr_forward.1}
  #allocation0 [shape = 'u32[]', space=smem, size = 0x4, offset = 0x4, fixed_abs, tag = 'smem constant byte address 0x4 - core index']
  #allocation1 [shape = 'u32[144,128]{1,0:T(1,128)}', space=vmem, size = 0x12000, scoped, tag = 'internal scratch']
  %s0 = inlined_call_operand.vmem [shape: f32[2,32,512], index: 0, kind: input, shape index: {}]
  %s1 = inlined_call_operand.vmem [shape: f32[1,512], index: 1, kind: input, shape index: {}]
  %s2 = inlined_call_operand.vmem [shape: f32[32,1], index: 2, kind: input, shape index: {}]
  %s3 = inlined_call_operand.vmem [shape: f32[32,1], index: 3, kind: input, shape index: {}]
  %s4 = inlined_call_operand.vmem [shape: f32[32,49], index: 4, kind: input, shape index: {}]
  %s5 = inlined_call_operand.vmem [shape: f32[32,1], index: 5, kind: input, shape index: {}]
  %s6 = inlined_call_operand.vmem [shape: f32[32,2], index: 6, kind: input, shape index: {}]
  %s7 = inlined_call_operand.vmem [shape: f32[32,2], index: 7, kind: input, shape index: {}]
  %s8 = inlined_call_operand.vmem [shape: f32[2,32,512], index: 8, kind: output, shape index: {}]
  %s9 = sld [smem:[#allocation0]]
  $region65: #{lfr_forward.1} parent=0
    _
  %s11 = ssub.s32 1, %s9
  %s12 = scalar_select 0, %s11, %s9
  loop: start=0, step=1, limit=4
  $region2: #{lfr_forward.1} parent=0 // loop_pre_header
    _
  $region3: #{lfr_forward.1} parent=0 // loop_header
    %s14 = sphi 0, %s18
    %p15 = scmp.ge.s32.totalorder %s14, 4
    %s24 = sphi 0, %s26
    %s27 = sphi 0, %s24
    %s28 = sphi 0, %s27
    %s44 = sphi 0, %s28
    %s48 = sphi 0, %s48
    %s50 = sphi 0, %s48
    %s51 = sphi 0, %s50
    %s65 = sphi 0, %s51
    %s69 = sphi 0, %s69
    %s71 = sphi 0, %s69
    %s72 = sphi 0, %s71
    %s86 = sphi 0, %s72
    %s90 = sphi 0, %s90
    %s92 = sphi 0, %s90
    %s93 = sphi 0, %s92
    %s107 = sphi 0, %s93
    %s111 = sphi 0, %s111
    %s113 = sphi 0, %s111
    %s114 = sphi 0, %s113
    %s128 = sphi 0, %s114
    %s132 = sphi 0, %s132
    %s134 = sphi 0, %s132
    %s135 = sphi 0, %s134
    %s149 = sphi 0, %s135
    %s153 = sphi 0, %s153
    %s155 = sphi 0, %s153
    %s156 = sphi 0, %s155
    %s170 = sphi 0, %s156
    %s174 = sphi 0, %s174
    %s176 = sphi 0, %s174
    %s177 = sphi 0, %s176
    %s191 = sphi 0, %s177
    %s197 = sphi 0, %s199
    %s200 = sphi 0, %s197
    %s201 = sphi 0, %s200
    %s217 = sphi 0, %s201
  $region4: #{lfr_forward.1} parent=0 // loop_header_branch
    %17 = sbr.rel (%p15) target = $region8
  $region5: #{lfr_forward.1} parent=0 // loop_body
    %s19 = ssub.s32 %s14, 1
    %s20 = ssub.s32 %s14, 2
    %s21 = sadd.s32 %s14, 1
    %s22 = ssub.s32 %s14, %s21
    %p23 = scmp.eq.s32.totalorder %s22, 0
    %s25 = sadd.s32 %s24, 1
    %s26 = scalar_select %p23, %s24, %s25
    %p29 = pneg %p23
    %p30 = scmp.eq.s32.totalorder %s14, 1
    %p31 = por %p29, %p30
    %p32 = scmp.ne.s32.totalorder %s24, %s27
    %p33 = scmp.eq.s32.totalorder %s14, 0
    %p34 = por %p32, %p33
    %p35 = scmp.ne.s32.totalorder %s24, %s27
    %p36 = scmp.eq.s32.totalorder %s19, 1
    %p37 = por %p35, %p36
    %p38 = scmp.ne.s32.totalorder %s27, %s28
    %p39 = scmp.eq.s32.totalorder %s19, 0
    %p40 = por %p38, %p39
    %p41 = scmp.ne.s32.totalorder %s27, %s28
    %p42 = scmp.eq.s32.totalorder %s20, 1
    %p43 = por %p41, %p42
    %p45 = scmp.ne.s32.totalorder %s28, %s44
    %p46 = scmp.eq.s32.totalorder %s20, 0
    %p47 = por %p45, %p46
    %s49 = sadd.s32 %s48, 1
    %p52 = scmp.eq.s32.totalorder %s14, 1
    %p53 = scmp.ne.s32.totalorder %s48, %s50
    %p54 = scmp.eq.s32.totalorder %s14, 0
    %p55 = por %p53, %p54
    %p56 = scmp.ne.s32.totalorder %s48, %s50
    %p57 = scmp.eq.s32.totalorder %s19, 1
    %p58 = por %p56, %p57
    %p59 = scmp.ne.s32.totalorder %s50, %s51
    %p60 = scmp.eq.s32.totalorder %s19, 0
    %p61 = por %p59, %p60
    %p62 = scmp.ne.s32.totalorder %s50, %s51
    %p63 = scmp.eq.s32.totalorder %s20, 1
    %p64 = por %p62, %p63
    %p66 = scmp.ne.s32.totalorder %s51, %s65
    %p67 = scmp.eq.s32.totalorder %s20, 0
    %p68 = por %p66, %p67
    %s70 = sadd.s32 %s69, 1
    %p73 = scmp.eq.s32.totalorder %s14, 1
    %p74 = scmp.ne.s32.totalorder %s69, %s71
    %p75 = scmp.eq.s32.totalorder %s14, 0
    %p76 = por %p74, %p75
    %p77 = scmp.ne.s32.totalorder %s69, %s71
    %p78 = scmp.eq.s32.totalorder %s19, 1
    %p79 = por %p77, %p78
    %p80 = scmp.ne.s32.totalorder %s71, %s72
    %p81 = scmp.eq.s32.totalorder %s19, 0
    %p82 = por %p80, %p81
    %p83 = scmp.ne.s32.totalorder %s71, %s72
    %p84 = scmp.eq.s32.totalorder %s20, 1
    %p85 = por %p83, %p84
    %p87 = scmp.ne.s32.totalorder %s72, %s86
    %p88 = scmp.eq.s32.totalorder %s20, 0
    %p89 = por %p87, %p88
    %s91 = sadd.s32 %s90, 1
    %p94 = scmp.eq.s32.totalorder %s14, 1
    %p95 = scmp.ne.s32.totalorder %s90, %s92
    %p96 = scmp.eq.s32.totalorder %s14, 0
    %p97 = por %p95, %p96
    %p98 = scmp.ne.s32.totalorder %s90, %s92
    %p99 = scmp.eq.s32.totalorder %s19, 1
    %p100 = por %p98, %p99
    %p101 = scmp.ne.s32.totalorder %s92, %s93
    %p102 = scmp.eq.s32.totalorder %s19, 0
    %p103 = por %p101, %p102
    %p104 = scmp.ne.s32.totalorder %s92, %s93
    %p105 = scmp.eq.s32.totalorder %s20, 1
    %p106 = por %p104, %p105
    %p108 = scmp.ne.s32.totalorder %s93, %s107
    %p109 = scmp.eq.s32.totalorder %s20, 0
    %p110 = por %p108, %p109
    %s112 = sadd.s32 %s111, 1
    %p115 = scmp.eq.s32.totalorder %s14, 1
    %p116 = scmp.ne.s32.totalorder %s111, %s113
    %p117 = scmp.eq.s32.totalorder %s14, 0
    %p118 = por %p116, %p117
    %p119 = scmp.ne.s32.totalorder %s111, %s113
    %p120 = scmp.eq.s32.totalorder %s19, 1
    %p121 = por %p119, %p120
    %p122 = scmp.ne.s32.totalorder %s113, %s114
    %p123 = scmp.eq.s32.totalorder %s19, 0
    %p124 = por %p122, %p123
    %p125 = scmp.ne.s32.totalorder %s113, %s114
    %p126 = scmp.eq.s32.totalorder %s20, 1
    %p127 = por %p125, %p126
    %p129 = scmp.ne.s32.totalorder %s114, %s128
    %p130 = scmp.eq.s32.totalorder %s20, 0
    %p131 = por %p129, %p130
    %s133 = sadd.s32 %s132, 1
    %p136 = scmp.eq.s32.totalorder %s14, 1
    %p137 = scmp.ne.s32.totalorder %s132, %s134
    %p138 = scmp.eq.s32.totalorder %s14, 0
    %p139 = por %p137, %p138
    %p140 = scmp.ne.s32.totalorder %s132, %s134
    %p141 = scmp.eq.s32.totalorder %s19, 1
    %p142 = por %p140, %p141
    %p143 = scmp.ne.s32.totalorder %s134, %s135
    %p144 = scmp.eq.s32.totalorder %s19, 0
    %p145 = por %p143, %p144
    %p146 = scmp.ne.s32.totalorder %s134, %s135
    %p147 = scmp.eq.s32.totalorder %s20, 1
    %p148 = por %p146, %p147
    %p150 = scmp.ne.s32.totalorder %s135, %s149
    %p151 = scmp.eq.s32.totalorder %s20, 0
    %p152 = por %p150, %p151
    %s154 = sadd.s32 %s153, 1
    %p157 = scmp.eq.s32.totalorder %s14, 1
    %p158 = scmp.ne.s32.totalorder %s153, %s155
    %p159 = scmp.eq.s32.totalorder %s14, 0
    %p160 = por %p158, %p159
    %p161 = scmp.ne.s32.totalorder %s153, %s155
    %p162 = scmp.eq.s32.totalorder %s19, 1
    %p163 = por %p161, %p162
    %p164 = scmp.ne.s32.totalorder %s155, %s156
    %p165 = scmp.eq.s32.totalorder %s19, 0
    %p166 = por %p164, %p165
    %p167 = scmp.ne.s32.totalorder %s155, %s156
    %p168 = scmp.eq.s32.totalorder %s20, 1
    %p169 = por %p167, %p168
    %p171 = scmp.ne.s32.totalorder %s156, %s170
    %p172 = scmp.eq.s32.totalorder %s20, 0
    %p173 = por %p171, %p172
    %s175 = sadd.s32 %s174, 1
    %p178 = scmp.eq.s32.totalorder %s14, 1
    %p179 = scmp.ne.s32.totalorder %s174, %s176
    %p180 = scmp.eq.s32.totalorder %s14, 0
    %p181 = por %p179, %p180
    %p182 = scmp.ne.s32.totalorder %s174, %s176
    %p183 = scmp.eq.s32.totalorder %s19, 1
    %p184 = por %p182, %p183
    %p185 = scmp.ne.s32.totalorder %s176, %s177
    %p186 = scmp.eq.s32.totalorder %s19, 0
    %p187 = por %p185, %p186
    %p188 = scmp.ne.s32.totalorder %s176, %s177
    %p189 = scmp.eq.s32.totalorder %s20, 1
    %p190 = por %p188, %p189
    %p192 = scmp.ne.s32.totalorder %s177, %s191
    %p193 = scmp.eq.s32.totalorder %s20, 0
    %p194 = por %p192, %p193
    %s195 = ssub.s32 %s14, %s21
    %p196 = scmp.eq.s32.totalorder %s195, 0
    %s198 = sadd.s32 %s197, 1
    %s199 = scalar_select %p196, %s197, %s198
    %p202 = pneg %p196
    %p203 = scmp.eq.s32.totalorder %s14, 1
    %p204 = por %p202, %p203
    %p205 = scmp.ne.s32.totalorder %s197, %s200
    %p206 = scmp.eq.s32.totalorder %s14, 0
    %p207 = por %p205, %p206
    %p208 = scmp.ne.s32.totalorder %s197, %s200
    %p209 = scmp.eq.s32.totalorder %s19, 1
    %p210 = por %p208, %p209
    %p211 = scmp.ne.s32.totalorder %s200, %s201
    %p212 = scmp.eq.s32.totalorder %s19, 0
    %p213 = por %p211, %p212
    %p214 = scmp.ne.s32.totalorder %s200, %s201
    %p215 = scmp.eq.s32.totalorder %s20, 1
    %p216 = por %p214, %p215
    %p218 = scmp.ne.s32.totalorder %s201, %s217
    %p219 = scmp.eq.s32.totalorder %s20, 0
    %p220 = por %p218, %p219
    %p221 = scmp.le.s32.totalorder 1, %s14
    %p222 = scmp.lt.s32.totalorder %s14, 3
    %p223 = pnand %p221, %p222
    %p224 = pneg %p223
    // Predicated region
    $region9: #{lfr_forward.1} parent=5 // pred_check
      _
    $region10: #{lfr_forward.1} parent=5 // pred_check_branch
      %226 = sbr.rel (%p223) target = $region12
    $region11: #{lfr_forward.1} parent=5 // pred_region
      %s227 = ssub.s32 %s14, 1
      // Predicated region
      $region13: #{lfr_forward.1} parent=11 // pred_check
        %p228 = pneg %p61
      $region14: #{lfr_forward.1} parent=11 // pred_check_branch
        %230 = sbr.rel (%p228) target = $region16
      $region15: #{lfr_forward.1} parent=11 // pred_region
        _
      $region16: #{lfr_forward.1} parent=11 // pred_fallthru
        _
      // Predicated region
      $region17: #{lfr_forward.1} parent=11 // pred_check
        %p231 = pneg %p82
      $region18: #{lfr_forward.1} parent=11 // pred_check_branch
        %233 = sbr.rel (%p231) target = $region20
      $region19: #{lfr_forward.1} parent=11 // pred_region
        _
      $region20: #{lfr_forward.1} parent=11 // pred_fallthru
        _
      // Predicated region
      $region21: #{lfr_forward.1} parent=11 // pred_check
        %p234 = pneg %p103
      $region22: #{lfr_forward.1} parent=11 // pred_check_branch
        %236 = sbr.rel (%p234) target = $region24
      $region23: #{lfr_forward.1} parent=11 // pred_region
        _
      $region24: #{lfr_forward.1} parent=11 // pred_fallthru
        _
      // Predicated region
      $region25: #{lfr_forward.1} parent=11 // pred_check
        %p237 = pneg %p124
      $region26: #{lfr_forward.1} parent=11 // pred_check_branch
        %239 = sbr.rel (%p237) target = $region28
      $region27: #{lfr_forward.1} parent=11 // pred_region
        _
      $region28: #{lfr_forward.1} parent=11 // pred_fallthru
        _
      // Predicated region
      $region29: #{lfr_forward.1} parent=11 // pred_check
        %p240 = pneg %p145
      $region30: #{lfr_forward.1} parent=11 // pred_check_branch
        %242 = sbr.rel (%p240) target = $region32
      $region31: #{lfr_forward.1} parent=11 // pred_region
        _
      $region32: #{lfr_forward.1} parent=11 // pred_fallthru
        _
      // Predicated region
      $region33: #{lfr_forward.1} parent=11 // pred_check
        %p243 = pneg %p166
      $region34: #{lfr_forward.1} parent=11 // pred_check_branch
        %245 = sbr.rel (%p243) target = $region36
      $region35: #{lfr_forward.1} parent=11 // pred_region
        _
      $region36: #{lfr_forward.1} parent=11 // pred_fallthru
        _
      // Predicated region
      $region37: #{lfr_forward.1} parent=11 // pred_check
        %p246 = pneg %p187
      $region38: #{lfr_forward.1} parent=11 // pred_check_branch
        %248 = sbr.rel (%p246) target = $region40
      $region39: #{lfr_forward.1} parent=11 // pred_region
        _
      $region40: #{lfr_forward.1} parent=11 // pred_fallthru
        _
    $region12: #{lfr_forward.1} parent=5 // pred_fallthru
      _
    %p249 = scmp.lt.s32.totalorder %s14, 2
    // Predicated region
    $region41: #{lfr_forward.1} parent=5 // pred_check
      %p250 = pneg %p249
    $region42: #{lfr_forward.1} parent=5 // pred_check_branch
      %252 = sbr.rel (%p250) target = $region44
    $region43: #{lfr_forward.1} parent=5 // pred_region
      // Predicated region
      $region45: #{lfr_forward.1} parent=43 // pred_check
        %p253 = pneg %p34
      $region46: #{lfr_forward.1} parent=43 // pred_check_branch
        %255 = sbr.rel (%p253) target = $region48
      $region47: #{lfr_forward.1} parent=43 // pred_region
        %p256 = scmp.lt.s32.totalorder %s14, 1
        %s257 = scalar_select %p256, %s14, 1
        %s258 = smul.addr %s257, 16
        %s259 = smul.addr %s258, 8
        %s260 = scalar_lea.vmem %s0, %s259
      $region48: #{lfr_forward.1} parent=43 // pred_fallthru
        _
    $region44: #{lfr_forward.1} parent=5 // pred_fallthru
      _
    %p261 = scmp.le.s32.totalorder 1, %s14
    %p262 = scmp.lt.s32.totalorder %s14, 3
    %p263 = pnand %p261, %p262
    %p264 = pneg %p263
    // Predicated region
    $region49: #{lfr_forward.1} parent=5 // pred_check
      _
    $region50: #{lfr_forward.1} parent=5 // pred_check_branch
      %266 = sbr.rel (%p263) target = $region52
    $region51: #{lfr_forward.1} parent=5 // pred_region
      %s267 = ssub.s32 %s14, 1
      %p268 = scmp.lt.s32.totalorder %s19, 1
      %s269 = scalar_select %p268, %s19, 1
      %s270 = smul.addr %s269, 16
      %s271 = smul.addr %s270, 8
      %s272 = scalar_lea.vmem %s0, %s271
      %p273 = pneg %p40
      %p274 = pneg %p37
      %p275 = pneg %p61
      %p276 = pneg %p58
      %p277 = pneg %p82
      %p278 = pneg %p79
      %p279 = pneg %p103
      %p280 = pneg %p100
      %p281 = pneg %p124
      %p282 = pneg %p121
      %p283 = pneg %p145
      %p284 = pneg %p142
      %p285 = pneg %p166
      %p286 = pneg %p163
      %p287 = pneg %p187
      %p288 = pneg %p184
      %p289 = pneg %p213
      %p290 = pneg %p210
      %p291 = scmp.lt.s32.totalorder %s19, 1
      %s292 = scalar_select %p291, %s19, 1
      %s293 = smul.addr %s292, 16
      %s294 = smul.addr %s293, 8
      %s295 = scalar_lea.vmem %s8, %s294
      %p296 = scmp.lt.s32.totalorder %s19, 1
      %s297 = scalar_select %p296, %s19, 1
      %s298 = smul.addr %s297, 16
      %s299 = smul.addr %s298, 8
      %s300 = scalar_lea.vmem %s0, %s299
      %p301 = scmp.lt.s32.totalorder %s19, 1
      %s302 = scalar_select %p301, %s19, 1
      %s303 = smul.addr %s302, 16
      %s304 = smul.addr %s303, 8
      %s305 = scalar_lea.vmem %s8, %s304
      %v306 = vld [vmem:[%s300] sm:$0xff]
      %v307 = vld [vmem:[%s300 + $0x8] sm:$0xff]
      %v308 = vld [vmem:[%s300 + $0x10] sm:$0xff]
      %v309 = vld [vmem:[%s300 + $0x18] sm:$0xff]
      %v310 = vld [vmem:[%s300 + $0x20] sm:$0xff]
      %v311 = vld [vmem:[%s300 + $0x28] sm:$0xff]
      %v312 = vld [vmem:[%s300 + $0x30] sm:$0xff]
      %v313 = vld [vmem:[%s300 + $0x38] sm:$0xff]
      %v314 = vld [vmem:[%s300 + $0x40] sm:$0xff]
      %v315 = vld [vmem:[%s300 + $0x48] sm:$0xff]
      %v316 = vld [vmem:[%s300 + $0x50] sm:$0xff]
      %v317 = vld [vmem:[%s300 + $0x58] sm:$0xff]
      %v318 = vld [vmem:[%s300 + $0x60] sm:$0xff]
      %v319 = vld [vmem:[%s300 + $0x68] sm:$0xff]
      %v320 = vld [vmem:[%s300 + $0x70] sm:$0xff]
      %v321 = vld [vmem:[%s300 + $0x78] sm:$0xff]
      %v322 = vld [vmem:[%s1] sm:$0xf]
      %v323 = vld [vmem:[%s2] sm:$0xff]
      %v324 = vld [vmem:[%s2 + $0x8] sm:$0xff]
      %v325 = vld [vmem:[%s2 + $0x10] sm:$0xff]
      %v326 = vld [vmem:[%s2 + $0x18] sm:$0xff]
      %328 = vset.pattern.permute.xlu0 0
      %329 = vperm.xlu0 %328, %v323
      %v330 = vpop.permute.xlu0 %329
      %333 = vset.pattern.permute.xlu0 0
      %334 = vperm.xlu0 %333, %v324
      %v335 = vpop.permute.xlu0 %334
      %338 = vset.pattern.permute.xlu0 0
      %339 = vperm.xlu0 %338, %v325
      %v340 = vpop.permute.xlu0 %339
      %343 = vset.pattern.permute.xlu0 0
      %344 = vperm.xlu0 %343, %v326
      %v345 = vpop.permute.xlu0 %344
      %v347 = vmul.f32 %v306, %v330
      %v348 = vmul.f32 %v307, %v330
      %v349 = vmul.f32 %v308, %v330
      %v350 = vmul.f32 %v309, %v330
      %v351 = vmul.f32 %v310, %v335
      %v352 = vmul.f32 %v311, %v335
      %v353 = vmul.f32 %v312, %v335
      %v354 = vmul.f32 %v313, %v335
      %v355 = vmul.f32 %v314, %v340
      %v356 = vmul.f32 %v315, %v340
      %v357 = vmul.f32 %v316, %v340
      %v358 = vmul.f32 %v317, %v340
      %v359 = vmul.f32 %v318, %v345
      %v360 = vmul.f32 %v319, %v345
      %v361 = vmul.f32 %v320, %v345
      %v362 = vmul.f32 %v321, %v345
      %v363 = vld [vmem:[%s3] sm:$0xff]
      %v364 = vld [vmem:[%s3 + $0x8] sm:$0xff]
      %v365 = vld [vmem:[%s3 + $0x10] sm:$0xff]
      %v366 = vld [vmem:[%s3 + $0x18] sm:$0xff]
      %368 = vset.pattern.permute.xlu0 0
      %369 = vperm.xlu0 %368, %v363
      %v370 = vpop.permute.xlu0 %369
      %373 = vset.pattern.permute.xlu0 0
      %374 = vperm.xlu0 %373, %v364
      %v375 = vpop.permute.xlu0 %374
      %378 = vset.pattern.permute.xlu0 0
      %379 = vperm.xlu0 %378, %v365
      %v380 = vpop.permute.xlu0 %379
      %383 = vset.pattern.permute.xlu0 0
      %384 = vperm.xlu0 %383, %v366
      %v385 = vpop.permute.xlu0 %384
      %v387 = vadd.f32 %v347, %v370
      %v388 = vadd.f32 %v348, %v370
      %v389 = vadd.f32 %v349, %v370
      %v390 = vadd.f32 %v350, %v370
      %v391 = vadd.f32 %v351, %v375
      %v392 = vadd.f32 %v352, %v375
      %v393 = vadd.f32 %v353, %v375
      %v394 = vadd.f32 %v354, %v375
      %v395 = vadd.f32 %v355, %v380
      %v396 = vadd.f32 %v356, %v380
      %v397 = vadd.f32 %v357, %v380
      %v398 = vadd.f32 %v358, %v380
      %v399 = vadd.f32 %v359, %v385
      %v400 = vadd.f32 %v360, %v385
      %v401 = vadd.f32 %v361, %v385
      %v402 = vadd.f32 %v362, %v385
      %v404 = vlaneseq
      %v405 = vshrl.u32 %v404, 7
      %v406 = vsub.s32 0, %v405
      %v407 = vrot.slane %v322, %v406
      %v408 = vlaneseq
      %v409 = vshrl.u32 %v408, 7
      %v410 = vsub.s32 1, %v409
      %v411 = vrot.slane %v322, %v410
      %v412 = vlaneseq
      %v413 = vshrl.u32 %v412, 7
      %v414 = vsub.s32 2, %v413
      %v415 = vrot.slane %v322, %v414
      %v416 = vlaneseq
      %v417 = vshrl.u32 %v416, 7
      %v418 = vsub.s32 3, %v417
      %v419 = vrot.slane %v322, %v418
      %v424 = vmul.f32 %v387, %v407
      %v425 = vmul.f32 %v388, %v411
      %v426 = vmul.f32 %v389, %v415
      %v427 = vmul.f32 %v390, %v419
      %v428 = vmul.f32 %v391, %v407
      %v429 = vmul.f32 %v392, %v411
      %v430 = vmul.f32 %v393, %v415
      %v431 = vmul.f32 %v394, %v419
      %v432 = vmul.f32 %v395, %v407
      %v433 = vmul.f32 %v396, %v411
      %v434 = vmul.f32 %v397, %v415
      %v435 = vmul.f32 %v398, %v419
      %v436 = vmul.f32 %v399, %v407
      %v437 = vmul.f32 %v400, %v411
      %v438 = vmul.f32 %v401, %v415
      %v439 = vmul.f32 %v402, %v419
      %v440 = vld [vmem:[%s4] sm:$0xff]
      %v441 = vld [vmem:[%s4 + $0x8] sm:$0xff]
      %v442 = vld [vmem:[%s4 + $0x10] sm:$0xff]
      %v443 = vld [vmem:[%s4 + $0x18] sm:$0xff]
      %444 = vrot.lane.b32.xlu0 %v424, 69
      %v445 = vpop.permute.xlu0 %444
      %446 = vrot.lane.b32.xlu0 %v428, 69
      %v447 = vpop.permute.xlu0 %446
      %448 = vrot.lane.b32.xlu0 %v432, 69
      %v449 = vpop.permute.xlu0 %448
      %450 = vrot.lane.b32.xlu0 %v436, 69
      %v451 = vpop.permute.xlu0 %450
      %452 = vrot.lane.b32.xlu0 %v425, 69
      %v453 = vpop.permute.xlu0 %452
      %454 = vrot.lane.b32.xlu0 %v429, 69
      %v455 = vpop.permute.xlu0 %454
      %456 = vrot.lane.b32.xlu0 %v433, 69
      %v457 = vpop.permute.xlu0 %456
      %458 = vrot.lane.b32.xlu0 %v437, 69
      %v459 = vpop.permute.xlu0 %458
      %460 = vrot.lane.b32.xlu0 %v426, 69
      %v461 = vpop.permute.xlu0 %460
      %462 = vrot.lane.b32.xlu0 %v430, 69
      %v463 = vpop.permute.xlu0 %462
      %464 = vrot.lane.b32.xlu0 %v434, 69
      %v465 = vpop.permute.xlu0 %464
      %466 = vrot.lane.b32.xlu0 %v438, 69
      %v467 = vpop.permute.xlu0 %466
      %468 = vrot.lane.b32.xlu0 %v427, 69
      %v469 = vpop.permute.xlu0 %468
      %470 = vrot.lane.b32.xlu0 %v431, 69
      %v471 = vpop.permute.xlu0 %470
      %472 = vrot.lane.b32.xlu0 %v435, 69
      %v473 = vpop.permute.xlu0 %472
      %474 = vrot.lane.b32.xlu0 %v439, 69
      %v475 = vpop.permute.xlu0 %474
      %v476 = vlaneseq
      %v477 = vand.u32 %v476, 127
      %vm478 = vcmp.lt.s32.totalorder %v477, 69
      %v479 = vsel %vm478, %v461, %v469
      %v480 = vsel %vm478, %v463, %v471
      %v481 = vsel %vm478, %v465, %v473
      %v482 = vsel %vm478, %v467, %v475
      %v483 = vsel %vm478, %v453, %v461
      %v484 = vsel %vm478, %v455, %v463
      %v485 = vsel %vm478, %v457, %v465
      %v486 = vsel %vm478, %v459, %v467
      %v487 = vsel %vm478, %v445, %v453
      %v488 = vsel %vm478, %v447, %v455
      %v489 = vsel %vm478, %v449, %v457
      %v490 = vsel %vm478, %v451, %v459
      %v491 = vsel %vm478, %v469, %v445
      %v492 = vsel %vm478, %v471, %v447
      %v493 = vsel %vm478, %v473, %v449
      %v494 = vsel %vm478, %v475, %v451
      %496 = vset.pattern.permute.xlu0 0
      %497 = vperm.xlu0 %496, %v440
      %v498 = vpop.permute.xlu0 %497
      %501 = vset.pattern.permute.xlu0 0
      %502 = vperm.xlu0 %501, %v441
      %v503 = vpop.permute.xlu0 %502
      %506 = vset.pattern.permute.xlu0 0
      %507 = vperm.xlu0 %506, %v442
      %v508 = vpop.permute.xlu0 %507
      %511 = vset.pattern.permute.xlu0 0
      %512 = vperm.xlu0 %511, %v443
      %v513 = vpop.permute.xlu0 %512
      %v515 = vmul.f32 %v491, %v498
      %v516 = vmul.f32 %v487, %v498
      %v517 = vmul.f32 %v483, %v498
      %v518 = vmul.f32 %v479, %v498
      %v519 = vmul.f32 %v492, %v503
      %v520 = vmul.f32 %v488, %v503
      %v521 = vmul.f32 %v484, %v503
      %v522 = vmul.f32 %v480, %v503
      %v523 = vmul.f32 %v493, %v508
      %v524 = vmul.f32 %v489, %v508
      %v525 = vmul.f32 %v485, %v508
      %v526 = vmul.f32 %v481, %v508
      %v527 = vmul.f32 %v494, %v513
      %v528 = vmul.f32 %v490, %v513
      %v529 = vmul.f32 %v486, %v513
      %v530 = vmul.f32 %v482, %v513
      %v531 = vadd.f32 %v515, 0.0
      %v532 = vadd.f32 %v516, 0.0
      %v533 = vadd.f32 %v517, 0.0
      %v534 = vadd.f32 %v518, 0.0
      %v535 = vadd.f32 %v519, 0.0
      %v536 = vadd.f32 %v520, 0.0
      %v537 = vadd.f32 %v521, 0.0
      %v538 = vadd.f32 %v522, 0.0
      %v539 = vadd.f32 %v523, 0.0
      %v540 = vadd.f32 %v524, 0.0
      %v541 = vadd.f32 %v525, 0.0
      %v542 = vadd.f32 %v526, 0.0
      %v543 = vadd.f32 %v527, 0.0
      %v544 = vadd.f32 %v528, 0.0
      %v545 = vadd.f32 %v529, 0.0
      %v546 = vadd.f32 %v530, 0.0
      %547 = vrot.lane.b32.xlu0 %v424, 68
      %v548 = vpop.permute.xlu0 %547
      %549 = vrot.lane.b32.xlu0 %v428, 68
      %v550 = vpop.permute.xlu0 %549
      %551 = vrot.lane.b32.xlu0 %v432, 68
      %v552 = vpop.permute.xlu0 %551
      %553 = vrot.lane.b32.xlu0 %v436, 68
      %v554 = vpop.permute.xlu0 %553
      %555 = vrot.lane.b32.xlu0 %v425, 68
      %v556 = vpop.permute.xlu0 %555
      %557 = vrot.lane.b32.xlu0 %v429, 68
      %v558 = vpop.permute.xlu0 %557
      %559 = vrot.lane.b32.xlu0 %v433, 68
      %v560 = vpop.permute.xlu0 %559
      %561 = vrot.lane.b32.xlu0 %v437, 68
      %v562 = vpop.permute.xlu0 %561
      %563 = vrot.lane.b32.xlu0 %v426, 68
      %v564 = vpop.permute.xlu0 %563
      %565 = vrot.lane.b32.xlu0 %v430, 68
      %v566 = vpop.permute.xlu0 %565
      %567 = vrot.lane.b32.xlu0 %v434, 68
      %v568 = vpop.permute.xlu0 %567
      %569 = vrot.lane.b32.xlu0 %v438, 68
      %v570 = vpop.permute.xlu0 %569
      %571 = vrot.lane.b32.xlu0 %v427, 68
      %v572 = vpop.permute.xlu0 %571
      %573 = vrot.lane.b32.xlu0 %v431, 68
      %v574 = vpop.permute.xlu0 %573
      %575 = vrot.lane.b32.xlu0 %v435, 68
      %v576 = vpop.permute.xlu0 %575
      %577 = vrot.lane.b32.xlu0 %v439, 68
      %v578 = vpop.permute.xlu0 %577
      %vm579 = vcmp.lt.s32.totalorder %v477, 68
      %v580 = vsel %vm579, %v564, %v572
      %v581 = vsel %vm579, %v566, %v574
      %v582 = vsel %vm579, %v568, %v576
      %v583 = vsel %vm579, %v570, %v578
      %v584 = vsel %vm579, %v556, %v564
      %v585 = vsel %vm579, %v558, %v566
      %v586 = vsel %vm579, %v560, %v568
      %v587 = vsel %vm579, %v562, %v570
      %v588 = vsel %vm579, %v548, %v556
      %v589 = vsel %vm579, %v550, %v558
      %v590 = vsel %vm579, %v552, %v560
      %v591 = vsel %vm579, %v554, %v562
      %v592 = vsel %vm579, %v572, %v548
      %v593 = vsel %vm579, %v574, %v550
      %v594 = vsel %vm579, %v576, %v552
      %v595 = vsel %vm579, %v578, %v554
      %596 = vset.pattern.permute.xlu0 1
      %597 = vperm.xlu0 %596, %v440
      %v598 = vpop.permute.xlu0 %597
      %600 = vset.pattern.permute.xlu0 1
      %601 = vperm.xlu0 %600, %v441
      %v602 = vpop.permute.xlu0 %601
      %604 = vset.pattern.permute.xlu0 1
      %605 = vperm.xlu0 %604, %v442
      %v606 = vpop.permute.xlu0 %605
      %608 = vset.pattern.permute.xlu0 1
      %609 = vperm.xlu0 %608, %v443
      %v610 = vpop.permute.xlu0 %609
      %v612 = vmul.f32 %v592, %v598
      %v613 = vmul.f32 %v588, %v598
      %v614 = vmul.f32 %v584, %v598
      %v615 = vmul.f32 %v580, %v598
      %v616 = vmul.f32 %v593, %v602
      %v617 = vmul.f32 %v589, %v602
      %v618 = vmul.f32 %v585, %v602
      %v619 = vmul.f32 %v581, %v602
      %v620 = vmul.f32 %v594, %v606
      %v621 = vmul.f32 %v590, %v606
      %v622 = vmul.f32 %v586, %v606
      %v623 = vmul.f32 %v582, %v606
      %v624 = vmul.f32 %v595, %v610
      %v625 = vmul.f32 %v591, %v610
      %v626 = vmul.f32 %v587, %v610
      %v627 = vmul.f32 %v583, %v610
      %v628 = vadd.f32 %v531, %v612
      %v629 = vadd.f32 %v532, %v613
      %v630 = vadd.f32 %v533, %v614
      %v631 = vadd.f32 %v534, %v615
      %v632 = vadd.f32 %v535, %v616
      %v633 = vadd.f32 %v536, %v617
      %v634 = vadd.f32 %v537, %v618
      %v635 = vadd.f32 %v538, %v619
      %v636 = vadd.f32 %v539, %v620
      %v637 = vadd.f32 %v540, %v621
      %v638 = vadd.f32 %v541, %v622
      %v639 = vadd.f32 %v542, %v623
      %v640 = vadd.f32 %v543, %v624
      %v641 = vadd.f32 %v544, %v625
      %v642 = vadd.f32 %v545, %v626
      %v643 = vadd.f32 %v546, %v627
      %644 = vrot.lane.b32.xlu0 %v424, 67
      %v645 = vpop.permute.xlu0 %644
      %646 = vrot.lane.b32.xlu0 %v428, 67
      %v647 = vpop.permute.xlu0 %646
      %648 = vrot.lane.b32.xlu0 %v432, 67
      %v649 = vpop.permute.xlu0 %648
      %650 = vrot.lane.b32.xlu0 %v436, 67
      %v651 = vpop.permute.xlu0 %650
      %652 = vrot.lane.b32.xlu0 %v425, 67
      %v653 = vpop.permute.xlu0 %652
      %654 = vrot.lane.b32.xlu0 %v429, 67
      %v655 = vpop.permute.xlu0 %654
      %656 = vrot.lane.b32.xlu0 %v433, 67
      %v657 = vpop.permute.xlu0 %656
      %658 = vrot.lane.b32.xlu0 %v437, 67
      %v659 = vpop.permute.xlu0 %658
      %660 = vrot.lane.b32.xlu0 %v426, 67
      %v661 = vpop.permute.xlu0 %660
      %662 = vrot.lane.b32.xlu0 %v430, 67
      %v663 = vpop.permute.xlu0 %662
      %664 = vrot.lane.b32.xlu0 %v434, 67
      %v665 = vpop.permute.xlu0 %664
      %666 = vrot.lane.b32.xlu0 %v438, 67
      %v667 = vpop.permute.xlu0 %666
      %668 = vrot.lane.b32.xlu0 %v427, 67
      %v669 = vpop.permute.xlu0 %668
      %670 = vrot.lane.b32.xlu0 %v431, 67
      %v671 = vpop.permute.xlu0 %670
      %672 = vrot.lane.b32.xlu0 %v435, 67
      %v673 = vpop.permute.xlu0 %672
      %674 = vrot.lane.b32.xlu0 %v439, 67
      %v675 = vpop.permute.xlu0 %674
      %vm676 = vcmp.lt.s32.totalorder %v477, 67
      %v677 = vsel %vm676, %v661, %v669
      %v678 = vsel %vm676, %v663, %v671
      %v679 = vsel %vm676, %v665, %v673
      %v680 = vsel %vm676, %v667, %v675
      %v681 = vsel %vm676, %v653, %v661
      %v682 = vsel %vm676, %v655, %v663
      %v683 = vsel %vm676, %v657, %v665
      %v684 = vsel %vm676, %v659, %v667
      %v685 = vsel %vm676, %v645, %v653
      %v686 = vsel %vm676, %v647, %v655
      %v687 = vsel %vm676, %v649, %v657
      %v688 = vsel %vm676, %v651, %v659
      %v689 = vsel %vm676, %v669, %v645
      %v690 = vsel %vm676, %v671, %v647
      %v691 = vsel %vm676, %v673, %v649
      %v692 = vsel %vm676, %v675, %v651
      %693 = vset.pattern.permute.xlu0 2
      %694 = vperm.xlu0 %693, %v440
      %v695 = vpop.permute.xlu0 %694
      %697 = vset.pattern.permute.xlu0 2
      %698 = vperm.xlu0 %697, %v441
      %v699 = vpop.permute.xlu0 %698
      %701 = vset.pattern.permute.xlu0 2
      %702 = vperm.xlu0 %701, %v442
      %v703 = vpop.permute.xlu0 %702
      %705 = vset.pattern.permute.xlu0 2
      %706 = vperm.xlu0 %705, %v443
      %v707 = vpop.permute.xlu0 %706
      %v709 = vmul.f32 %v689, %v695
      %v710 = vmul.f32 %v685, %v695
      %v711 = vmul.f32 %v681, %v695
      %v712 = vmul.f32 %v677, %v695
      %v713 = vmul.f32 %v690, %v699
      %v714 = vmul.f32 %v686, %v699
      %v715 = vmul.f32 %v682, %v699
      %v716 = vmul.f32 %v678, %v699
      %v717 = vmul.f32 %v691, %v703
      %v718 = vmul.f32 %v687, %v703
      %v719 = vmul.f32 %v683, %v703
      %v720 = vmul.f32 %v679, %v703
      %v721 = vmul.f32 %v692, %v707
      %v722 = vmul.f32 %v688, %v707
      %v723 = vmul.f32 %v684, %v707
      %v724 = vmul.f32 %v680, %v707
      %v725 = vadd.f32 %v628, %v709
      %v726 = vadd.f32 %v629, %v710
      %v727 = vadd.f32 %v630, %v711
      %v728 = vadd.f32 %v631, %v712
      %v729 = vadd.f32 %v632, %v713
      %v730 = vadd.f32 %v633, %v714
      %v731 = vadd.f32 %v634, %v715
      %v732 = vadd.f32 %v635, %v716
      %v733 = vadd.f32 %v636, %v717
      %v734 = vadd.f32 %v637, %v718
      %v735 = vadd.f32 %v638, %v719
      %v736 = vadd.f32 %v639, %v720
      %v737 = vadd.f32 %v640, %v721
      %v738 = vadd.f32 %v641, %v722
      %v739 = vadd.f32 %v642, %v723
      %v740 = vadd.f32 %v643, %v724
      %741 = vrot.lane.b32.xlu0 %v424, 66
      %v742 = vpop.permute.xlu0 %741
      %743 = vrot.lane.b32.xlu0 %v428, 66
      %v744 = vpop.permute.xlu0 %743
      %745 = vrot.lane.b32.xlu0 %v432, 66
      %v746 = vpop.permute.xlu0 %745
      %747 = vrot.lane.b32.xlu0 %v436, 66
      %v748 = vpop.permute.xlu0 %747
      %749 = vrot.lane.b32.xlu0 %v425, 66
      %v750 = vpop.permute.xlu0 %749
      %751 = vrot.lane.b32.xlu0 %v429, 66
      %v752 = vpop.permute.xlu0 %751
      %753 = vrot.lane.b32.xlu0 %v433, 66
      %v754 = vpop.permute.xlu0 %753
      %755 = vrot.lane.b32.xlu0 %v437, 66
      %v756 = vpop.permute.xlu0 %755
      %757 = vrot.lane.b32.xlu0 %v426, 66
      %v758 = vpop.permute.xlu0 %757
      %759 = vrot.lane.b32.xlu0 %v430, 66
      %v760 = vpop.permute.xlu0 %759
      %761 = vrot.lane.b32.xlu0 %v434, 66
      %v762 = vpop.permute.xlu0 %761
      %763 = vrot.lane.b32.xlu0 %v438, 66
      %v764 = vpop.permute.xlu0 %763
      %765 = vrot.lane.b32.xlu0 %v427, 66
      %v766 = vpop.permute.xlu0 %765
      %767 = vrot.lane.b32.xlu0 %v431, 66
      %v768 = vpop.permute.xlu0 %767
      %769 = vrot.lane.b32.xlu0 %v435, 66
      %v770 = vpop.permute.xlu0 %769
      %771 = vrot.lane.b32.xlu0 %v439, 66
      %v772 = vpop.permute.xlu0 %771
      %vm773 = vcmp.lt.s32.totalorder %v477, 66
      %v774 = vsel %vm773, %v758, %v766
      %v775 = vsel %vm773, %v760, %v768
      %v776 = vsel %vm773, %v762, %v770
      %v777 = vsel %vm773, %v764, %v772
      %v778 = vsel %vm773, %v750, %v758
      %v779 = vsel %vm773, %v752, %v760
      %v780 = vsel %vm773, %v754, %v762
      %v781 = vsel %vm773, %v756, %v764
      %v782 = vsel %vm773, %v742, %v750
      %v783 = vsel %vm773, %v744, %v752
      %v784 = vsel %vm773, %v746, %v754
      %v785 = vsel %vm773, %v748, %v756
      %v786 = vsel %vm773, %v766, %v742
      %v787 = vsel %vm773, %v768, %v744
      %v788 = vsel %vm773, %v770, %v746
      %v789 = vsel %vm773, %v772, %v748
      %790 = vset.pattern.permute.xlu0 3
      %791 = vperm.xlu0 %790, %v440
      %v792 = vpop.permute.xlu0 %791
      %794 = vset.pattern.permute.xlu0 3
      %795 = vperm.xlu0 %794, %v441
      %v796 = vpop.permute.xlu0 %795
      %798 = vset.pattern.permute.xlu0 3
      %799 = vperm.xlu0 %798, %v442
      %v800 = vpop.permute.xlu0 %799
      %802 = vset.pattern.permute.xlu0 3
      %803 = vperm.xlu0 %802, %v443
      %v804 = vpop.permute.xlu0 %803
      %v806 = vmul.f32 %v786, %v792
      %v807 = vmul.f32 %v782, %v792
      %v808 = vmul.f32 %v778, %v792
      %v809 = vmul.f32 %v774, %v792
      %v810 = vmul.f32 %v787, %v796
      %v811 = vmul.f32 %v783, %v796
      %v812 = vmul.f32 %v779, %v796
      %v813 = vmul.f32 %v775, %v796
      %v814 = vmul.f32 %v788, %v800
      %v815 = vmul.f32 %v784, %v800
      %v816 = vmul.f32 %v780, %v800
      %v817 = vmul.f32 %v776, %v800
      %v818 = vmul.f32 %v789, %v804
      %v819 = vmul.f32 %v785, %v804
      %v820 = vmul.f32 %v781, %v804
      %v821 = vmul.f32 %v777, %v804
      %v822 = vadd.f32 %v725, %v806
      %v823 = vadd.f32 %v726, %v807
      %v824 = vadd.f32 %v727, %v808
      %v825 = vadd.f32 %v728, %v809
      %v826 = vadd.f32 %v729, %v810
      %v827 = vadd.f32 %v730, %v811
      %v828 = vadd.f32 %v731, %v812
      %v829 = vadd.f32 %v732, %v813
      %v830 = vadd.f32 %v733, %v814
      %v831 = vadd.f32 %v734, %v815
      %v832 = vadd.f32 %v735, %v816
      %v833 = vadd.f32 %v736, %v817
      %v834 = vadd.f32 %v737, %v818
      %v835 = vadd.f32 %v738, %v819
      %v836 = vadd.f32 %v739, %v820
      %v837 = vadd.f32 %v740, %v821
      %838 = vrot.lane.b32.xlu0 %v424, 65
      %v839 = vpop.permute.xlu0 %838
      %840 = vrot.lane.b32.xlu0 %v428, 65
      %v841 = vpop.permute.xlu0 %840
      %842 = vrot.lane.b32.xlu0 %v432, 65
      %v843 = vpop.permute.xlu0 %842
      %844 = vrot.lane.b32.xlu0 %v436, 65
      %v845 = vpop.permute.xlu0 %844
      %846 = vrot.lane.b32.xlu0 %v425, 65
      %v847 = vpop.permute.xlu0 %846
      %848 = vrot.lane.b32.xlu0 %v429, 65
      %v849 = vpop.permute.xlu0 %848
      %850 = vrot.lane.b32.xlu0 %v433, 65
      %v851 = vpop.permute.xlu0 %850
      %852 = vrot.lane.b32.xlu0 %v437, 65
      %v853 = vpop.permute.xlu0 %852
      %854 = vrot.lane.b32.xlu0 %v426, 65
      %v855 = vpop.permute.xlu0 %854
      %856 = vrot.lane.b32.xlu0 %v430, 65
      %v857 = vpop.permute.xlu0 %856
      %858 = vrot.lane.b32.xlu0 %v434, 65
      %v859 = vpop.permute.xlu0 %858
      %860 = vrot.lane.b32.xlu0 %v438, 65
      %v861 = vpop.permute.xlu0 %860
      %862 = vrot.lane.b32.xlu0 %v427, 65
      %v863 = vpop.permute.xlu0 %862
      %864 = vrot.lane.b32.xlu0 %v431, 65
      %v865 = vpop.permute.xlu0 %864
      %866 = vrot.lane.b32.xlu0 %v435, 65
      %v867 = vpop.permute.xlu0 %866
      %868 = vrot.lane.b32.xlu0 %v439, 65
      %v869 = vpop.permute.xlu0 %868
      %vm870 = vcmp.lt.s32.totalorder %v477, 65
      %v871 = vsel %vm870, %v855, %v863
      %v872 = vsel %vm870, %v857, %v865
      %v873 = vsel %vm870, %v859, %v867
      %v874 = vsel %vm870, %v861, %v869
      %v875 = vsel %vm870, %v847, %v855
      %v876 = vsel %vm870, %v849, %v857
      %v877 = vsel %vm870, %v851, %v859
      %v878 = vsel %vm870, %v853, %v861
      %v879 = vsel %vm870, %v839, %v847
      %v880 = vsel %vm870, %v841, %v849
      %v881 = vsel %vm870, %v843, %v851
      %v882 = vsel %vm870, %v845, %v853
      %v883 = vsel %vm870, %v863, %v839
      %v884 = vsel %vm870, %v865, %v841
      %v885 = vsel %vm870, %v867, %v843
      %v886 = vsel %vm870, %v869, %v845
      %887 = vset.pattern.permute.xlu0 4
      %888 = vperm.xlu0 %887, %v440
      %v889 = vpop.permute.xlu0 %888
      %891 = vset.pattern.permute.xlu0 4
      %892 = vperm.xlu0 %891, %v441
      %v893 = vpop.permute.xlu0 %892
      %895 = vset.pattern.permute.xlu0 4
      %896 = vperm.xlu0 %895, %v442
      %v897 = vpop.permute.xlu0 %896
      %899 = vset.pattern.permute.xlu0 4
      %900 = vperm.xlu0 %899, %v443
      %v901 = vpop.permute.xlu0 %900
      %v903 = vmul.f32 %v883, %v889
      %v904 = vmul.f32 %v879, %v889
      %v905 = vmul.f32 %v875, %v889
      %v906 = vmul.f32 %v871, %v889
      %v907 = vmul.f32 %v884, %v893
      %v908 = vmul.f32 %v880, %v893
      %v909 = vmul.f32 %v876, %v893
      %v910 = vmul.f32 %v872, %v893
      %v911 = vmul.f32 %v885, %v897
      %v912 = vmul.f32 %v881, %v897
      %v913 = vmul.f32 %v877, %v897
      %v914 = vmul.f32 %v873, %v897
      %v915 = vmul.f32 %v886, %v901
      %v916 = vmul.f32 %v882, %v901
      %v917 = vmul.f32 %v878, %v901
      %v918 = vmul.f32 %v874, %v901
      %v919 = vadd.f32 %v822, %v903
      %v920 = vadd.f32 %v823, %v904
      %v921 = vadd.f32 %v824, %v905
      %v922 = vadd.f32 %v825, %v906
      %v923 = vadd.f32 %v826, %v907
      %v924 = vadd.f32 %v827, %v908
      %v925 = vadd.f32 %v828, %v909
      %v926 = vadd.f32 %v829, %v910
      %v927 = vadd.f32 %v830, %v911
      %v928 = vadd.f32 %v831, %v912
      %v929 = vadd.f32 %v832, %v913
      %v930 = vadd.f32 %v833, %v914
      %v931 = vadd.f32 %v834, %v915
      %v932 = vadd.f32 %v835, %v916
      %v933 = vadd.f32 %v836, %v917
      %v934 = vadd.f32 %v837, %v918
      %935 = vrot.lane.b32.xlu0 %v424, 64
      %v936 = vpop.permute.xlu0 %935
      %937 = vrot.lane.b32.xlu0 %v428, 64
      %v938 = vpop.permute.xlu0 %937
      %939 = vrot.lane.b32.xlu0 %v432, 64
      %v940 = vpop.permute.xlu0 %939
      %941 = vrot.lane.b32.xlu0 %v436, 64
      %v942 = vpop.permute.xlu0 %941
      %943 = vrot.lane.b32.xlu0 %v425, 64
      %v944 = vpop.permute.xlu0 %943
      %945 = vrot.lane.b32.xlu0 %v429, 64
      %v946 = vpop.permute.xlu0 %945
      %947 = vrot.lane.b32.xlu0 %v433, 64
      %v948 = vpop.permute.xlu0 %947
      %949 = vrot.lane.b32.xlu0 %v437, 64
      %v950 = vpop.permute.xlu0 %949
      %951 = vrot.lane.b32.xlu0 %v426, 64
      %v952 = vpop.permute.xlu0 %951
      %953 = vrot.lane.b32.xlu0 %v430, 64
      %v954 = vpop.permute.xlu0 %953
      %955 = vrot.lane.b32.xlu0 %v434, 64
      %v956 = vpop.permute.xlu0 %955
      %957 = vrot.lane.b32.xlu0 %v438, 64
      %v958 = vpop.permute.xlu0 %957
      %959 = vrot.lane.b32.xlu0 %v427, 64
      %v960 = vpop.permute.xlu0 %959
      %961 = vrot.lane.b32.xlu0 %v431, 64
      %v962 = vpop.permute.xlu0 %961
      %963 = vrot.lane.b32.xlu0 %v435, 64
      %v964 = vpop.permute.xlu0 %963
      %965 = vrot.lane.b32.xlu0 %v439, 64
      %v966 = vpop.permute.xlu0 %965
      %vm967 = vcmp.lt.s32.totalorder %v477, 64
      %v968 = vsel %vm967, %v952, %v960
      %v969 = vsel %vm967, %v954, %v962
      %v970 = vsel %vm967, %v956, %v964
      %v971 = vsel %vm967, %v958, %v966
      %v972 = vsel %vm967, %v944, %v952
      %v973 = vsel %vm967, %v946, %v954
      %v974 = vsel %vm967, %v948, %v956
      %v975 = vsel %vm967, %v950, %v958
      %v976 = vsel %vm967, %v936, %v944
      %v977 = vsel %vm967, %v938, %v946
      %v978 = vsel %vm967, %v940, %v948
      %v979 = vsel %vm967, %v942, %v950
      %v980 = vsel %vm967, %v960, %v936
      %v981 = vsel %vm967, %v962, %v938
      %v982 = vsel %vm967, %v964, %v940
      %v983 = vsel %vm967, %v966, %v942
      %984 = vset.pattern.permute.xlu0 5
      %985 = vperm.xlu0 %984, %v440
      %v986 = vpop.permute.xlu0 %985
      %988 = vset.pattern.permute.xlu0 5
      %989 = vperm.xlu0 %988, %v441
      %v990 = vpop.permute.xlu0 %989
      %992 = vset.pattern.permute.xlu0 5
      %993 = vperm.xlu0 %992, %v442
      %v994 = vpop.permute.xlu0 %993
      %996 = vset.pattern.permute.xlu0 5
      %997 = vperm.xlu0 %996, %v443
      %v998 = vpop.permute.xlu0 %997
      %v1000 = vmul.f32 %v980, %v986
      %v1001 = vmul.f32 %v976, %v986
      %v1002 = vmul.f32 %v972, %v986
      %v1003 = vmul.f32 %v968, %v986
      %v1004 = vmul.f32 %v981, %v990
      %v1005 = vmul.f32 %v977, %v990
      %v1006 = vmul.f32 %v973, %v990
      %v1007 = vmul.f32 %v969, %v990
      %v1008 = vmul.f32 %v982, %v994
      %v1009 = vmul.f32 %v978, %v994
      %v1010 = vmul.f32 %v974, %v994
      %v1011 = vmul.f32 %v970, %v994
      %v1012 = vmul.f32 %v983, %v998
      %v1013 = vmul.f32 %v979, %v998
      %v1014 = vmul.f32 %v975, %v998
      %v1015 = vmul.f32 %v971, %v998
      %v1016 = vadd.f32 %v919, %v1000
      %v1017 = vadd.f32 %v920, %v1001
      %v1018 = vadd.f32 %v921, %v1002
      %v1019 = vadd.f32 %v922, %v1003
      %v1020 = vadd.f32 %v923, %v1004
      %v1021 = vadd.f32 %v924, %v1005
      %v1022 = vadd.f32 %v925, %v1006
      %v1023 = vadd.f32 %v926, %v1007
      %v1024 = vadd.f32 %v927, %v1008
      %v1025 = vadd.f32 %v928, %v1009
      %v1026 = vadd.f32 %v929, %v1010
      %v1027 = vadd.f32 %v930, %v1011
      %v1028 = vadd.f32 %v931, %v1012
      %v1029 = vadd.f32 %v932, %v1013
      %v1030 = vadd.f32 %v933, %v1014
      %v1031 = vadd.f32 %v934, %v1015
      %1032 = vrot.lane.b32.xlu0 %v424, 63
      %v1033 = vpop.permute.xlu0 %1032
      %1034 = vrot.lane.b32.xlu0 %v428, 63
      %v1035 = vpop.permute.xlu0 %1034
      %1036 = vrot.lane.b32.xlu0 %v432, 63
      %v1037 = vpop.permute.xlu0 %1036
      %1038 = vrot.lane.b32.xlu0 %v436, 63
      %v1039 = vpop.permute.xlu0 %1038
      %1040 = vrot.lane.b32.xlu0 %v425, 63
      %v1041 = vpop.permute.xlu0 %1040
      %1042 = vrot.lane.b32.xlu0 %v429, 63
      %v1043 = vpop.permute.xlu0 %1042
      %1044 = vrot.lane.b32.xlu0 %v433, 63
      %v1045 = vpop.permute.xlu0 %1044
      %1046 = vrot.lane.b32.xlu0 %v437, 63
      %v1047 = vpop.permute.xlu0 %1046
      %1048 = vrot.lane.b32.xlu0 %v426, 63
      %v1049 = vpop.permute.xlu0 %1048
      %1050 = vrot.lane.b32.xlu0 %v430, 63
      %v1051 = vpop.permute.xlu0 %1050
      %1052 = vrot.lane.b32.xlu0 %v434, 63
      %v1053 = vpop.permute.xlu0 %1052
      %1054 = vrot.lane.b32.xlu0 %v438, 63
      %v1055 = vpop.permute.xlu0 %1054
      %1056 = vrot.lane.b32.xlu0 %v427, 63
      %v1057 = vpop.permute.xlu0 %1056
      %1058 = vrot.lane.b32.xlu0 %v431, 63
      %v1059 = vpop.permute.xlu0 %1058
      %1060 = vrot.lane.b32.xlu0 %v435, 63
      %v1061 = vpop.permute.xlu0 %1060
      %1062 = vrot.lane.b32.xlu0 %v439, 63
      %v1063 = vpop.permute.xlu0 %1062
      %vm1064 = vcmp.lt.s32.totalorder %v477, 63
      %v1065 = vsel %vm1064, %v1049, %v1057
      %v1066 = vsel %vm1064, %v1051, %v1059
      %v1067 = vsel %vm1064, %v1053, %v1061
      %v1068 = vsel %vm1064, %v1055, %v1063
      %v1069 = vsel %vm1064, %v1041, %v1049
      %v1070 = vsel %vm1064, %v1043, %v1051
      %v1071 = vsel %vm1064, %v1045, %v1053
      %v1072 = vsel %vm1064, %v1047, %v1055
      %v1073 = vsel %vm1064, %v1033, %v1041
      %v1074 = vsel %vm1064, %v1035, %v1043
      %v1075 = vsel %vm1064, %v1037, %v1045
      %v1076 = vsel %vm1064, %v1039, %v1047
      %v1077 = vsel %vm1064, %v1057, %v1033
      %v1078 = vsel %vm1064, %v1059, %v1035
      %v1079 = vsel %vm1064, %v1061, %v1037
      %v1080 = vsel %vm1064, %v1063, %v1039
      %1081 = vset.pattern.permute.xlu0 6
      %1082 = vperm.xlu0 %1081, %v440
      %v1083 = vpop.permute.xlu0 %1082
      %1085 = vset.pattern.permute.xlu0 6
      %1086 = vperm.xlu0 %1085, %v441
      %v1087 = vpop.permute.xlu0 %1086
      %1089 = vset.pattern.permute.xlu0 6
      %1090 = vperm.xlu0 %1089, %v442
      %v1091 = vpop.permute.xlu0 %1090
      %1093 = vset.pattern.permute.xlu0 6
      %1094 = vperm.xlu0 %1093, %v443
      %v1095 = vpop.permute.xlu0 %1094
      %v1097 = vmul.f32 %v1077, %v1083
      %v1098 = vmul.f32 %v1073, %v1083
      %v1099 = vmul.f32 %v1069, %v1083
      %v1100 = vmul.f32 %v1065, %v1083
      %v1101 = vmul.f32 %v1078, %v1087
      %v1102 = vmul.f32 %v1074, %v1087
      %v1103 = vmul.f32 %v1070, %v1087
      %v1104 = vmul.f32 %v1066, %v1087
      %v1105 = vmul.f32 %v1079, %v1091
      %v1106 = vmul.f32 %v1075, %v1091
      %v1107 = vmul.f32 %v1071, %v1091
      %v1108 = vmul.f32 %v1067, %v1091
      %v1109 = vmul.f32 %v1080, %v1095
      %v1110 = vmul.f32 %v1076, %v1095
      %v1111 = vmul.f32 %v1072, %v1095
      %v1112 = vmul.f32 %v1068, %v1095
      %v1113 = vadd.f32 %v1016, %v1097
      %v1114 = vadd.f32 %v1017, %v1098
      %v1115 = vadd.f32 %v1018, %v1099
      %v1116 = vadd.f32 %v1019, %v1100
      %v1117 = vadd.f32 %v1020, %v1101
      %v1118 = vadd.f32 %v1021, %v1102
      %v1119 = vadd.f32 %v1022, %v1103
      %v1120 = vadd.f32 %v1023, %v1104
      %v1121 = vadd.f32 %v1024, %v1105
      %v1122 = vadd.f32 %v1025, %v1106
      %v1123 = vadd.f32 %v1026, %v1107
      %v1124 = vadd.f32 %v1027, %v1108
      %v1125 = vadd.f32 %v1028, %v1109
      %v1126 = vadd.f32 %v1029, %v1110
      %v1127 = vadd.f32 %v1030, %v1111
      %v1128 = vadd.f32 %v1031, %v1112
      %1129 = vrot.lane.b32.xlu0 %v424, 47
      %v1130 = vpop.permute.xlu0 %1129
      %1131 = vrot.lane.b32.xlu0 %v428, 47
      %v1132 = vpop.permute.xlu0 %1131
      %1133 = vrot.lane.b32.xlu0 %v432, 47
      %v1134 = vpop.permute.xlu0 %1133
      %1135 = vrot.lane.b32.xlu0 %v436, 47
      %v1136 = vpop.permute.xlu0 %1135
      %1137 = vrot.lane.b32.xlu0 %v425, 47
      %v1138 = vpop.permute.xlu0 %1137
      %1139 = vrot.lane.b32.xlu0 %v429, 47
      %v1140 = vpop.permute.xlu0 %1139
      %1141 = vrot.lane.b32.xlu0 %v433, 47
      %v1142 = vpop.permute.xlu0 %1141
      %1143 = vrot.lane.b32.xlu0 %v437, 47
      %v1144 = vpop.permute.xlu0 %1143
      %1145 = vrot.lane.b32.xlu0 %v426, 47
      %v1146 = vpop.permute.xlu0 %1145
      %1147 = vrot.lane.b32.xlu0 %v430, 47
      %v1148 = vpop.permute.xlu0 %1147
      %1149 = vrot.lane.b32.xlu0 %v434, 47
      %v1150 = vpop.permute.xlu0 %1149
      %1151 = vrot.lane.b32.xlu0 %v438, 47
      %v1152 = vpop.permute.xlu0 %1151
      %1153 = vrot.lane.b32.xlu0 %v427, 47
      %v1154 = vpop.permute.xlu0 %1153
      %1155 = vrot.lane.b32.xlu0 %v431, 47
      %v1156 = vpop.permute.xlu0 %1155
      %1157 = vrot.lane.b32.xlu0 %v435, 47
      %v1158 = vpop.permute.xlu0 %1157
      %1159 = vrot.lane.b32.xlu0 %v439, 47
      %v1160 = vpop.permute.xlu0 %1159
      %vm1161 = vcmp.lt.s32.totalorder %v477, 47
      %v1162 = vsel %vm1161, %v1146, %v1154
      %v1163 = vsel %vm1161, %v1148, %v1156
      %v1164 = vsel %vm1161, %v1150, %v1158
      %v1165 = vsel %vm1161, %v1152, %v1160
      %v1166 = vsel %vm1161, %v1138, %v1146
      %v1167 = vsel %vm1161, %v1140, %v1148
      %v1168 = vsel %vm1161, %v1142, %v1150
      %v1169 = vsel %vm1161, %v1144, %v1152
      %v1170 = vsel %vm1161, %v1130, %v1138
      %v1171 = vsel %vm1161, %v1132, %v1140
      %v1172 = vsel %vm1161, %v1134, %v1142
      %v1173 = vsel %vm1161, %v1136, %v1144
      %v1174 = vsel %vm1161, %v1154, %v1130
      %v1175 = vsel %vm1161, %v1156, %v1132
      %v1176 = vsel %vm1161, %v1158, %v1134
      %v1177 = vsel %vm1161, %v1160, %v1136
      %1178 = vset.pattern.permute.xlu0 7
      %1179 = vperm.xlu0 %1178, %v440
      %v1180 = vpop.permute.xlu0 %1179
      %1182 = vset.pattern.permute.xlu0 7
      %1183 = vperm.xlu0 %1182, %v441
      %v1184 = vpop.permute.xlu0 %1183
      %1186 = vset.pattern.permute.xlu0 7
      %1187 = vperm.xlu0 %1186, %v442
      %v1188 = vpop.permute.xlu0 %1187
      %1190 = vset.pattern.permute.xlu0 7
      %1191 = vperm.xlu0 %1190, %v443
      %v1192 = vpop.permute.xlu0 %1191
      %v1194 = vmul.f32 %v1174, %v1180
      %v1195 = vmul.f32 %v1170, %v1180
      %v1196 = vmul.f32 %v1166, %v1180
      %v1197 = vmul.f32 %v1162, %v1180
      %v1198 = vmul.f32 %v1175, %v1184
      %v1199 = vmul.f32 %v1171, %v1184
      %v1200 = vmul.f32 %v1167, %v1184
      %v1201 = vmul.f32 %v1163, %v1184
      %v1202 = vmul.f32 %v1176, %v1188
      %v1203 = vmul.f32 %v1172, %v1188
      %v1204 = vmul.f32 %v1168, %v1188
      %v1205 = vmul.f32 %v1164, %v1188
      %v1206 = vmul.f32 %v1177, %v1192
      %v1207 = vmul.f32 %v1173, %v1192
      %v1208 = vmul.f32 %v1169, %v1192
      %v1209 = vmul.f32 %v1165, %v1192
      %v1210 = vadd.f32 %v1113, %v1194
      %v1211 = vadd.f32 %v1114, %v1195
      %v1212 = vadd.f32 %v1115, %v1196
      %v1213 = vadd.f32 %v1116, %v1197
      %v1214 = vadd.f32 %v1117, %v1198
      %v1215 = vadd.f32 %v1118, %v1199
      %v1216 = vadd.f32 %v1119, %v1200
      %v1217 = vadd.f32 %v1120, %v1201
      %v1218 = vadd.f32 %v1121, %v1202
      %v1219 = vadd.f32 %v1122, %v1203
      %v1220 = vadd.f32 %v1123, %v1204
      %v1221 = vadd.f32 %v1124, %v1205
      %v1222 = vadd.f32 %v1125, %v1206
      %v1223 = vadd.f32 %v1126, %v1207
      %v1224 = vadd.f32 %v1127, %v1208
      %v1225 = vadd.f32 %v1128, %v1209
      %1226 = vrot.lane.b32.xlu0 %v424, 46
      %v1227 = vpop.permute.xlu0 %1226
      %1228 = vrot.lane.b32.xlu0 %v428, 46
      %v1229 = vpop.permute.xlu0 %1228
      %1230 = vrot.lane.b32.xlu0 %v432, 46
      %v1231 = vpop.permute.xlu0 %1230
      %1232 = vrot.lane.b32.xlu0 %v436, 46
      %v1233 = vpop.permute.xlu0 %1232
      %1234 = vrot.lane.b32.xlu0 %v425, 46
      %v1235 = vpop.permute.xlu0 %1234
      %1236 = vrot.lane.b32.xlu0 %v429, 46
      %v1237 = vpop.permute.xlu0 %1236
      %1238 = vrot.lane.b32.xlu0 %v433, 46
      %v1239 = vpop.permute.xlu0 %1238
      %1240 = vrot.lane.b32.xlu0 %v437, 46
      %v1241 = vpop.permute.xlu0 %1240
      %1242 = vrot.lane.b32.xlu0 %v426, 46
      %v1243 = vpop.permute.xlu0 %1242
      %1244 = vrot.lane.b32.xlu0 %v430, 46
      %v1245 = vpop.permute.xlu0 %1244
      %1246 = vrot.lane.b32.xlu0 %v434, 46
      %v1247 = vpop.permute.xlu0 %1246
      %1248 = vrot.lane.b32.xlu0 %v438, 46
      %v1249 = vpop.permute.xlu0 %1248
      %1250 = vrot.lane.b32.xlu0 %v427, 46
      %v1251 = vpop.permute.xlu0 %1250
      %1252 = vrot.lane.b32.xlu0 %v431, 46
      %v1253 = vpop.permute.xlu0 %1252
      %1254 = vrot.lane.b32.xlu0 %v435, 46
      %v1255 = vpop.permute.xlu0 %1254
      %1256 = vrot.lane.b32.xlu0 %v439, 46
      %v1257 = vpop.permute.xlu0 %1256
      %vm1258 = vcmp.lt.s32.totalorder %v477, 46
      %v1259 = vsel %vm1258, %v1243, %v1251
      %v1260 = vsel %vm1258, %v1245, %v1253
      %v1261 = vsel %vm1258, %v1247, %v1255
      %v1262 = vsel %vm1258, %v1249, %v1257
      %v1263 = vsel %vm1258, %v1235, %v1243
      %v1264 = vsel %vm1258, %v1237, %v1245
      %v1265 = vsel %vm1258, %v1239, %v1247
      %v1266 = vsel %vm1258, %v1241, %v1249
      %v1267 = vsel %vm1258, %v1227, %v1235
      %v1268 = vsel %vm1258, %v1229, %v1237
      %v1269 = vsel %vm1258, %v1231, %v1239
      %v1270 = vsel %vm1258, %v1233, %v1241
      %v1271 = vsel %vm1258, %v1251, %v1227
      %v1272 = vsel %vm1258, %v1253, %v1229
      %v1273 = vsel %vm1258, %v1255, %v1231
      %v1274 = vsel %vm1258, %v1257, %v1233
      %1275 = vset.pattern.permute.xlu0 8
      %1276 = vperm.xlu0 %1275, %v440
      %v1277 = vpop.permute.xlu0 %1276
      %1279 = vset.pattern.permute.xlu0 8
      %1280 = vperm.xlu0 %1279, %v441
      %v1281 = vpop.permute.xlu0 %1280
      %1283 = vset.pattern.permute.xlu0 8
      %1284 = vperm.xlu0 %1283, %v442
      %v1285 = vpop.permute.xlu0 %1284
      %1287 = vset.pattern.permute.xlu0 8
      %1288 = vperm.xlu0 %1287, %v443
      %v1289 = vpop.permute.xlu0 %1288
      %v1291 = vmul.f32 %v1271, %v1277
      %v1292 = vmul.f32 %v1267, %v1277
      %v1293 = vmul.f32 %v1263, %v1277
      %v1294 = vmul.f32 %v1259, %v1277
      %v1295 = vmul.f32 %v1272, %v1281
      %v1296 = vmul.f32 %v1268, %v1281
      %v1297 = vmul.f32 %v1264, %v1281
      %v1298 = vmul.f32 %v1260, %v1281
      %v1299 = vmul.f32 %v1273, %v1285
      %v1300 = vmul.f32 %v1269, %v1285
      %v1301 = vmul.f32 %v1265, %v1285
      %v1302 = vmul.f32 %v1261, %v1285
      %v1303 = vmul.f32 %v1274, %v1289
      %v1304 = vmul.f32 %v1270, %v1289
      %v1305 = vmul.f32 %v1266, %v1289
      %v1306 = vmul.f32 %v1262, %v1289
      %v1307 = vadd.f32 %v1210, %v1291
      %v1308 = vadd.f32 %v1211, %v1292
      %v1309 = vadd.f32 %v1212, %v1293
      %v1310 = vadd.f32 %v1213, %v1294
      %v1311 = vadd.f32 %v1214, %v1295
      %v1312 = vadd.f32 %v1215, %v1296
      %v1313 = vadd.f32 %v1216, %v1297
      %v1314 = vadd.f32 %v1217, %v1298
      %v1315 = vadd.f32 %v1218, %v1299
      %v1316 = vadd.f32 %v1219, %v1300
      %v1317 = vadd.f32 %v1220, %v1301
      %v1318 = vadd.f32 %v1221, %v1302
      %v1319 = vadd.f32 %v1222, %v1303
      %v1320 = vadd.f32 %v1223, %v1304
      %v1321 = vadd.f32 %v1224, %v1305
      %v1322 = vadd.f32 %v1225, %v1306
      %1323 = vrot.lane.b32.xlu0 %v424, 45
      %v1324 = vpop.permute.xlu0 %1323
      %1325 = vrot.lane.b32.xlu0 %v428, 45
      %v1326 = vpop.permute.xlu0 %1325
      %1327 = vrot.lane.b32.xlu0 %v432, 45
      %v1328 = vpop.permute.xlu0 %1327
      %1329 = vrot.lane.b32.xlu0 %v436, 45
      %v1330 = vpop.permute.xlu0 %1329
      %1331 = vrot.lane.b32.xlu0 %v425, 45
      %v1332 = vpop.permute.xlu0 %1331
      %1333 = vrot.lane.b32.xlu0 %v429, 45
      %v1334 = vpop.permute.xlu0 %1333
      %1335 = vrot.lane.b32.xlu0 %v433, 45
      %v1336 = vpop.permute.xlu0 %1335
      %1337 = vrot.lane.b32.xlu0 %v437, 45
      %v1338 = vpop.permute.xlu0 %1337
      %1339 = vrot.lane.b32.xlu0 %v426, 45
      %v1340 = vpop.permute.xlu0 %1339
      %1341 = vrot.lane.b32.xlu0 %v430, 45
      %v1342 = vpop.permute.xlu0 %1341
      %1343 = vrot.lane.b32.xlu0 %v434, 45
      %v1344 = vpop.permute.xlu0 %1343
      %1345 = vrot.lane.b32.xlu0 %v438, 45
      %v1346 = vpop.permute.xlu0 %1345
      %1347 = vrot.lane.b32.xlu0 %v427, 45
      %v1348 = vpop.permute.xlu0 %1347
      %1349 = vrot.lane.b32.xlu0 %v431, 45
      %v1350 = vpop.permute.xlu0 %1349
      %1351 = vrot.lane.b32.xlu0 %v435, 45
      %v1352 = vpop.permute.xlu0 %1351
      %1353 = vrot.lane.b32.xlu0 %v439, 45
      %v1354 = vpop.permute.xlu0 %1353
      %vm1355 = vcmp.lt.s32.totalorder %v477, 45
      %v1356 = vsel %vm1355, %v1340, %v1348
      %v1357 = vsel %vm1355, %v1342, %v1350
      %v1358 = vsel %vm1355, %v1344, %v1352
      %v1359 = vsel %vm1355, %v1346, %v1354
      %v1360 = vsel %vm1355, %v1332, %v1340
      %v1361 = vsel %vm1355, %v1334, %v1342
      %v1362 = vsel %vm1355, %v1336, %v1344
      %v1363 = vsel %vm1355, %v1338, %v1346
      %v1364 = vsel %vm1355, %v1324, %v1332
      %v1365 = vsel %vm1355, %v1326, %v1334
      %v1366 = vsel %vm1355, %v1328, %v1336
      %v1367 = vsel %vm1355, %v1330, %v1338
      %v1368 = vsel %vm1355, %v1348, %v1324
      %v1369 = vsel %vm1355, %v1350, %v1326
      %v1370 = vsel %vm1355, %v1352, %v1328
      %v1371 = vsel %vm1355, %v1354, %v1330
      %1372 = vset.pattern.permute.xlu0 9
      %1373 = vperm.xlu0 %1372, %v440
      %v1374 = vpop.permute.xlu0 %1373
      %1376 = vset.pattern.permute.xlu0 9
      %1377 = vperm.xlu0 %1376, %v441
      %v1378 = vpop.permute.xlu0 %1377
      %1380 = vset.pattern.permute.xlu0 9
      %1381 = vperm.xlu0 %1380, %v442
      %v1382 = vpop.permute.xlu0 %1381
      %1384 = vset.pattern.permute.xlu0 9
      %1385 = vperm.xlu0 %1384, %v443
      %v1386 = vpop.permute.xlu0 %1385
      %v1388 = vmul.f32 %v1368, %v1374
      %v1389 = vmul.f32 %v1364, %v1374
      %v1390 = vmul.f32 %v1360, %v1374
      %v1391 = vmul.f32 %v1356, %v1374
      %v1392 = vmul.f32 %v1369, %v1378
      %v1393 = vmul.f32 %v1365, %v1378
      %v1394 = vmul.f32 %v1361, %v1378
      %v1395 = vmul.f32 %v1357, %v1378
      %v1396 = vmul.f32 %v1370, %v1382
      %v1397 = vmul.f32 %v1366, %v1382
      %v1398 = vmul.f32 %v1362, %v1382
      %v1399 = vmul.f32 %v1358, %v1382
      %v1400 = vmul.f32 %v1371, %v1386
      %v1401 = vmul.f32 %v1367, %v1386
      %v1402 = vmul.f32 %v1363, %v1386
      %v1403 = vmul.f32 %v1359, %v1386
      %v1404 = vadd.f32 %v1307, %v1388
      %v1405 = vadd.f32 %v1308, %v1389
      %v1406 = vadd.f32 %v1309, %v1390
      %v1407 = vadd.f32 %v1310, %v1391
      %v1408 = vadd.f32 %v1311, %v1392
      %v1409 = vadd.f32 %v1312, %v1393
      %v1410 = vadd.f32 %v1313, %v1394
      %v1411 = vadd.f32 %v1314, %v1395
      %v1412 = vadd.f32 %v1315, %v1396
      %v1413 = vadd.f32 %v1316, %v1397
      %v1414 = vadd.f32 %v1317, %v1398
      %v1415 = vadd.f32 %v1318, %v1399
      %v1416 = vadd.f32 %v1319, %v1400
      %v1417 = vadd.f32 %v1320, %v1401
      %v1418 = vadd.f32 %v1321, %v1402
      %v1419 = vadd.f32 %v1322, %v1403
      %1420 = vrot.lane.b32.xlu0 %v424, 44
      %v1421 = vpop.permute.xlu0 %1420
      %1422 = vrot.lane.b32.xlu0 %v428, 44
      %v1423 = vpop.permute.xlu0 %1422
      %1424 = vrot.lane.b32.xlu0 %v432, 44
      %v1425 = vpop.permute.xlu0 %1424
      %1426 = vrot.lane.b32.xlu0 %v436, 44
      %v1427 = vpop.permute.xlu0 %1426
      %1428 = vrot.lane.b32.xlu0 %v425, 44
      %v1429 = vpop.permute.xlu0 %1428
      %1430 = vrot.lane.b32.xlu0 %v429, 44
      %v1431 = vpop.permute.xlu0 %1430
      %1432 = vrot.lane.b32.xlu0 %v433, 44
      %v1433 = vpop.permute.xlu0 %1432
      %1434 = vrot.lane.b32.xlu0 %v437, 44
      %v1435 = vpop.permute.xlu0 %1434
      %1436 = vrot.lane.b32.xlu0 %v426, 44
      %v1437 = vpop.permute.xlu0 %1436
      %1438 = vrot.lane.b32.xlu0 %v430, 44
      %v1439 = vpop.permute.xlu0 %1438
      %1440 = vrot.lane.b32.xlu0 %v434, 44
      %v1441 = vpop.permute.xlu0 %1440
      %1442 = vrot.lane.b32.xlu0 %v438, 44
      %v1443 = vpop.permute.xlu0 %1442
      %1444 = vrot.lane.b32.xlu0 %v427, 44
      %v1445 = vpop.permute.xlu0 %1444
      %1446 = vrot.lane.b32.xlu0 %v431, 44
      %v1447 = vpop.permute.xlu0 %1446
      %1448 = vrot.lane.b32.xlu0 %v435, 44
      %v1449 = vpop.permute.xlu0 %1448
      %1450 = vrot.lane.b32.xlu0 %v439, 44
      %v1451 = vpop.permute.xlu0 %1450
      %vm1452 = vcmp.lt.s32.totalorder %v477, 44
      %v1453 = vsel %vm1452, %v1437, %v1445
      %v1454 = vsel %vm1452, %v1439, %v1447
      %v1455 = vsel %vm1452, %v1441, %v1449
      %v1456 = vsel %vm1452, %v1443, %v1451
      %v1457 = vsel %vm1452, %v1429, %v1437
      %v1458 = vsel %vm1452, %v1431, %v1439
      %v1459 = vsel %vm1452, %v1433, %v1441
      %v1460 = vsel %vm1452, %v1435, %v1443
      %v1461 = vsel %vm1452, %v1421, %v1429
      %v1462 = vsel %vm1452, %v1423, %v1431
      %v1463 = vsel %vm1452, %v1425, %v1433
      %v1464 = vsel %vm1452, %v1427, %v1435
      %v1465 = vsel %vm1452, %v1445, %v1421
      %v1466 = vsel %vm1452, %v1447, %v1423
      %v1467 = vsel %vm1452, %v1449, %v1425
      %v1468 = vsel %vm1452, %v1451, %v1427
      %1469 = vset.pattern.permute.xlu0 10
      %1470 = vperm.xlu0 %1469, %v440
      %v1471 = vpop.permute.xlu0 %1470
      %1473 = vset.pattern.permute.xlu0 10
      %1474 = vperm.xlu0 %1473, %v441
      %v1475 = vpop.permute.xlu0 %1474
      %1477 = vset.pattern.permute.xlu0 10
      %1478 = vperm.xlu0 %1477, %v442
      %v1479 = vpop.permute.xlu0 %1478
      %1481 = vset.pattern.permute.xlu0 10
      %1482 = vperm.xlu0 %1481, %v443
      %v1483 = vpop.permute.xlu0 %1482
      %v1485 = vmul.f32 %v1465, %v1471
      %v1486 = vmul.f32 %v1461, %v1471
      %v1487 = vmul.f32 %v1457, %v1471
      %v1488 = vmul.f32 %v1453, %v1471
      %v1489 = vmul.f32 %v1466, %v1475
      %v1490 = vmul.f32 %v1462, %v1475
      %v1491 = vmul.f32 %v1458, %v1475
      %v1492 = vmul.f32 %v1454, %v1475
      %v1493 = vmul.f32 %v1467, %v1479
      %v1494 = vmul.f32 %v1463, %v1479
      %v1495 = vmul.f32 %v1459, %v1479
      %v1496 = vmul.f32 %v1455, %v1479
      %v1497 = vmul.f32 %v1468, %v1483
      %v1498 = vmul.f32 %v1464, %v1483
      %v1499 = vmul.f32 %v1460, %v1483
      %v1500 = vmul.f32 %v1456, %v1483
      %v1501 = vadd.f32 %v1404, %v1485
      %v1502 = vadd.f32 %v1405, %v1486
      %v1503 = vadd.f32 %v1406, %v1487
      %v1504 = vadd.f32 %v1407, %v1488
      %v1505 = vadd.f32 %v1408, %v1489
      %v1506 = vadd.f32 %v1409, %v1490
      %v1507 = vadd.f32 %v1410, %v1491
      %v1508 = vadd.f32 %v1411, %v1492
      %v1509 = vadd.f32 %v1412, %v1493
      %v1510 = vadd.f32 %v1413, %v1494
      %v1511 = vadd.f32 %v1414, %v1495
      %v1512 = vadd.f32 %v1415, %v1496
      %v1513 = vadd.f32 %v1416, %v1497
      %v1514 = vadd.f32 %v1417, %v1498
      %v1515 = vadd.f32 %v1418, %v1499
      %v1516 = vadd.f32 %v1419, %v1500
      %1517 = vrot.lane.b32.xlu0 %v424, 43
      %v1518 = vpop.permute.xlu0 %1517
      %1519 = vrot.lane.b32.xlu0 %v428, 43
      %v1520 = vpop.permute.xlu0 %1519
      %1521 = vrot.lane.b32.xlu0 %v432, 43
      %v1522 = vpop.permute.xlu0 %1521
      %1523 = vrot.lane.b32.xlu0 %v436, 43
      %v1524 = vpop.permute.xlu0 %1523
      %1525 = vrot.lane.b32.xlu0 %v425, 43
      %v1526 = vpop.permute.xlu0 %1525
      %1527 = vrot.lane.b32.xlu0 %v429, 43
      %v1528 = vpop.permute.xlu0 %1527
      %1529 = vrot.lane.b32.xlu0 %v433, 43
      %v1530 = vpop.permute.xlu0 %1529
      %1531 = vrot.lane.b32.xlu0 %v437, 43
      %v1532 = vpop.permute.xlu0 %1531
      %1533 = vrot.lane.b32.xlu0 %v426, 43
      %v1534 = vpop.permute.xlu0 %1533
      %1535 = vrot.lane.b32.xlu0 %v430, 43
      %v1536 = vpop.permute.xlu0 %1535
      %1537 = vrot.lane.b32.xlu0 %v434, 43
      %v1538 = vpop.permute.xlu0 %1537
      %1539 = vrot.lane.b32.xlu0 %v438, 43
      %v1540 = vpop.permute.xlu0 %1539
      %1541 = vrot.lane.b32.xlu0 %v427, 43
      %v1542 = vpop.permute.xlu0 %1541
      %1543 = vrot.lane.b32.xlu0 %v431, 43
      %v1544 = vpop.permute.xlu0 %1543
      %1545 = vrot.lane.b32.xlu0 %v435, 43
      %v1546 = vpop.permute.xlu0 %1545
      %1547 = vrot.lane.b32.xlu0 %v439, 43
      %v1548 = vpop.permute.xlu0 %1547
      %vm1549 = vcmp.lt.s32.totalorder %v477, 43
      %v1550 = vsel %vm1549, %v1534, %v1542
      %v1551 = vsel %vm1549, %v1536, %v1544
      %v1552 = vsel %vm1549, %v1538, %v1546
      %v1553 = vsel %vm1549, %v1540, %v1548
      %v1554 = vsel %vm1549, %v1526, %v1534
      %v1555 = vsel %vm1549, %v1528, %v1536
      %v1556 = vsel %vm1549, %v1530, %v1538
      %v1557 = vsel %vm1549, %v1532, %v1540
      %v1558 = vsel %vm1549, %v1518, %v1526
      %v1559 = vsel %vm1549, %v1520, %v1528
      %v1560 = vsel %vm1549, %v1522, %v1530
      %v1561 = vsel %vm1549, %v1524, %v1532
      %v1562 = vsel %vm1549, %v1542, %v1518
      %v1563 = vsel %vm1549, %v1544, %v1520
      %v1564 = vsel %vm1549, %v1546, %v1522
      %v1565 = vsel %vm1549, %v1548, %v1524
      %1566 = vset.pattern.permute.xlu0 11
      %1567 = vperm.xlu0 %1566, %v440
      %v1568 = vpop.permute.xlu0 %1567
      %1570 = vset.pattern.permute.xlu0 11
      %1571 = vperm.xlu0 %1570, %v441
      %v1572 = vpop.permute.xlu0 %1571
      %1574 = vset.pattern.permute.xlu0 11
      %1575 = vperm.xlu0 %1574, %v442
      %v1576 = vpop.permute.xlu0 %1575
      %1578 = vset.pattern.permute.xlu0 11
      %1579 = vperm.xlu0 %1578, %v443
      %v1580 = vpop.permute.xlu0 %1579
      %v1582 = vmul.f32 %v1562, %v1568
      %v1583 = vmul.f32 %v1558, %v1568
      %v1584 = vmul.f32 %v1554, %v1568
      %v1585 = vmul.f32 %v1550, %v1568
      %v1586 = vmul.f32 %v1563, %v1572
      %v1587 = vmul.f32 %v1559, %v1572
      %v1588 = vmul.f32 %v1555, %v1572
      %v1589 = vmul.f32 %v1551, %v1572
      %v1590 = vmul.f32 %v1564, %v1576
      %v1591 = vmul.f32 %v1560, %v1576
      %v1592 = vmul.f32 %v1556, %v1576
      %v1593 = vmul.f32 %v1552, %v1576
      %v1594 = vmul.f32 %v1565, %v1580
      %v1595 = vmul.f32 %v1561, %v1580
      %v1596 = vmul.f32 %v1557, %v1580
      %v1597 = vmul.f32 %v1553, %v1580
      %v1598 = vadd.f32 %v1501, %v1582
      %v1599 = vadd.f32 %v1502, %v1583
      %v1600 = vadd.f32 %v1503, %v1584
      %v1601 = vadd.f32 %v1504, %v1585
      %v1602 = vadd.f32 %v1505, %v1586
      %v1603 = vadd.f32 %v1506, %v1587
      %v1604 = vadd.f32 %v1507, %v1588
      %v1605 = vadd.f32 %v1508, %v1589
      %v1606 = vadd.f32 %v1509, %v1590
      %v1607 = vadd.f32 %v1510, %v1591
      %v1608 = vadd.f32 %v1511, %v1592
      %v1609 = vadd.f32 %v1512, %v1593
      %v1610 = vadd.f32 %v1513, %v1594
      %v1611 = vadd.f32 %v1514, %v1595
      %v1612 = vadd.f32 %v1515, %v1596
      %v1613 = vadd.f32 %v1516, %v1597
      %1614 = vrot.lane.b32.xlu0 %v424, 42
      %v1615 = vpop.permute.xlu0 %1614
      %1616 = vrot.lane.b32.xlu0 %v428, 42
      %v1617 = vpop.permute.xlu0 %1616
      %1618 = vrot.lane.b32.xlu0 %v432, 42
      %v1619 = vpop.permute.xlu0 %1618
      %1620 = vrot.lane.b32.xlu0 %v436, 42
      %v1621 = vpop.permute.xlu0 %1620
      %1622 = vrot.lane.b32.xlu0 %v425, 42
      %v1623 = vpop.permute.xlu0 %1622
      %1624 = vrot.lane.b32.xlu0 %v429, 42
      %v1625 = vpop.permute.xlu0 %1624
      %1626 = vrot.lane.b32.xlu0 %v433, 42
      %v1627 = vpop.permute.xlu0 %1626
      %1628 = vrot.lane.b32.xlu0 %v437, 42
      %v1629 = vpop.permute.xlu0 %1628
      %1630 = vrot.lane.b32.xlu0 %v426, 42
      %v1631 = vpop.permute.xlu0 %1630
      %1632 = vrot.lane.b32.xlu0 %v430, 42
      %v1633 = vpop.permute.xlu0 %1632
      %1634 = vrot.lane.b32.xlu0 %v434, 42
      %v1635 = vpop.permute.xlu0 %1634
      %1636 = vrot.lane.b32.xlu0 %v438, 42
      %v1637 = vpop.permute.xlu0 %1636
      %1638 = vrot.lane.b32.xlu0 %v427, 42
      %v1639 = vpop.permute.xlu0 %1638
      %1640 = vrot.lane.b32.xlu0 %v431, 42
      %v1641 = vpop.permute.xlu0 %1640
      %1642 = vrot.lane.b32.xlu0 %v435, 42
      %v1643 = vpop.permute.xlu0 %1642
      %1644 = vrot.lane.b32.xlu0 %v439, 42
      %v1645 = vpop.permute.xlu0 %1644
      %vm1646 = vcmp.lt.s32.totalorder %v477, 42
      %v1647 = vsel %vm1646, %v1631, %v1639
      %v1648 = vsel %vm1646, %v1633, %v1641
      %v1649 = vsel %vm1646, %v1635, %v1643
      %v1650 = vsel %vm1646, %v1637, %v1645
      %v1651 = vsel %vm1646, %v1623, %v1631
      %v1652 = vsel %vm1646, %v1625, %v1633
      %v1653 = vsel %vm1646, %v1627, %v1635
      %v1654 = vsel %vm1646, %v1629, %v1637
      %v1655 = vsel %vm1646, %v1615, %v1623
      %v1656 = vsel %vm1646, %v1617, %v1625
      %v1657 = vsel %vm1646, %v1619, %v1627
      %v1658 = vsel %vm1646, %v1621, %v1629
      %v1659 = vsel %vm1646, %v1639, %v1615
      %v1660 = vsel %vm1646, %v1641, %v1617
      %v1661 = vsel %vm1646, %v1643, %v1619
      %v1662 = vsel %vm1646, %v1645, %v1621
      %1663 = vset.pattern.permute.xlu0 12
      %1664 = vperm.xlu0 %1663, %v440
      %v1665 = vpop.permute.xlu0 %1664
      %1667 = vset.pattern.permute.xlu0 12
      %1668 = vperm.xlu0 %1667, %v441
      %v1669 = vpop.permute.xlu0 %1668
      %1671 = vset.pattern.permute.xlu0 12
      %1672 = vperm.xlu0 %1671, %v442
      %v1673 = vpop.permute.xlu0 %1672
      %1675 = vset.pattern.permute.xlu0 12
      %1676 = vperm.xlu0 %1675, %v443
      %v1677 = vpop.permute.xlu0 %1676
      %v1679 = vmul.f32 %v1659, %v1665
      %v1680 = vmul.f32 %v1655, %v1665
      %v1681 = vmul.f32 %v1651, %v1665
      %v1682 = vmul.f32 %v1647, %v1665
      %v1683 = vmul.f32 %v1660, %v1669
      %v1684 = vmul.f32 %v1656, %v1669
      %v1685 = vmul.f32 %v1652, %v1669
      %v1686 = vmul.f32 %v1648, %v1669
      %v1687 = vmul.f32 %v1661, %v1673
      %v1688 = vmul.f32 %v1657, %v1673
      %v1689 = vmul.f32 %v1653, %v1673
      %v1690 = vmul.f32 %v1649, %v1673
      %v1691 = vmul.f32 %v1662, %v1677
      %v1692 = vmul.f32 %v1658, %v1677
      %v1693 = vmul.f32 %v1654, %v1677
      %v1694 = vmul.f32 %v1650, %v1677
      %v1695 = vadd.f32 %v1598, %v1679
      %v1696 = vadd.f32 %v1599, %v1680
      %v1697 = vadd.f32 %v1600, %v1681
      %v1698 = vadd.f32 %v1601, %v1682
      %v1699 = vadd.f32 %v1602, %v1683
      %v1700 = vadd.f32 %v1603, %v1684
      %v1701 = vadd.f32 %v1604, %v1685
      %v1702 = vadd.f32 %v1605, %v1686
      %v1703 = vadd.f32 %v1606, %v1687
      %v1704 = vadd.f32 %v1607, %v1688
      %v1705 = vadd.f32 %v1608, %v1689
      %v1706 = vadd.f32 %v1609, %v1690
      %v1707 = vadd.f32 %v1610, %v1691
      %v1708 = vadd.f32 %v1611, %v1692
      %v1709 = vadd.f32 %v1612, %v1693
      %v1710 = vadd.f32 %v1613, %v1694
      %1711 = vrot.lane.b32.xlu0 %v424, 41
      %v1712 = vpop.permute.xlu0 %1711
      %1713 = vrot.lane.b32.xlu0 %v428, 41
      %v1714 = vpop.permute.xlu0 %1713
      %1715 = vrot.lane.b32.xlu0 %v432, 41
      %v1716 = vpop.permute.xlu0 %1715
      %1717 = vrot.lane.b32.xlu0 %v436, 41
      %v1718 = vpop.permute.xlu0 %1717
      %1719 = vrot.lane.b32.xlu0 %v425, 41
      %v1720 = vpop.permute.xlu0 %1719
      %1721 = vrot.lane.b32.xlu0 %v429, 41
      %v1722 = vpop.permute.xlu0 %1721
      %1723 = vrot.lane.b32.xlu0 %v433, 41
      %v1724 = vpop.permute.xlu0 %1723
      %1725 = vrot.lane.b32.xlu0 %v437, 41
      %v1726 = vpop.permute.xlu0 %1725
      %1727 = vrot.lane.b32.xlu0 %v426, 41
      %v1728 = vpop.permute.xlu0 %1727
      %1729 = vrot.lane.b32.xlu0 %v430, 41
      %v1730 = vpop.permute.xlu0 %1729
      %1731 = vrot.lane.b32.xlu0 %v434, 41
      %v1732 = vpop.permute.xlu0 %1731
      %1733 = vrot.lane.b32.xlu0 %v438, 41
      %v1734 = vpop.permute.xlu0 %1733
      %1735 = vrot.lane.b32.xlu0 %v427, 41
      %v1736 = vpop.permute.xlu0 %1735
      %1737 = vrot.lane.b32.xlu0 %v431, 41
      %v1738 = vpop.permute.xlu0 %1737
      %1739 = vrot.lane.b32.xlu0 %v435, 41
      %v1740 = vpop.permute.xlu0 %1739
      %1741 = vrot.lane.b32.xlu0 %v439, 41
      %v1742 = vpop.permute.xlu0 %1741
      %vm1743 = vcmp.lt.s32.totalorder %v477, 41
      %v1744 = vsel %vm1743, %v1728, %v1736
      %v1745 = vsel %vm1743, %v1730, %v1738
      %v1746 = vsel %vm1743, %v1732, %v1740
      %v1747 = vsel %vm1743, %v1734, %v1742
      %v1748 = vsel %vm1743, %v1720, %v1728
      %v1749 = vsel %vm1743, %v1722, %v1730
      %v1750 = vsel %vm1743, %v1724, %v1732
      %v1751 = vsel %vm1743, %v1726, %v1734
      %v1752 = vsel %vm1743, %v1712, %v1720
      %v1753 = vsel %vm1743, %v1714, %v1722
      %v1754 = vsel %vm1743, %v1716, %v1724
      %v1755 = vsel %vm1743, %v1718, %v1726
      %v1756 = vsel %vm1743, %v1736, %v1712
      %v1757 = vsel %vm1743, %v1738, %v1714
      %v1758 = vsel %vm1743, %v1740, %v1716
      %v1759 = vsel %vm1743, %v1742, %v1718
      %1760 = vset.pattern.permute.xlu0 13
      %1761 = vperm.xlu0 %1760, %v440
      %v1762 = vpop.permute.xlu0 %1761
      %1764 = vset.pattern.permute.xlu0 13
      %1765 = vperm.xlu0 %1764, %v441
      %v1766 = vpop.permute.xlu0 %1765
      %1768 = vset.pattern.permute.xlu0 13
      %1769 = vperm.xlu0 %1768, %v442
      %v1770 = vpop.permute.xlu0 %1769
      %1772 = vset.pattern.permute.xlu0 13
      %1773 = vperm.xlu0 %1772, %v443
      %v1774 = vpop.permute.xlu0 %1773
      %v1776 = vmul.f32 %v1756, %v1762
      %v1777 = vmul.f32 %v1752, %v1762
      %v1778 = vmul.f32 %v1748, %v1762
      %v1779 = vmul.f32 %v1744, %v1762
      %v1780 = vmul.f32 %v1757, %v1766
      %v1781 = vmul.f32 %v1753, %v1766
      %v1782 = vmul.f32 %v1749, %v1766
      %v1783 = vmul.f32 %v1745, %v1766
      %v1784 = vmul.f32 %v1758, %v1770
      %v1785 = vmul.f32 %v1754, %v1770
      %v1786 = vmul.f32 %v1750, %v1770
      %v1787 = vmul.f32 %v1746, %v1770
      %v1788 = vmul.f32 %v1759, %v1774
      %v1789 = vmul.f32 %v1755, %v1774
      %v1790 = vmul.f32 %v1751, %v1774
      %v1791 = vmul.f32 %v1747, %v1774
      %v1792 = vadd.f32 %v1695, %v1776
      %v1793 = vadd.f32 %v1696, %v1777
      %v1794 = vadd.f32 %v1697, %v1778
      %v1795 = vadd.f32 %v1698, %v1779
      %v1796 = vadd.f32 %v1699, %v1780
      %v1797 = vadd.f32 %v1700, %v1781
      %v1798 = vadd.f32 %v1701, %v1782
      %v1799 = vadd.f32 %v1702, %v1783
      %v1800 = vadd.f32 %v1703, %v1784
      %v1801 = vadd.f32 %v1704, %v1785
      %v1802 = vadd.f32 %v1705, %v1786
      %v1803 = vadd.f32 %v1706, %v1787
      %v1804 = vadd.f32 %v1707, %v1788
      %v1805 = vadd.f32 %v1708, %v1789
      %v1806 = vadd.f32 %v1709, %v1790
      %v1807 = vadd.f32 %v1710, %v1791
      %1808 = vrot.lane.b32.xlu0 %v424, 25
      %v1809 = vpop.permute.xlu0 %1808
      %1810 = vrot.lane.b32.xlu0 %v428, 25
      %v1811 = vpop.permute.xlu0 %1810
      %1812 = vrot.lane.b32.xlu0 %v432, 25
      %v1813 = vpop.permute.xlu0 %1812
      %1814 = vrot.lane.b32.xlu0 %v436, 25
      %v1815 = vpop.permute.xlu0 %1814
      %1816 = vrot.lane.b32.xlu0 %v425, 25
      %v1817 = vpop.permute.xlu0 %1816
      %1818 = vrot.lane.b32.xlu0 %v429, 25
      %v1819 = vpop.permute.xlu0 %1818
      %1820 = vrot.lane.b32.xlu0 %v433, 25
      %v1821 = vpop.permute.xlu0 %1820
      %1822 = vrot.lane.b32.xlu0 %v437, 25
      %v1823 = vpop.permute.xlu0 %1822
      %1824 = vrot.lane.b32.xlu0 %v426, 25
      %v1825 = vpop.permute.xlu0 %1824
      %1826 = vrot.lane.b32.xlu0 %v430, 25
      %v1827 = vpop.permute.xlu0 %1826
      %1828 = vrot.lane.b32.xlu0 %v434, 25
      %v1829 = vpop.permute.xlu0 %1828
      %1830 = vrot.lane.b32.xlu0 %v438, 25
      %v1831 = vpop.permute.xlu0 %1830
      %1832 = vrot.lane.b32.xlu0 %v427, 25
      %v1833 = vpop.permute.xlu0 %1832
      %1834 = vrot.lane.b32.xlu0 %v431, 25
      %v1835 = vpop.permute.xlu0 %1834
      %1836 = vrot.lane.b32.xlu0 %v435, 25
      %v1837 = vpop.permute.xlu0 %1836
      %1838 = vrot.lane.b32.xlu0 %v439, 25
      %v1839 = vpop.permute.xlu0 %1838
      %vm1840 = vcmp.lt.s32.totalorder %v477, 25
      %v1841 = vsel %vm1840, %v1825, %v1833
      %v1842 = vsel %vm1840, %v1827, %v1835
      %v1843 = vsel %vm1840, %v1829, %v1837
      %v1844 = vsel %vm1840, %v1831, %v1839
      %v1845 = vsel %vm1840, %v1817, %v1825
      %v1846 = vsel %vm1840, %v1819, %v1827
      %v1847 = vsel %vm1840, %v1821, %v1829
      %v1848 = vsel %vm1840, %v1823, %v1831
      %v1849 = vsel %vm1840, %v1809, %v1817
      %v1850 = vsel %vm1840, %v1811, %v1819
      %v1851 = vsel %vm1840, %v1813, %v1821
      %v1852 = vsel %vm1840, %v1815, %v1823
      %v1853 = vsel %vm1840, %v1833, %v1809
      %v1854 = vsel %vm1840, %v1835, %v1811
      %v1855 = vsel %vm1840, %v1837, %v1813
      %v1856 = vsel %vm1840, %v1839, %v1815
      %1857 = vset.pattern.permute.xlu0 14
      %1858 = vperm.xlu0 %1857, %v440
      %v1859 = vpop.permute.xlu0 %1858
      %1861 = vset.pattern.permute.xlu0 14
      %1862 = vperm.xlu0 %1861, %v441
      %v1863 = vpop.permute.xlu0 %1862
      %1865 = vset.pattern.permute.xlu0 14
      %1866 = vperm.xlu0 %1865, %v442
      %v1867 = vpop.permute.xlu0 %1866
      %1869 = vset.pattern.permute.xlu0 14
      %1870 = vperm.xlu0 %1869, %v443
      %v1871 = vpop.permute.xlu0 %1870
      %v1873 = vmul.f32 %v1853, %v1859
      %v1874 = vmul.f32 %v1849, %v1859
      %v1875 = vmul.f32 %v1845, %v1859
      %v1876 = vmul.f32 %v1841, %v1859
      %v1877 = vmul.f32 %v1854, %v1863
      %v1878 = vmul.f32 %v1850, %v1863
      %v1879 = vmul.f32 %v1846, %v1863
      %v1880 = vmul.f32 %v1842, %v1863
      %v1881 = vmul.f32 %v1855, %v1867
      %v1882 = vmul.f32 %v1851, %v1867
      %v1883 = vmul.f32 %v1847, %v1867
      %v1884 = vmul.f32 %v1843, %v1867
      %v1885 = vmul.f32 %v1856, %v1871
      %v1886 = vmul.f32 %v1852, %v1871
      %v1887 = vmul.f32 %v1848, %v1871
      %v1888 = vmul.f32 %v1844, %v1871
      %v1889 = vadd.f32 %v1792, %v1873
      %v1890 = vadd.f32 %v1793, %v1874
      %v1891 = vadd.f32 %v1794, %v1875
      %v1892 = vadd.f32 %v1795, %v1876
      %v1893 = vadd.f32 %v1796, %v1877
      %v1894 = vadd.f32 %v1797, %v1878
      %v1895 = vadd.f32 %v1798, %v1879
      %v1896 = vadd.f32 %v1799, %v1880
      %v1897 = vadd.f32 %v1800, %v1881
      %v1898 = vadd.f32 %v1801, %v1882
      %v1899 = vadd.f32 %v1802, %v1883
      %v1900 = vadd.f32 %v1803, %v1884
      %v1901 = vadd.f32 %v1804, %v1885
      %v1902 = vadd.f32 %v1805, %v1886
      %v1903 = vadd.f32 %v1806, %v1887
      %v1904 = vadd.f32 %v1807, %v1888
      %1905 = vrot.lane.b32.xlu0 %v424, 24
      %v1906 = vpop.permute.xlu0 %1905
      %1907 = vrot.lane.b32.xlu0 %v428, 24
      %v1908 = vpop.permute.xlu0 %1907
      %1909 = vrot.lane.b32.xlu0 %v432, 24
      %v1910 = vpop.permute.xlu0 %1909
      %1911 = vrot.lane.b32.xlu0 %v436, 24
      %v1912 = vpop.permute.xlu0 %1911
      %1913 = vrot.lane.b32.xlu0 %v425, 24
      %v1914 = vpop.permute.xlu0 %1913
      %1915 = vrot.lane.b32.xlu0 %v429, 24
      %v1916 = vpop.permute.xlu0 %1915
      %1917 = vrot.lane.b32.xlu0 %v433, 24
      %v1918 = vpop.permute.xlu0 %1917
      %1919 = vrot.lane.b32.xlu0 %v437, 24
      %v1920 = vpop.permute.xlu0 %1919
      %1921 = vrot.lane.b32.xlu0 %v426, 24
      %v1922 = vpop.permute.xlu0 %1921
      %1923 = vrot.lane.b32.xlu0 %v430, 24
      %v1924 = vpop.permute.xlu0 %1923
      %1925 = vrot.lane.b32.xlu0 %v434, 24
      %v1926 = vpop.permute.xlu0 %1925
      %1927 = vrot.lane.b32.xlu0 %v438, 24
      %v1928 = vpop.permute.xlu0 %1927
      %1929 = vrot.lane.b32.xlu0 %v427, 24
      %v1930 = vpop.permute.xlu0 %1929
      %1931 = vrot.lane.b32.xlu0 %v431, 24
      %v1932 = vpop.permute.xlu0 %1931
      %1933 = vrot.lane.b32.xlu0 %v435, 24
      %v1934 = vpop.permute.xlu0 %1933
      %1935 = vrot.lane.b32.xlu0 %v439, 24
      %v1936 = vpop.permute.xlu0 %1935
      %vm1937 = vcmp.lt.s32.totalorder %v477, 24
      %v1938 = vsel %vm1937, %v1922, %v1930
      %v1939 = vsel %vm1937, %v1924, %v1932
      %v1940 = vsel %vm1937, %v1926, %v1934
      %v1941 = vsel %vm1937, %v1928, %v1936
      %v1942 = vsel %vm1937, %v1914, %v1922
      %v1943 = vsel %vm1937, %v1916, %v1924
      %v1944 = vsel %vm1937, %v1918, %v1926
      %v1945 = vsel %vm1937, %v1920, %v1928
      %v1946 = vsel %vm1937, %v1906, %v1914
      %v1947 = vsel %vm1937, %v1908, %v1916
      %v1948 = vsel %vm1937, %v1910, %v1918
      %v1949 = vsel %vm1937, %v1912, %v1920
      %v1950 = vsel %vm1937, %v1930, %v1906
      %v1951 = vsel %vm1937, %v1932, %v1908
      %v1952 = vsel %vm1937, %v1934, %v1910
      %v1953 = vsel %vm1937, %v1936, %v1912
      %1954 = vset.pattern.permute.xlu0 15
      %1955 = vperm.xlu0 %1954, %v440
      %v1956 = vpop.permute.xlu0 %1955
      %1958 = vset.pattern.permute.xlu0 15
      %1959 = vperm.xlu0 %1958, %v441
      %v1960 = vpop.permute.xlu0 %1959
      %1962 = vset.pattern.permute.xlu0 15
      %1963 = vperm.xlu0 %1962, %v442
      %v1964 = vpop.permute.xlu0 %1963
      %1966 = vset.pattern.permute.xlu0 15
      %1967 = vperm.xlu0 %1966, %v443
      %v1968 = vpop.permute.xlu0 %1967
      %v1970 = vmul.f32 %v1950, %v1956
      %v1971 = vmul.f32 %v1946, %v1956
      %v1972 = vmul.f32 %v1942, %v1956
      %v1973 = vmul.f32 %v1938, %v1956
      %v1974 = vmul.f32 %v1951, %v1960
      %v1975 = vmul.f32 %v1947, %v1960
      %v1976 = vmul.f32 %v1943, %v1960
      %v1977 = vmul.f32 %v1939, %v1960
      %v1978 = vmul.f32 %v1952, %v1964
      %v1979 = vmul.f32 %v1948, %v1964
      %v1980 = vmul.f32 %v1944, %v1964
      %v1981 = vmul.f32 %v1940, %v1964
      %v1982 = vmul.f32 %v1953, %v1968
      %v1983 = vmul.f32 %v1949, %v1968
      %v1984 = vmul.f32 %v1945, %v1968
      %v1985 = vmul.f32 %v1941, %v1968
      %v1986 = vadd.f32 %v1889, %v1970
      %v1987 = vadd.f32 %v1890, %v1971
      %v1988 = vadd.f32 %v1891, %v1972
      %v1989 = vadd.f32 %v1892, %v1973
      %v1990 = vadd.f32 %v1893, %v1974
      %v1991 = vadd.f32 %v1894, %v1975
      %v1992 = vadd.f32 %v1895, %v1976
      %v1993 = vadd.f32 %v1896, %v1977
      %v1994 = vadd.f32 %v1897, %v1978
      %v1995 = vadd.f32 %v1898, %v1979
      %v1996 = vadd.f32 %v1899, %v1980
      %v1997 = vadd.f32 %v1900, %v1981
      %v1998 = vadd.f32 %v1901, %v1982
      %v1999 = vadd.f32 %v1902, %v1983
      %v2000 = vadd.f32 %v1903, %v1984
      %v2001 = vadd.f32 %v1904, %v1985
      %2002 = vrot.lane.b32.xlu0 %v424, 23
      %v2003 = vpop.permute.xlu0 %2002
      %2004 = vrot.lane.b32.xlu0 %v428, 23
      %v2005 = vpop.permute.xlu0 %2004
      %2006 = vrot.lane.b32.xlu0 %v432, 23
      %v2007 = vpop.permute.xlu0 %2006
      %2008 = vrot.lane.b32.xlu0 %v436, 23
      %v2009 = vpop.permute.xlu0 %2008
      %2010 = vrot.lane.b32.xlu0 %v425, 23
      %v2011 = vpop.permute.xlu0 %2010
      %2012 = vrot.lane.b32.xlu0 %v429, 23
      %v2013 = vpop.permute.xlu0 %2012
      %2014 = vrot.lane.b32.xlu0 %v433, 23
      %v2015 = vpop.permute.xlu0 %2014
      %2016 = vrot.lane.b32.xlu0 %v437, 23
      %v2017 = vpop.permute.xlu0 %2016
      %2018 = vrot.lane.b32.xlu0 %v426, 23
      %v2019 = vpop.permute.xlu0 %2018
      %2020 = vrot.lane.b32.xlu0 %v430, 23
      %v2021 = vpop.permute.xlu0 %2020
      %2022 = vrot.lane.b32.xlu0 %v434, 23
      %v2023 = vpop.permute.xlu0 %2022
      %2024 = vrot.lane.b32.xlu0 %v438, 23
      %v2025 = vpop.permute.xlu0 %2024
      %2026 = vrot.lane.b32.xlu0 %v427, 23
      %v2027 = vpop.permute.xlu0 %2026
      %2028 = vrot.lane.b32.xlu0 %v431, 23
      %v2029 = vpop.permute.xlu0 %2028
      %2030 = vrot.lane.b32.xlu0 %v435, 23
      %v2031 = vpop.permute.xlu0 %2030
      %2032 = vrot.lane.b32.xlu0 %v439, 23
      %v2033 = vpop.permute.xlu0 %2032
      %vm2034 = vcmp.lt.s32.totalorder %v477, 23
      %v2035 = vsel %vm2034, %v2019, %v2027
      %v2036 = vsel %vm2034, %v2021, %v2029
      %v2037 = vsel %vm2034, %v2023, %v2031
      %v2038 = vsel %vm2034, %v2025, %v2033
      %v2039 = vsel %vm2034, %v2011, %v2019
      %v2040 = vsel %vm2034, %v2013, %v2021
      %v2041 = vsel %vm2034, %v2015, %v2023
      %v2042 = vsel %vm2034, %v2017, %v2025
      %v2043 = vsel %vm2034, %v2003, %v2011
      %v2044 = vsel %vm2034, %v2005, %v2013
      %v2045 = vsel %vm2034, %v2007, %v2015
      %v2046 = vsel %vm2034, %v2009, %v2017
      %v2047 = vsel %vm2034, %v2027, %v2003
      %v2048 = vsel %vm2034, %v2029, %v2005
      %v2049 = vsel %vm2034, %v2031, %v2007
      %v2050 = vsel %vm2034, %v2033, %v2009
      %2051 = vset.pattern.permute.xlu0 16
      %2052 = vperm.xlu0 %2051, %v440
      %v2053 = vpop.permute.xlu0 %2052
      %2055 = vset.pattern.permute.xlu0 16
      %2056 = vperm.xlu0 %2055, %v441
      %v2057 = vpop.permute.xlu0 %2056
      %2059 = vset.pattern.permute.xlu0 16
      %2060 = vperm.xlu0 %2059, %v442
      %v2061 = vpop.permute.xlu0 %2060
      %2063 = vset.pattern.permute.xlu0 16
      %2064 = vperm.xlu0 %2063, %v443
      %v2065 = vpop.permute.xlu0 %2064
      %v2067 = vmul.f32 %v2047, %v2053
      %v2068 = vmul.f32 %v2043, %v2053
      %v2069 = vmul.f32 %v2039, %v2053
      %v2070 = vmul.f32 %v2035, %v2053
      %v2071 = vmul.f32 %v2048, %v2057
      %v2072 = vmul.f32 %v2044, %v2057
      %v2073 = vmul.f32 %v2040, %v2057
      %v2074 = vmul.f32 %v2036, %v2057
      %v2075 = vmul.f32 %v2049, %v2061
      %v2076 = vmul.f32 %v2045, %v2061
      %v2077 = vmul.f32 %v2041, %v2061
      %v2078 = vmul.f32 %v2037, %v2061
      %v2079 = vmul.f32 %v2050, %v2065
      %v2080 = vmul.f32 %v2046, %v2065
      %v2081 = vmul.f32 %v2042, %v2065
      %v2082 = vmul.f32 %v2038, %v2065
      %v2083 = vadd.f32 %v1986, %v2067
      %v2084 = vadd.f32 %v1987, %v2068
      %v2085 = vadd.f32 %v1988, %v2069
      %v2086 = vadd.f32 %v1989, %v2070
      %v2087 = vadd.f32 %v1990, %v2071
      %v2088 = vadd.f32 %v1991, %v2072
      %v2089 = vadd.f32 %v1992, %v2073
      %v2090 = vadd.f32 %v1993, %v2074
      %v2091 = vadd.f32 %v1994, %v2075
      %v2092 = vadd.f32 %v1995, %v2076
      %v2093 = vadd.f32 %v1996, %v2077
      %v2094 = vadd.f32 %v1997, %v2078
      %v2095 = vadd.f32 %v1998, %v2079
      %v2096 = vadd.f32 %v1999, %v2080
      %v2097 = vadd.f32 %v2000, %v2081
      %v2098 = vadd.f32 %v2001, %v2082
      %2099 = vrot.lane.b32.xlu0 %v424, 22
      %v2100 = vpop.permute.xlu0 %2099
      %2101 = vrot.lane.b32.xlu0 %v428, 22
      %v2102 = vpop.permute.xlu0 %2101
      %2103 = vrot.lane.b32.xlu0 %v432, 22
      %v2104 = vpop.permute.xlu0 %2103
      %2105 = vrot.lane.b32.xlu0 %v436, 22
      %v2106 = vpop.permute.xlu0 %2105
      %2107 = vrot.lane.b32.xlu0 %v425, 22
      %v2108 = vpop.permute.xlu0 %2107
      %2109 = vrot.lane.b32.xlu0 %v429, 22
      %v2110 = vpop.permute.xlu0 %2109
      %2111 = vrot.lane.b32.xlu0 %v433, 22
      %v2112 = vpop.permute.xlu0 %2111
      %2113 = vrot.lane.b32.xlu0 %v437, 22
      %v2114 = vpop.permute.xlu0 %2113
      %2115 = vrot.lane.b32.xlu0 %v426, 22
      %v2116 = vpop.permute.xlu0 %2115
      %2117 = vrot.lane.b32.xlu0 %v430, 22
      %v2118 = vpop.permute.xlu0 %2117
      %2119 = vrot.lane.b32.xlu0 %v434, 22
      %v2120 = vpop.permute.xlu0 %2119
      %2121 = vrot.lane.b32.xlu0 %v438, 22
      %v2122 = vpop.permute.xlu0 %2121
      %2123 = vrot.lane.b32.xlu0 %v427, 22
      %v2124 = vpop.permute.xlu0 %2123
      %2125 = vrot.lane.b32.xlu0 %v431, 22
      %v2126 = vpop.permute.xlu0 %2125
      %2127 = vrot.lane.b32.xlu0 %v435, 22
      %v2128 = vpop.permute.xlu0 %2127
      %2129 = vrot.lane.b32.xlu0 %v439, 22
      %v2130 = vpop.permute.xlu0 %2129
      %vm2131 = vcmp.lt.s32.totalorder %v477, 22
      %v2132 = vsel %vm2131, %v2116, %v2124
      %v2133 = vsel %vm2131, %v2118, %v2126
      %v2134 = vsel %vm2131, %v2120, %v2128
      %v2135 = vsel %vm2131, %v2122, %v2130
      %v2136 = vsel %vm2131, %v2108, %v2116
      %v2137 = vsel %vm2131, %v2110, %v2118
      %v2138 = vsel %vm2131, %v2112, %v2120
      %v2139 = vsel %vm2131, %v2114, %v2122
      %v2140 = vsel %vm2131, %v2100, %v2108
      %v2141 = vsel %vm2131, %v2102, %v2110
      %v2142 = vsel %vm2131, %v2104, %v2112
      %v2143 = vsel %vm2131, %v2106, %v2114
      %v2144 = vsel %vm2131, %v2124, %v2100
      %v2145 = vsel %vm2131, %v2126, %v2102
      %v2146 = vsel %vm2131, %v2128, %v2104
      %v2147 = vsel %vm2131, %v2130, %v2106
      %2148 = vset.pattern.permute.xlu0 17
      %2149 = vperm.xlu0 %2148, %v440
      %v2150 = vpop.permute.xlu0 %2149
      %2152 = vset.pattern.permute.xlu0 17
      %2153 = vperm.xlu0 %2152, %v441
      %v2154 = vpop.permute.xlu0 %2153
      %2156 = vset.pattern.permute.xlu0 17
      %2157 = vperm.xlu0 %2156, %v442
      %v2158 = vpop.permute.xlu0 %2157
      %2160 = vset.pattern.permute.xlu0 17
      %2161 = vperm.xlu0 %2160, %v443
      %v2162 = vpop.permute.xlu0 %2161
      %v2164 = vmul.f32 %v2144, %v2150
      %v2165 = vmul.f32 %v2140, %v2150
      %v2166 = vmul.f32 %v2136, %v2150
      %v2167 = vmul.f32 %v2132, %v2150
      %v2168 = vmul.f32 %v2145, %v2154
      %v2169 = vmul.f32 %v2141, %v2154
      %v2170 = vmul.f32 %v2137, %v2154
      %v2171 = vmul.f32 %v2133, %v2154
      %v2172 = vmul.f32 %v2146, %v2158
      %v2173 = vmul.f32 %v2142, %v2158
      %v2174 = vmul.f32 %v2138, %v2158
      %v2175 = vmul.f32 %v2134, %v2158
      %v2176 = vmul.f32 %v2147, %v2162
      %v2177 = vmul.f32 %v2143, %v2162
      %v2178 = vmul.f32 %v2139, %v2162
      %v2179 = vmul.f32 %v2135, %v2162
      %v2180 = vadd.f32 %v2083, %v2164
      %v2181 = vadd.f32 %v2084, %v2165
      %v2182 = vadd.f32 %v2085, %v2166
      %v2183 = vadd.f32 %v2086, %v2167
      %v2184 = vadd.f32 %v2087, %v2168
      %v2185 = vadd.f32 %v2088, %v2169
      %v2186 = vadd.f32 %v2089, %v2170
      %v2187 = vadd.f32 %v2090, %v2171
      %v2188 = vadd.f32 %v2091, %v2172
      %v2189 = vadd.f32 %v2092, %v2173
      %v2190 = vadd.f32 %v2093, %v2174
      %v2191 = vadd.f32 %v2094, %v2175
      %v2192 = vadd.f32 %v2095, %v2176
      %v2193 = vadd.f32 %v2096, %v2177
      %v2194 = vadd.f32 %v2097, %v2178
      %v2195 = vadd.f32 %v2098, %v2179
      %2196 = vrot.lane.b32.xlu0 %v424, 21
      %v2197 = vpop.permute.xlu0 %2196
      %2198 = vrot.lane.b32.xlu0 %v428, 21
      %v2199 = vpop.permute.xlu0 %2198
      %2200 = vrot.lane.b32.xlu0 %v432, 21
      %v2201 = vpop.permute.xlu0 %2200
      %2202 = vrot.lane.b32.xlu0 %v436, 21
      %v2203 = vpop.permute.xlu0 %2202
      %2204 = vrot.lane.b32.xlu0 %v425, 21
      %v2205 = vpop.permute.xlu0 %2204
      %2206 = vrot.lane.b32.xlu0 %v429, 21
      %v2207 = vpop.permute.xlu0 %2206
      %2208 = vrot.lane.b32.xlu0 %v433, 21
      %v2209 = vpop.permute.xlu0 %2208
      %2210 = vrot.lane.b32.xlu0 %v437, 21
      %v2211 = vpop.permute.xlu0 %2210
      %2212 = vrot.lane.b32.xlu0 %v426, 21
      %v2213 = vpop.permute.xlu0 %2212
      %2214 = vrot.lane.b32.xlu0 %v430, 21
      %v2215 = vpop.permute.xlu0 %2214
      %2216 = vrot.lane.b32.xlu0 %v434, 21
      %v2217 = vpop.permute.xlu0 %2216
      %2218 = vrot.lane.b32.xlu0 %v438, 21
      %v2219 = vpop.permute.xlu0 %2218
      %2220 = vrot.lane.b32.xlu0 %v427, 21
      %v2221 = vpop.permute.xlu0 %2220
      %2222 = vrot.lane.b32.xlu0 %v431, 21
      %v2223 = vpop.permute.xlu0 %2222
      %2224 = vrot.lane.b32.xlu0 %v435, 21
      %v2225 = vpop.permute.xlu0 %2224
      %2226 = vrot.lane.b32.xlu0 %v439, 21
      %v2227 = vpop.permute.xlu0 %2226
      %vm2228 = vcmp.lt.s32.totalorder %v477, 21
      %v2229 = vsel %vm2228, %v2213, %v2221
      %v2230 = vsel %vm2228, %v2215, %v2223
      %v2231 = vsel %vm2228, %v2217, %v2225
      %v2232 = vsel %vm2228, %v2219, %v2227
      %v2233 = vsel %vm2228, %v2205, %v2213
      %v2234 = vsel %vm2228, %v2207, %v2215
      %v2235 = vsel %vm2228, %v2209, %v2217
      %v2236 = vsel %vm2228, %v2211, %v2219
      %v2237 = vsel %vm2228, %v2197, %v2205
      %v2238 = vsel %vm2228, %v2199, %v2207
      %v2239 = vsel %vm2228, %v2201, %v2209
      %v2240 = vsel %vm2228, %v2203, %v2211
      %v2241 = vsel %vm2228, %v2221, %v2197
      %v2242 = vsel %vm2228, %v2223, %v2199
      %v2243 = vsel %vm2228, %v2225, %v2201
      %v2244 = vsel %vm2228, %v2227, %v2203
      %2245 = vset.pattern.permute.xlu0 18
      %2246 = vperm.xlu0 %2245, %v440
      %v2247 = vpop.permute.xlu0 %2246
      %2249 = vset.pattern.permute.xlu0 18
      %2250 = vperm.xlu0 %2249, %v441
      %v2251 = vpop.permute.xlu0 %2250
      %2253 = vset.pattern.permute.xlu0 18
      %2254 = vperm.xlu0 %2253, %v442
      %v2255 = vpop.permute.xlu0 %2254
      %2257 = vset.pattern.permute.xlu0 18
      %2258 = vperm.xlu0 %2257, %v443
      %v2259 = vpop.permute.xlu0 %2258
      %v2261 = vmul.f32 %v2241, %v2247
      %v2262 = vmul.f32 %v2237, %v2247
      %v2263 = vmul.f32 %v2233, %v2247
      %v2264 = vmul.f32 %v2229, %v2247
      %v2265 = vmul.f32 %v2242, %v2251
      %v2266 = vmul.f32 %v2238, %v2251
      %v2267 = vmul.f32 %v2234, %v2251
      %v2268 = vmul.f32 %v2230, %v2251
      %v2269 = vmul.f32 %v2243, %v2255
      %v2270 = vmul.f32 %v2239, %v2255
      %v2271 = vmul.f32 %v2235, %v2255
      %v2272 = vmul.f32 %v2231, %v2255
      %v2273 = vmul.f32 %v2244, %v2259
      %v2274 = vmul.f32 %v2240, %v2259
      %v2275 = vmul.f32 %v2236, %v2259
      %v2276 = vmul.f32 %v2232, %v2259
      %v2277 = vadd.f32 %v2180, %v2261
      %v2278 = vadd.f32 %v2181, %v2262
      %v2279 = vadd.f32 %v2182, %v2263
      %v2280 = vadd.f32 %v2183, %v2264
      %v2281 = vadd.f32 %v2184, %v2265
      %v2282 = vadd.f32 %v2185, %v2266
      %v2283 = vadd.f32 %v2186, %v2267
      %v2284 = vadd.f32 %v2187, %v2268
      %v2285 = vadd.f32 %v2188, %v2269
      %v2286 = vadd.f32 %v2189, %v2270
      %v2287 = vadd.f32 %v2190, %v2271
      %v2288 = vadd.f32 %v2191, %v2272
      %v2289 = vadd.f32 %v2192, %v2273
      %v2290 = vadd.f32 %v2193, %v2274
      %v2291 = vadd.f32 %v2194, %v2275
      %v2292 = vadd.f32 %v2195, %v2276
      %2293 = vrot.lane.b32.xlu0 %v424, 20
      %v2294 = vpop.permute.xlu0 %2293
      %2295 = vrot.lane.b32.xlu0 %v428, 20
      %v2296 = vpop.permute.xlu0 %2295
      %2297 = vrot.lane.b32.xlu0 %v432, 20
      %v2298 = vpop.permute.xlu0 %2297
      %2299 = vrot.lane.b32.xlu0 %v436, 20
      %v2300 = vpop.permute.xlu0 %2299
      %2301 = vrot.lane.b32.xlu0 %v425, 20
      %v2302 = vpop.permute.xlu0 %2301
      %2303 = vrot.lane.b32.xlu0 %v429, 20
      %v2304 = vpop.permute.xlu0 %2303
      %2305 = vrot.lane.b32.xlu0 %v433, 20
      %v2306 = vpop.permute.xlu0 %2305
      %2307 = vrot.lane.b32.xlu0 %v437, 20
      %v2308 = vpop.permute.xlu0 %2307
      %2309 = vrot.lane.b32.xlu0 %v426, 20
      %v2310 = vpop.permute.xlu0 %2309
      %2311 = vrot.lane.b32.xlu0 %v430, 20
      %v2312 = vpop.permute.xlu0 %2311
      %2313 = vrot.lane.b32.xlu0 %v434, 20
      %v2314 = vpop.permute.xlu0 %2313
      %2315 = vrot.lane.b32.xlu0 %v438, 20
      %v2316 = vpop.permute.xlu0 %2315
      %2317 = vrot.lane.b32.xlu0 %v427, 20
      %v2318 = vpop.permute.xlu0 %2317
      %2319 = vrot.lane.b32.xlu0 %v431, 20
      %v2320 = vpop.permute.xlu0 %2319
      %2321 = vrot.lane.b32.xlu0 %v435, 20
      %v2322 = vpop.permute.xlu0 %2321
      %2323 = vrot.lane.b32.xlu0 %v439, 20
      %v2324 = vpop.permute.xlu0 %2323
      %vm2325 = vcmp.lt.s32.totalorder %v477, 20
      %v2326 = vsel %vm2325, %v2310, %v2318
      %v2327 = vsel %vm2325, %v2312, %v2320
      %v2328 = vsel %vm2325, %v2314, %v2322
      %v2329 = vsel %vm2325, %v2316, %v2324
      %v2330 = vsel %vm2325, %v2302, %v2310
      %v2331 = vsel %vm2325, %v2304, %v2312
      %v2332 = vsel %vm2325, %v2306, %v2314
      %v2333 = vsel %vm2325, %v2308, %v2316
      %v2334 = vsel %vm2325, %v2294, %v2302
      %v2335 = vsel %vm2325, %v2296, %v2304
      %v2336 = vsel %vm2325, %v2298, %v2306
      %v2337 = vsel %vm2325, %v2300, %v2308
      %v2338 = vsel %vm2325, %v2318, %v2294
      %v2339 = vsel %vm2325, %v2320, %v2296
      %v2340 = vsel %vm2325, %v2322, %v2298
      %v2341 = vsel %vm2325, %v2324, %v2300
      %2342 = vset.pattern.permute.xlu0 19
      %2343 = vperm.xlu0 %2342, %v440
      %v2344 = vpop.permute.xlu0 %2343
      %2346 = vset.pattern.permute.xlu0 19
      %2347 = vperm.xlu0 %2346, %v441
      %v2348 = vpop.permute.xlu0 %2347
      %2350 = vset.pattern.permute.xlu0 19
      %2351 = vperm.xlu0 %2350, %v442
      %v2352 = vpop.permute.xlu0 %2351
      %2354 = vset.pattern.permute.xlu0 19
      %2355 = vperm.xlu0 %2354, %v443
      %v2356 = vpop.permute.xlu0 %2355
      %v2358 = vmul.f32 %v2338, %v2344
      %v2359 = vmul.f32 %v2334, %v2344
      %v2360 = vmul.f32 %v2330, %v2344
      %v2361 = vmul.f32 %v2326, %v2344
      %v2362 = vmul.f32 %v2339, %v2348
      %v2363 = vmul.f32 %v2335, %v2348
      %v2364 = vmul.f32 %v2331, %v2348
      %v2365 = vmul.f32 %v2327, %v2348
      %v2366 = vmul.f32 %v2340, %v2352
      %v2367 = vmul.f32 %v2336, %v2352
      %v2368 = vmul.f32 %v2332, %v2352
      %v2369 = vmul.f32 %v2328, %v2352
      %v2370 = vmul.f32 %v2341, %v2356
      %v2371 = vmul.f32 %v2337, %v2356
      %v2372 = vmul.f32 %v2333, %v2356
      %v2373 = vmul.f32 %v2329, %v2356
      %v2374 = vadd.f32 %v2277, %v2358
      %v2375 = vadd.f32 %v2278, %v2359
      %v2376 = vadd.f32 %v2279, %v2360
      %v2377 = vadd.f32 %v2280, %v2361
      %v2378 = vadd.f32 %v2281, %v2362
      %v2379 = vadd.f32 %v2282, %v2363
      %v2380 = vadd.f32 %v2283, %v2364
      %v2381 = vadd.f32 %v2284, %v2365
      %v2382 = vadd.f32 %v2285, %v2366
      %v2383 = vadd.f32 %v2286, %v2367
      %v2384 = vadd.f32 %v2287, %v2368
      %v2385 = vadd.f32 %v2288, %v2369
      %v2386 = vadd.f32 %v2289, %v2370
      %v2387 = vadd.f32 %v2290, %v2371
      %v2388 = vadd.f32 %v2291, %v2372
      %v2389 = vadd.f32 %v2292, %v2373
      %2390 = vrot.lane.b32.xlu0 %v424, 19
      %v2391 = vpop.permute.xlu0 %2390
      %2392 = vrot.lane.b32.xlu0 %v428, 19
      %v2393 = vpop.permute.xlu0 %2392
      %2394 = vrot.lane.b32.xlu0 %v432, 19
      %v2395 = vpop.permute.xlu0 %2394
      %2396 = vrot.lane.b32.xlu0 %v436, 19
      %v2397 = vpop.permute.xlu0 %2396
      %2398 = vrot.lane.b32.xlu0 %v425, 19
      %v2399 = vpop.permute.xlu0 %2398
      %2400 = vrot.lane.b32.xlu0 %v429, 19
      %v2401 = vpop.permute.xlu0 %2400
      %2402 = vrot.lane.b32.xlu0 %v433, 19
      %v2403 = vpop.permute.xlu0 %2402
      %2404 = vrot.lane.b32.xlu0 %v437, 19
      %v2405 = vpop.permute.xlu0 %2404
      %2406 = vrot.lane.b32.xlu0 %v426, 19
      %v2407 = vpop.permute.xlu0 %2406
      %2408 = vrot.lane.b32.xlu0 %v430, 19
      %v2409 = vpop.permute.xlu0 %2408
      %2410 = vrot.lane.b32.xlu0 %v434, 19
      %v2411 = vpop.permute.xlu0 %2410
      %2412 = vrot.lane.b32.xlu0 %v438, 19
      %v2413 = vpop.permute.xlu0 %2412
      %2414 = vrot.lane.b32.xlu0 %v427, 19
      %v2415 = vpop.permute.xlu0 %2414
      %2416 = vrot.lane.b32.xlu0 %v431, 19
      %v2417 = vpop.permute.xlu0 %2416
      %2418 = vrot.lane.b32.xlu0 %v435, 19
      %v2419 = vpop.permute.xlu0 %2418
      %2420 = vrot.lane.b32.xlu0 %v439, 19
      %v2421 = vpop.permute.xlu0 %2420
      %vm2422 = vcmp.lt.s32.totalorder %v477, 19
      %v2423 = vsel %vm2422, %v2407, %v2415
      %v2424 = vsel %vm2422, %v2409, %v2417
      %v2425 = vsel %vm2422, %v2411, %v2419
      %v2426 = vsel %vm2422, %v2413, %v2421
      %v2427 = vsel %vm2422, %v2399, %v2407
      %v2428 = vsel %vm2422, %v2401, %v2409
      %v2429 = vsel %vm2422, %v2403, %v2411
      %v2430 = vsel %vm2422, %v2405, %v2413
      %v2431 = vsel %vm2422, %v2391, %v2399
      %v2432 = vsel %vm2422, %v2393, %v2401
      %v2433 = vsel %vm2422, %v2395, %v2403
      %v2434 = vsel %vm2422, %v2397, %v2405
      %v2435 = vsel %vm2422, %v2415, %v2391
      %v2436 = vsel %vm2422, %v2417, %v2393
      %v2437 = vsel %vm2422, %v2419, %v2395
      %v2438 = vsel %vm2422, %v2421, %v2397
      %2439 = vset.pattern.permute.xlu0 20
      %2440 = vperm.xlu0 %2439, %v440
      %v2441 = vpop.permute.xlu0 %2440
      %2443 = vset.pattern.permute.xlu0 20
      %2444 = vperm.xlu0 %2443, %v441
      %v2445 = vpop.permute.xlu0 %2444
      %2447 = vset.pattern.permute.xlu0 20
      %2448 = vperm.xlu0 %2447, %v442
      %v2449 = vpop.permute.xlu0 %2448
      %2451 = vset.pattern.permute.xlu0 20
      %2452 = vperm.xlu0 %2451, %v443
      %v2453 = vpop.permute.xlu0 %2452
      %v2455 = vmul.f32 %v2435, %v2441
      %v2456 = vmul.f32 %v2431, %v2441
      %v2457 = vmul.f32 %v2427, %v2441
      %v2458 = vmul.f32 %v2423, %v2441
      %v2459 = vmul.f32 %v2436, %v2445
      %v2460 = vmul.f32 %v2432, %v2445
      %v2461 = vmul.f32 %v2428, %v2445
      %v2462 = vmul.f32 %v2424, %v2445
      %v2463 = vmul.f32 %v2437, %v2449
      %v2464 = vmul.f32 %v2433, %v2449
      %v2465 = vmul.f32 %v2429, %v2449
      %v2466 = vmul.f32 %v2425, %v2449
      %v2467 = vmul.f32 %v2438, %v2453
      %v2468 = vmul.f32 %v2434, %v2453
      %v2469 = vmul.f32 %v2430, %v2453
      %v2470 = vmul.f32 %v2426, %v2453
      %v2471 = vadd.f32 %v2374, %v2455
      %v2472 = vadd.f32 %v2375, %v2456
      %v2473 = vadd.f32 %v2376, %v2457
      %v2474 = vadd.f32 %v2377, %v2458
      %v2475 = vadd.f32 %v2378, %v2459
      %v2476 = vadd.f32 %v2379, %v2460
      %v2477 = vadd.f32 %v2380, %v2461
      %v2478 = vadd.f32 %v2381, %v2462
      %v2479 = vadd.f32 %v2382, %v2463
      %v2480 = vadd.f32 %v2383, %v2464
      %v2481 = vadd.f32 %v2384, %v2465
      %v2482 = vadd.f32 %v2385, %v2466
      %v2483 = vadd.f32 %v2386, %v2467
      %v2484 = vadd.f32 %v2387, %v2468
      %v2485 = vadd.f32 %v2388, %v2469
      %v2486 = vadd.f32 %v2389, %v2470
      %2487 = vrot.lane.b32.xlu0 %v424, 3
      %v2488 = vpop.permute.xlu0 %2487
      %2489 = vrot.lane.b32.xlu0 %v428, 3
      %v2490 = vpop.permute.xlu0 %2489
      %2491 = vrot.lane.b32.xlu0 %v432, 3
      %v2492 = vpop.permute.xlu0 %2491
      %2493 = vrot.lane.b32.xlu0 %v436, 3
      %v2494 = vpop.permute.xlu0 %2493
      %2495 = vrot.lane.b32.xlu0 %v425, 3
      %v2496 = vpop.permute.xlu0 %2495
      %2497 = vrot.lane.b32.xlu0 %v429, 3
      %v2498 = vpop.permute.xlu0 %2497
      %2499 = vrot.lane.b32.xlu0 %v433, 3
      %v2500 = vpop.permute.xlu0 %2499
      %2501 = vrot.lane.b32.xlu0 %v437, 3
      %v2502 = vpop.permute.xlu0 %2501
      %2503 = vrot.lane.b32.xlu0 %v426, 3
      %v2504 = vpop.permute.xlu0 %2503
      %2505 = vrot.lane.b32.xlu0 %v430, 3
      %v2506 = vpop.permute.xlu0 %2505
      %2507 = vrot.lane.b32.xlu0 %v434, 3
      %v2508 = vpop.permute.xlu0 %2507
      %2509 = vrot.lane.b32.xlu0 %v438, 3
      %v2510 = vpop.permute.xlu0 %2509
      %2511 = vrot.lane.b32.xlu0 %v427, 3
      %v2512 = vpop.permute.xlu0 %2511
      %2513 = vrot.lane.b32.xlu0 %v431, 3
      %v2514 = vpop.permute.xlu0 %2513
      %2515 = vrot.lane.b32.xlu0 %v435, 3
      %v2516 = vpop.permute.xlu0 %2515
      %2517 = vrot.lane.b32.xlu0 %v439, 3
      %v2518 = vpop.permute.xlu0 %2517
      %vm2519 = vcmp.lt.s32.totalorder %v477, 3
      %v2520 = vsel %vm2519, %v2504, %v2512
      %v2521 = vsel %vm2519, %v2506, %v2514
      %v2522 = vsel %vm2519, %v2508, %v2516
      %v2523 = vsel %vm2519, %v2510, %v2518
      %v2524 = vsel %vm2519, %v2496, %v2504
      %v2525 = vsel %vm2519, %v2498, %v2506
      %v2526 = vsel %vm2519, %v2500, %v2508
      %v2527 = vsel %vm2519, %v2502, %v2510
      %v2528 = vsel %vm2519, %v2488, %v2496
      %v2529 = vsel %vm2519, %v2490, %v2498
      %v2530 = vsel %vm2519, %v2492, %v2500
      %v2531 = vsel %vm2519, %v2494, %v2502
      %v2532 = vsel %vm2519, %v2512, %v2488
      %v2533 = vsel %vm2519, %v2514, %v2490
      %v2534 = vsel %vm2519, %v2516, %v2492
      %v2535 = vsel %vm2519, %v2518, %v2494
      %2536 = vset.pattern.permute.xlu0 21
      %2537 = vperm.xlu0 %2536, %v440
      %v2538 = vpop.permute.xlu0 %2537
      %2540 = vset.pattern.permute.xlu0 21
      %2541 = vperm.xlu0 %2540, %v441
      %v2542 = vpop.permute.xlu0 %2541
      %2544 = vset.pattern.permute.xlu0 21
      %2545 = vperm.xlu0 %2544, %v442
      %v2546 = vpop.permute.xlu0 %2545
      %2548 = vset.pattern.permute.xlu0 21
      %2549 = vperm.xlu0 %2548, %v443
      %v2550 = vpop.permute.xlu0 %2549
      %v2552 = vmul.f32 %v2532, %v2538
      %v2553 = vmul.f32 %v2528, %v2538
      %v2554 = vmul.f32 %v2524, %v2538
      %v2555 = vmul.f32 %v2520, %v2538
      %v2556 = vmul.f32 %v2533, %v2542
      %v2557 = vmul.f32 %v2529, %v2542
      %v2558 = vmul.f32 %v2525, %v2542
      %v2559 = vmul.f32 %v2521, %v2542
      %v2560 = vmul.f32 %v2534, %v2546
      %v2561 = vmul.f32 %v2530, %v2546
      %v2562 = vmul.f32 %v2526, %v2546
      %v2563 = vmul.f32 %v2522, %v2546
      %v2564 = vmul.f32 %v2535, %v2550
      %v2565 = vmul.f32 %v2531, %v2550
      %v2566 = vmul.f32 %v2527, %v2550
      %v2567 = vmul.f32 %v2523, %v2550
      %v2568 = vadd.f32 %v2471, %v2552
      %v2569 = vadd.f32 %v2472, %v2553
      %v2570 = vadd.f32 %v2473, %v2554
      %v2571 = vadd.f32 %v2474, %v2555
      %v2572 = vadd.f32 %v2475, %v2556
      %v2573 = vadd.f32 %v2476, %v2557
      %v2574 = vadd.f32 %v2477, %v2558
      %v2575 = vadd.f32 %v2478, %v2559
      %v2576 = vadd.f32 %v2479, %v2560
      %v2577 = vadd.f32 %v2480, %v2561
      %v2578 = vadd.f32 %v2481, %v2562
      %v2579 = vadd.f32 %v2482, %v2563
      %v2580 = vadd.f32 %v2483, %v2564
      %v2581 = vadd.f32 %v2484, %v2565
      %v2582 = vadd.f32 %v2485, %v2566
      %v2583 = vadd.f32 %v2486, %v2567
      %2584 = vrot.lane.b32.xlu0 %v424, 2
      %v2585 = vpop.permute.xlu0 %2584
      %2586 = vrot.lane.b32.xlu0 %v428, 2
      %v2587 = vpop.permute.xlu0 %2586
      %2588 = vrot.lane.b32.xlu0 %v432, 2
      %v2589 = vpop.permute.xlu0 %2588
      %2590 = vrot.lane.b32.xlu0 %v436, 2
      %v2591 = vpop.permute.xlu0 %2590
      %2592 = vrot.lane.b32.xlu0 %v425, 2
      %v2593 = vpop.permute.xlu0 %2592
      %2594 = vrot.lane.b32.xlu0 %v429, 2
      %v2595 = vpop.permute.xlu0 %2594
      %2596 = vrot.lane.b32.xlu0 %v433, 2
      %v2597 = vpop.permute.xlu0 %2596
      %2598 = vrot.lane.b32.xlu0 %v437, 2
      %v2599 = vpop.permute.xlu0 %2598
      %2600 = vrot.lane.b32.xlu0 %v426, 2
      %v2601 = vpop.permute.xlu0 %2600
      %2602 = vrot.lane.b32.xlu0 %v430, 2
      %v2603 = vpop.permute.xlu0 %2602
      %2604 = vrot.lane.b32.xlu0 %v434, 2
      %v2605 = vpop.permute.xlu0 %2604
      %2606 = vrot.lane.b32.xlu0 %v438, 2
      %v2607 = vpop.permute.xlu0 %2606
      %2608 = vrot.lane.b32.xlu0 %v427, 2
      %v2609 = vpop.permute.xlu0 %2608
      %2610 = vrot.lane.b32.xlu0 %v431, 2
      %v2611 = vpop.permute.xlu0 %2610
      %2612 = vrot.lane.b32.xlu0 %v435, 2
      %v2613 = vpop.permute.xlu0 %2612
      %2614 = vrot.lane.b32.xlu0 %v439, 2
      %v2615 = vpop.permute.xlu0 %2614
      %vm2616 = vcmp.lt.s32.totalorder %v477, 2
      %v2617 = vsel %vm2616, %v2601, %v2609
      %v2618 = vsel %vm2616, %v2603, %v2611
      %v2619 = vsel %vm2616, %v2605, %v2613
      %v2620 = vsel %vm2616, %v2607, %v2615
      %v2621 = vsel %vm2616, %v2593, %v2601
      %v2622 = vsel %vm2616, %v2595, %v2603
      %v2623 = vsel %vm2616, %v2597, %v2605
      %v2624 = vsel %vm2616, %v2599, %v2607
      %v2625 = vsel %vm2616, %v2585, %v2593
      %v2626 = vsel %vm2616, %v2587, %v2595
      %v2627 = vsel %vm2616, %v2589, %v2597
      %v2628 = vsel %vm2616, %v2591, %v2599
      %v2629 = vsel %vm2616, %v2609, %v2585
      %v2630 = vsel %vm2616, %v2611, %v2587
      %v2631 = vsel %vm2616, %v2613, %v2589
      %v2632 = vsel %vm2616, %v2615, %v2591
      %2633 = vset.pattern.permute.xlu0 22
      %2634 = vperm.xlu0 %2633, %v440
      %v2635 = vpop.permute.xlu0 %2634
      %2637 = vset.pattern.permute.xlu0 22
      %2638 = vperm.xlu0 %2637, %v441
      %v2639 = vpop.permute.xlu0 %2638
      %2641 = vset.pattern.permute.xlu0 22
      %2642 = vperm.xlu0 %2641, %v442
      %v2643 = vpop.permute.xlu0 %2642
      %2645 = vset.pattern.permute.xlu0 22
      %2646 = vperm.xlu0 %2645, %v443
      %v2647 = vpop.permute.xlu0 %2646
      %v2649 = vmul.f32 %v2629, %v2635
      %v2650 = vmul.f32 %v2625, %v2635
      %v2651 = vmul.f32 %v2621, %v2635
      %v2652 = vmul.f32 %v2617, %v2635
      %v2653 = vmul.f32 %v2630, %v2639
      %v2654 = vmul.f32 %v2626, %v2639
      %v2655 = vmul.f32 %v2622, %v2639
      %v2656 = vmul.f32 %v2618, %v2639
      %v2657 = vmul.f32 %v2631, %v2643
      %v2658 = vmul.f32 %v2627, %v2643
      %v2659 = vmul.f32 %v2623, %v2643
      %v2660 = vmul.f32 %v2619, %v2643
      %v2661 = vmul.f32 %v2632, %v2647
      %v2662 = vmul.f32 %v2628, %v2647
      %v2663 = vmul.f32 %v2624, %v2647
      %v2664 = vmul.f32 %v2620, %v2647
      %v2665 = vadd.f32 %v2568, %v2649
      %v2666 = vadd.f32 %v2569, %v2650
      %v2667 = vadd.f32 %v2570, %v2651
      %v2668 = vadd.f32 %v2571, %v2652
      %v2669 = vadd.f32 %v2572, %v2653
      %v2670 = vadd.f32 %v2573, %v2654
      %v2671 = vadd.f32 %v2574, %v2655
      %v2672 = vadd.f32 %v2575, %v2656
      %v2673 = vadd.f32 %v2576, %v2657
      %v2674 = vadd.f32 %v2577, %v2658
      %v2675 = vadd.f32 %v2578, %v2659
      %v2676 = vadd.f32 %v2579, %v2660
      %v2677 = vadd.f32 %v2580, %v2661
      %v2678 = vadd.f32 %v2581, %v2662
      %v2679 = vadd.f32 %v2582, %v2663
      %v2680 = vadd.f32 %v2583, %v2664
      %2681 = vrot.lane.b32.xlu0 %v424, 1
      %v2682 = vpop.permute.xlu0 %2681
      %2683 = vrot.lane.b32.xlu0 %v428, 1
      %v2684 = vpop.permute.xlu0 %2683
      %2685 = vrot.lane.b32.xlu0 %v432, 1
      %v2686 = vpop.permute.xlu0 %2685
      %2687 = vrot.lane.b32.xlu0 %v436, 1
      %v2688 = vpop.permute.xlu0 %2687
      %2689 = vrot.lane.b32.xlu0 %v425, 1
      %v2690 = vpop.permute.xlu0 %2689
      %2691 = vrot.lane.b32.xlu0 %v429, 1
      %v2692 = vpop.permute.xlu0 %2691
      %2693 = vrot.lane.b32.xlu0 %v433, 1
      %v2694 = vpop.permute.xlu0 %2693
      %2695 = vrot.lane.b32.xlu0 %v437, 1
      %v2696 = vpop.permute.xlu0 %2695
      %2697 = vrot.lane.b32.xlu0 %v426, 1
      %v2698 = vpop.permute.xlu0 %2697
      %2699 = vrot.lane.b32.xlu0 %v430, 1
      %v2700 = vpop.permute.xlu0 %2699
      %2701 = vrot.lane.b32.xlu0 %v434, 1
      %v2702 = vpop.permute.xlu0 %2701
      %2703 = vrot.lane.b32.xlu0 %v438, 1
      %v2704 = vpop.permute.xlu0 %2703
      %2705 = vrot.lane.b32.xlu0 %v427, 1
      %v2706 = vpop.permute.xlu0 %2705
      %2707 = vrot.lane.b32.xlu0 %v431, 1
      %v2708 = vpop.permute.xlu0 %2707
      %2709 = vrot.lane.b32.xlu0 %v435, 1
      %v2710 = vpop.permute.xlu0 %2709
      %2711 = vrot.lane.b32.xlu0 %v439, 1
      %v2712 = vpop.permute.xlu0 %2711
      %vm2713 = vcmp.lt.s32.totalorder %v477, 1
      %v2714 = vsel %vm2713, %v2698, %v2706
      %v2715 = vsel %vm2713, %v2700, %v2708
      %v2716 = vsel %vm2713, %v2702, %v2710
      %v2717 = vsel %vm2713, %v2704, %v2712
      %v2718 = vsel %vm2713, %v2690, %v2698
      %v2719 = vsel %vm2713, %v2692, %v2700
      %v2720 = vsel %vm2713, %v2694, %v2702
      %v2721 = vsel %vm2713, %v2696, %v2704
      %v2722 = vsel %vm2713, %v2682, %v2690
      %v2723 = vsel %vm2713, %v2684, %v2692
      %v2724 = vsel %vm2713, %v2686, %v2694
      %v2725 = vsel %vm2713, %v2688, %v2696
      %v2726 = vsel %vm2713, %v2706, %v2682
      %v2727 = vsel %vm2713, %v2708, %v2684
      %v2728 = vsel %vm2713, %v2710, %v2686
      %v2729 = vsel %vm2713, %v2712, %v2688
      %2730 = vset.pattern.permute.xlu0 23
      %2731 = vperm.xlu0 %2730, %v440
      %v2732 = vpop.permute.xlu0 %2731
      %2734 = vset.pattern.permute.xlu0 23
      %2735 = vperm.xlu0 %2734, %v441
      %v2736 = vpop.permute.xlu0 %2735
      %2738 = vset.pattern.permute.xlu0 23
      %2739 = vperm.xlu0 %2738, %v442
      %v2740 = vpop.permute.xlu0 %2739
      %2742 = vset.pattern.permute.xlu0 23
      %2743 = vperm.xlu0 %2742, %v443
      %v2744 = vpop.permute.xlu0 %2743
      %v2746 = vmul.f32 %v2726, %v2732
      %v2747 = vmul.f32 %v2722, %v2732
      %v2748 = vmul.f32 %v2718, %v2732
      %v2749 = vmul.f32 %v2714, %v2732
      %v2750 = vmul.f32 %v2727, %v2736
      %v2751 = vmul.f32 %v2723, %v2736
      %v2752 = vmul.f32 %v2719, %v2736
      %v2753 = vmul.f32 %v2715, %v2736
      %v2754 = vmul.f32 %v2728, %v2740
      %v2755 = vmul.f32 %v2724, %v2740
      %v2756 = vmul.f32 %v2720, %v2740
      %v2757 = vmul.f32 %v2716, %v2740
      %v2758 = vmul.f32 %v2729, %v2744
      %v2759 = vmul.f32 %v2725, %v2744
      %v2760 = vmul.f32 %v2721, %v2744
      %v2761 = vmul.f32 %v2717, %v2744
      %v2762 = vadd.f32 %v2665, %v2746
      %v2763 = vadd.f32 %v2666, %v2747
      %v2764 = vadd.f32 %v2667, %v2748
      %v2765 = vadd.f32 %v2668, %v2749
      %v2766 = vadd.f32 %v2669, %v2750
      %v2767 = vadd.f32 %v2670, %v2751
      %v2768 = vadd.f32 %v2671, %v2752
      %v2769 = vadd.f32 %v2672, %v2753
      %v2770 = vadd.f32 %v2673, %v2754
      %v2771 = vadd.f32 %v2674, %v2755
      %v2772 = vadd.f32 %v2675, %v2756
      %v2773 = vadd.f32 %v2676, %v2757
      %v2774 = vadd.f32 %v2677, %v2758
      %v2775 = vadd.f32 %v2678, %v2759
      %v2776 = vadd.f32 %v2679, %v2760
      %v2777 = vadd.f32 %v2680, %v2761
      %2778 = vset.pattern.permute.xlu0 24
      %2779 = vperm.xlu0 %2778, %v440
      %v2780 = vpop.permute.xlu0 %2779
      %2782 = vset.pattern.permute.xlu0 24
      %2783 = vperm.xlu0 %2782, %v441
      %v2784 = vpop.permute.xlu0 %2783
      %2786 = vset.pattern.permute.xlu0 24
      %2787 = vperm.xlu0 %2786, %v442
      %v2788 = vpop.permute.xlu0 %2787
      %2790 = vset.pattern.permute.xlu0 24
      %2791 = vperm.xlu0 %2790, %v443
      %v2792 = vpop.permute.xlu0 %2791
      %v2794 = vmul.f32 %v424, %v2780
      %v2795 = vmul.f32 %v425, %v2780
      %v2796 = vmul.f32 %v426, %v2780
      %v2797 = vmul.f32 %v427, %v2780
      %v2798 = vmul.f32 %v428, %v2784
      %v2799 = vmul.f32 %v429, %v2784
      %v2800 = vmul.f32 %v430, %v2784
      %v2801 = vmul.f32 %v431, %v2784
      %v2802 = vmul.f32 %v432, %v2788
      %v2803 = vmul.f32 %v433, %v2788
      %v2804 = vmul.f32 %v434, %v2788
      %v2805 = vmul.f32 %v435, %v2788
      %v2806 = vmul.f32 %v436, %v2792
      %v2807 = vmul.f32 %v437, %v2792
      %v2808 = vmul.f32 %v438, %v2792
      %v2809 = vmul.f32 %v439, %v2792
      %v2810 = vadd.f32 %v2762, %v2794
      %v2811 = vadd.f32 %v2763, %v2795
      %v2812 = vadd.f32 %v2764, %v2796
      %v2813 = vadd.f32 %v2765, %v2797
      %v2814 = vadd.f32 %v2766, %v2798
      %v2815 = vadd.f32 %v2767, %v2799
      %v2816 = vadd.f32 %v2768, %v2800
      %v2817 = vadd.f32 %v2769, %v2801
      %v2818 = vadd.f32 %v2770, %v2802
      %v2819 = vadd.f32 %v2771, %v2803
      %v2820 = vadd.f32 %v2772, %v2804
      %v2821 = vadd.f32 %v2773, %v2805
      %v2822 = vadd.f32 %v2774, %v2806
      %v2823 = vadd.f32 %v2775, %v2807
      %v2824 = vadd.f32 %v2776, %v2808
      %v2825 = vadd.f32 %v2777, %v2809
      %2826 = vrot.lane.b32.xlu0 %v424, 127
      %v2827 = vpop.permute.xlu0 %2826
      %2828 = vrot.lane.b32.xlu0 %v428, 127
      %v2829 = vpop.permute.xlu0 %2828
      %2830 = vrot.lane.b32.xlu0 %v432, 127
      %v2831 = vpop.permute.xlu0 %2830
      %2832 = vrot.lane.b32.xlu0 %v436, 127
      %v2833 = vpop.permute.xlu0 %2832
      %2834 = vrot.lane.b32.xlu0 %v425, 127
      %v2835 = vpop.permute.xlu0 %2834
      %2836 = vrot.lane.b32.xlu0 %v429, 127
      %v2837 = vpop.permute.xlu0 %2836
      %2838 = vrot.lane.b32.xlu0 %v433, 127
      %v2839 = vpop.permute.xlu0 %2838
      %2840 = vrot.lane.b32.xlu0 %v437, 127
      %v2841 = vpop.permute.xlu0 %2840
      %2842 = vrot.lane.b32.xlu0 %v426, 127
      %v2843 = vpop.permute.xlu0 %2842
      %2844 = vrot.lane.b32.xlu0 %v430, 127
      %v2845 = vpop.permute.xlu0 %2844
      %2846 = vrot.lane.b32.xlu0 %v434, 127
      %v2847 = vpop.permute.xlu0 %2846
      %2848 = vrot.lane.b32.xlu0 %v438, 127
      %v2849 = vpop.permute.xlu0 %2848
      %2850 = vrot.lane.b32.xlu0 %v427, 127
      %v2851 = vpop.permute.xlu0 %2850
      %2852 = vrot.lane.b32.xlu0 %v431, 127
      %v2853 = vpop.permute.xlu0 %2852
      %2854 = vrot.lane.b32.xlu0 %v435, 127
      %v2855 = vpop.permute.xlu0 %2854
      %2856 = vrot.lane.b32.xlu0 %v439, 127
      %v2857 = vpop.permute.xlu0 %2856
      %vm2858 = vcmp.lt.s32.totalorder %v477, 127
      %v2859 = vsel %vm2858, %v2843, %v2851
      %v2860 = vsel %vm2858, %v2845, %v2853
      %v2861 = vsel %vm2858, %v2847, %v2855
      %v2862 = vsel %vm2858, %v2849, %v2857
      %v2863 = vsel %vm2858, %v2835, %v2843
      %v2864 = vsel %vm2858, %v2837, %v2845
      %v2865 = vsel %vm2858, %v2839, %v2847
      %v2866 = vsel %vm2858, %v2841, %v2849
      %v2867 = vsel %vm2858, %v2827, %v2835
      %v2868 = vsel %vm2858, %v2829, %v2837
      %v2869 = vsel %vm2858, %v2831, %v2839
      %v2870 = vsel %vm2858, %v2833, %v2841
      %v2871 = vsel %vm2858, %v2851, %v2827
      %v2872 = vsel %vm2858, %v2853, %v2829
      %v2873 = vsel %vm2858, %v2855, %v2831
      %v2874 = vsel %vm2858, %v2857, %v2833
      %2875 = vset.pattern.permute.xlu0 25
      %2876 = vperm.xlu0 %2875, %v440
      %v2877 = vpop.permute.xlu0 %2876
      %2879 = vset.pattern.permute.xlu0 25
      %2880 = vperm.xlu0 %2879, %v441
      %v2881 = vpop.permute.xlu0 %2880
      %2883 = vset.pattern.permute.xlu0 25
      %2884 = vperm.xlu0 %2883, %v442
      %v2885 = vpop.permute.xlu0 %2884
      %2887 = vset.pattern.permute.xlu0 25
      %2888 = vperm.xlu0 %2887, %v443
      %v2889 = vpop.permute.xlu0 %2888
      %v2891 = vmul.f32 %v2867, %v2877
      %v2892 = vmul.f32 %v2863, %v2877
      %v2893 = vmul.f32 %v2859, %v2877
      %v2894 = vmul.f32 %v2871, %v2877
      %v2895 = vmul.f32 %v2868, %v2881
      %v2896 = vmul.f32 %v2864, %v2881
      %v2897 = vmul.f32 %v2860, %v2881
      %v2898 = vmul.f32 %v2872, %v2881
      %v2899 = vmul.f32 %v2869, %v2885
      %v2900 = vmul.f32 %v2865, %v2885
      %v2901 = vmul.f32 %v2861, %v2885
      %v2902 = vmul.f32 %v2873, %v2885
      %v2903 = vmul.f32 %v2870, %v2889
      %v2904 = vmul.f32 %v2866, %v2889
      %v2905 = vmul.f32 %v2862, %v2889
      %v2906 = vmul.f32 %v2874, %v2889
      %v2907 = vadd.f32 %v2810, %v2891
      %v2908 = vadd.f32 %v2811, %v2892
      %v2909 = vadd.f32 %v2812, %v2893
      %v2910 = vadd.f32 %v2813, %v2894
      %v2911 = vadd.f32 %v2814, %v2895
      %v2912 = vadd.f32 %v2815, %v2896
      %v2913 = vadd.f32 %v2816, %v2897
      %v2914 = vadd.f32 %v2817, %v2898
      %v2915 = vadd.f32 %v2818, %v2899
      %v2916 = vadd.f32 %v2819, %v2900
      %v2917 = vadd.f32 %v2820, %v2901
      %v2918 = vadd.f32 %v2821, %v2902
      %v2919 = vadd.f32 %v2822, %v2903
      %v2920 = vadd.f32 %v2823, %v2904
      %v2921 = vadd.f32 %v2824, %v2905
      %v2922 = vadd.f32 %v2825, %v2906
      %2923 = vrot.lane.b32.xlu0 %v424, 126
      %v2924 = vpop.permute.xlu0 %2923
      %2925 = vrot.lane.b32.xlu0 %v428, 126
      %v2926 = vpop.permute.xlu0 %2925
      %2927 = vrot.lane.b32.xlu0 %v432, 126
      %v2928 = vpop.permute.xlu0 %2927
      %2929 = vrot.lane.b32.xlu0 %v436, 126
      %v2930 = vpop.permute.xlu0 %2929
      %2931 = vrot.lane.b32.xlu0 %v425, 126
      %v2932 = vpop.permute.xlu0 %2931
      %2933 = vrot.lane.b32.xlu0 %v429, 126
      %v2934 = vpop.permute.xlu0 %2933
      %2935 = vrot.lane.b32.xlu0 %v433, 126
      %v2936 = vpop.permute.xlu0 %2935
      %2937 = vrot.lane.b32.xlu0 %v437, 126
      %v2938 = vpop.permute.xlu0 %2937
      %2939 = vrot.lane.b32.xlu0 %v426, 126
      %v2940 = vpop.permute.xlu0 %2939
      %2941 = vrot.lane.b32.xlu0 %v430, 126
      %v2942 = vpop.permute.xlu0 %2941
      %2943 = vrot.lane.b32.xlu0 %v434, 126
      %v2944 = vpop.permute.xlu0 %2943
      %2945 = vrot.lane.b32.xlu0 %v438, 126
      %v2946 = vpop.permute.xlu0 %2945
      %2947 = vrot.lane.b32.xlu0 %v427, 126
      %v2948 = vpop.permute.xlu0 %2947
      %2949 = vrot.lane.b32.xlu0 %v431, 126
      %v2950 = vpop.permute.xlu0 %2949
      %2951 = vrot.lane.b32.xlu0 %v435, 126
      %v2952 = vpop.permute.xlu0 %2951
      %2953 = vrot.lane.b32.xlu0 %v439, 126
      %v2954 = vpop.permute.xlu0 %2953
      %vm2955 = vcmp.lt.s32.totalorder %v477, 126
      %v2956 = vsel %vm2955, %v2940, %v2948
      %v2957 = vsel %vm2955, %v2942, %v2950
      %v2958 = vsel %vm2955, %v2944, %v2952
      %v2959 = vsel %vm2955, %v2946, %v2954
      %v2960 = vsel %vm2955, %v2932, %v2940
      %v2961 = vsel %vm2955, %v2934, %v2942
      %v2962 = vsel %vm2955, %v2936, %v2944
      %v2963 = vsel %vm2955, %v2938, %v2946
      %v2964 = vsel %vm2955, %v2924, %v2932
      %v2965 = vsel %vm2955, %v2926, %v2934
      %v2966 = vsel %vm2955, %v2928, %v2936
      %v2967 = vsel %vm2955, %v2930, %v2938
      %v2968 = vsel %vm2955, %v2948, %v2924
      %v2969 = vsel %vm2955, %v2950, %v2926
      %v2970 = vsel %vm2955, %v2952, %v2928
      %v2971 = vsel %vm2955, %v2954, %v2930
      %2972 = vset.pattern.permute.xlu0 26
      %2973 = vperm.xlu0 %2972, %v440
      %v2974 = vpop.permute.xlu0 %2973
      %2976 = vset.pattern.permute.xlu0 26
      %2977 = vperm.xlu0 %2976, %v441
      %v2978 = vpop.permute.xlu0 %2977
      %2980 = vset.pattern.permute.xlu0 26
      %2981 = vperm.xlu0 %2980, %v442
      %v2982 = vpop.permute.xlu0 %2981
      %2984 = vset.pattern.permute.xlu0 26
      %2985 = vperm.xlu0 %2984, %v443
      %v2986 = vpop.permute.xlu0 %2985
      %v2988 = vmul.f32 %v2964, %v2974
      %v2989 = vmul.f32 %v2960, %v2974
      %v2990 = vmul.f32 %v2956, %v2974
      %v2991 = vmul.f32 %v2968, %v2974
      %v2992 = vmul.f32 %v2965, %v2978
      %v2993 = vmul.f32 %v2961, %v2978
      %v2994 = vmul.f32 %v2957, %v2978
      %v2995 = vmul.f32 %v2969, %v2978
      %v2996 = vmul.f32 %v2966, %v2982
      %v2997 = vmul.f32 %v2962, %v2982
      %v2998 = vmul.f32 %v2958, %v2982
      %v2999 = vmul.f32 %v2970, %v2982
      %v3000 = vmul.f32 %v2967, %v2986
      %v3001 = vmul.f32 %v2963, %v2986
      %v3002 = vmul.f32 %v2959, %v2986
      %v3003 = vmul.f32 %v2971, %v2986
      %v3004 = vadd.f32 %v2907, %v2988
      %v3005 = vadd.f32 %v2908, %v2989
      %v3006 = vadd.f32 %v2909, %v2990
      %v3007 = vadd.f32 %v2910, %v2991
      %v3008 = vadd.f32 %v2911, %v2992
      %v3009 = vadd.f32 %v2912, %v2993
      %v3010 = vadd.f32 %v2913, %v2994
      %v3011 = vadd.f32 %v2914, %v2995
      %v3012 = vadd.f32 %v2915, %v2996
      %v3013 = vadd.f32 %v2916, %v2997
      %v3014 = vadd.f32 %v2917, %v2998
      %v3015 = vadd.f32 %v2918, %v2999
      %v3016 = vadd.f32 %v2919, %v3000
      %v3017 = vadd.f32 %v2920, %v3001
      %v3018 = vadd.f32 %v2921, %v3002
      %v3019 = vadd.f32 %v2922, %v3003
      %3020 = vrot.lane.b32.xlu0 %v424, 125
      %v3021 = vpop.permute.xlu0 %3020
      %3022 = vrot.lane.b32.xlu0 %v428, 125
      %v3023 = vpop.permute.xlu0 %3022
      %3024 = vrot.lane.b32.xlu0 %v432, 125
      %v3025 = vpop.permute.xlu0 %3024
      %3026 = vrot.lane.b32.xlu0 %v436, 125
      %v3027 = vpop.permute.xlu0 %3026
      %3028 = vrot.lane.b32.xlu0 %v425, 125
      %v3029 = vpop.permute.xlu0 %3028
      %3030 = vrot.lane.b32.xlu0 %v429, 125
      %v3031 = vpop.permute.xlu0 %3030
      %3032 = vrot.lane.b32.xlu0 %v433, 125
      %v3033 = vpop.permute.xlu0 %3032
      %3034 = vrot.lane.b32.xlu0 %v437, 125
      %v3035 = vpop.permute.xlu0 %3034
      %3036 = vrot.lane.b32.xlu0 %v426, 125
      %v3037 = vpop.permute.xlu0 %3036
      %3038 = vrot.lane.b32.xlu0 %v430, 125
      %v3039 = vpop.permute.xlu0 %3038
      %3040 = vrot.lane.b32.xlu0 %v434, 125
      %v3041 = vpop.permute.xlu0 %3040
      %3042 = vrot.lane.b32.xlu0 %v438, 125
      %v3043 = vpop.permute.xlu0 %3042
      %3044 = vrot.lane.b32.xlu0 %v427, 125
      %v3045 = vpop.permute.xlu0 %3044
      %3046 = vrot.lane.b32.xlu0 %v431, 125
      %v3047 = vpop.permute.xlu0 %3046
      %3048 = vrot.lane.b32.xlu0 %v435, 125
      %v3049 = vpop.permute.xlu0 %3048
      %3050 = vrot.lane.b32.xlu0 %v439, 125
      %v3051 = vpop.permute.xlu0 %3050
      %vm3052 = vcmp.lt.s32.totalorder %v477, 125
      %v3053 = vsel %vm3052, %v3037, %v3045
      %v3054 = vsel %vm3052, %v3039, %v3047
      %v3055 = vsel %vm3052, %v3041, %v3049
      %v3056 = vsel %vm3052, %v3043, %v3051
      %v3057 = vsel %vm3052, %v3029, %v3037
      %v3058 = vsel %vm3052, %v3031, %v3039
      %v3059 = vsel %vm3052, %v3033, %v3041
      %v3060 = vsel %vm3052, %v3035, %v3043
      %v3061 = vsel %vm3052, %v3021, %v3029
      %v3062 = vsel %vm3052, %v3023, %v3031
      %v3063 = vsel %vm3052, %v3025, %v3033
      %v3064 = vsel %vm3052, %v3027, %v3035
      %v3065 = vsel %vm3052, %v3045, %v3021
      %v3066 = vsel %vm3052, %v3047, %v3023
      %v3067 = vsel %vm3052, %v3049, %v3025
      %v3068 = vsel %vm3052, %v3051, %v3027
      %3069 = vset.pattern.permute.xlu0 27
      %3070 = vperm.xlu0 %3069, %v440
      %v3071 = vpop.permute.xlu0 %3070
      %3073 = vset.pattern.permute.xlu0 27
      %3074 = vperm.xlu0 %3073, %v441
      %v3075 = vpop.permute.xlu0 %3074
      %3077 = vset.pattern.permute.xlu0 27
      %3078 = vperm.xlu0 %3077, %v442
      %v3079 = vpop.permute.xlu0 %3078
      %3081 = vset.pattern.permute.xlu0 27
      %3082 = vperm.xlu0 %3081, %v443
      %v3083 = vpop.permute.xlu0 %3082
      %v3085 = vmul.f32 %v3061, %v3071
      %v3086 = vmul.f32 %v3057, %v3071
      %v3087 = vmul.f32 %v3053, %v3071
      %v3088 = vmul.f32 %v3065, %v3071
      %v3089 = vmul.f32 %v3062, %v3075
      %v3090 = vmul.f32 %v3058, %v3075
      %v3091 = vmul.f32 %v3054, %v3075
      %v3092 = vmul.f32 %v3066, %v3075
      %v3093 = vmul.f32 %v3063, %v3079
      %v3094 = vmul.f32 %v3059, %v3079
      %v3095 = vmul.f32 %v3055, %v3079
      %v3096 = vmul.f32 %v3067, %v3079
      %v3097 = vmul.f32 %v3064, %v3083
      %v3098 = vmul.f32 %v3060, %v3083
      %v3099 = vmul.f32 %v3056, %v3083
      %v3100 = vmul.f32 %v3068, %v3083
      %v3101 = vadd.f32 %v3004, %v3085
      %v3102 = vadd.f32 %v3005, %v3086
      %v3103 = vadd.f32 %v3006, %v3087
      %v3104 = vadd.f32 %v3007, %v3088
      %v3105 = vadd.f32 %v3008, %v3089
      %v3106 = vadd.f32 %v3009, %v3090
      %v3107 = vadd.f32 %v3010, %v3091
      %v3108 = vadd.f32 %v3011, %v3092
      %v3109 = vadd.f32 %v3012, %v3093
      %v3110 = vadd.f32 %v3013, %v3094
      %v3111 = vadd.f32 %v3014, %v3095
      %v3112 = vadd.f32 %v3015, %v3096
      %v3113 = vadd.f32 %v3016, %v3097
      %v3114 = vadd.f32 %v3017, %v3098
      %v3115 = vadd.f32 %v3018, %v3099
      %v3116 = vadd.f32 %v3019, %v3100
      %3117 = vrot.lane.b32.xlu0 %v424, 109
      %v3118 = vpop.permute.xlu0 %3117
      %3119 = vrot.lane.b32.xlu0 %v428, 109
      %v3120 = vpop.permute.xlu0 %3119
      %3121 = vrot.lane.b32.xlu0 %v432, 109
      %v3122 = vpop.permute.xlu0 %3121
      %3123 = vrot.lane.b32.xlu0 %v436, 109
      %v3124 = vpop.permute.xlu0 %3123
      %3125 = vrot.lane.b32.xlu0 %v425, 109
      %v3126 = vpop.permute.xlu0 %3125
      %3127 = vrot.lane.b32.xlu0 %v429, 109
      %v3128 = vpop.permute.xlu0 %3127
      %3129 = vrot.lane.b32.xlu0 %v433, 109
      %v3130 = vpop.permute.xlu0 %3129
      %3131 = vrot.lane.b32.xlu0 %v437, 109
      %v3132 = vpop.permute.xlu0 %3131
      %3133 = vrot.lane.b32.xlu0 %v426, 109
      %v3134 = vpop.permute.xlu0 %3133
      %3135 = vrot.lane.b32.xlu0 %v430, 109
      %v3136 = vpop.permute.xlu0 %3135
      %3137 = vrot.lane.b32.xlu0 %v434, 109
      %v3138 = vpop.permute.xlu0 %3137
      %3139 = vrot.lane.b32.xlu0 %v438, 109
      %v3140 = vpop.permute.xlu0 %3139
      %3141 = vrot.lane.b32.xlu0 %v427, 109
      %v3142 = vpop.permute.xlu0 %3141
      %3143 = vrot.lane.b32.xlu0 %v431, 109
      %v3144 = vpop.permute.xlu0 %3143
      %3145 = vrot.lane.b32.xlu0 %v435, 109
      %v3146 = vpop.permute.xlu0 %3145
      %3147 = vrot.lane.b32.xlu0 %v439, 109
      %v3148 = vpop.permute.xlu0 %3147
      %vm3149 = vcmp.lt.s32.totalorder %v477, 109
      %v3150 = vsel %vm3149, %v3134, %v3142
      %v3151 = vsel %vm3149, %v3136, %v3144
      %v3152 = vsel %vm3149, %v3138, %v3146
      %v3153 = vsel %vm3149, %v3140, %v3148
      %v3154 = vsel %vm3149, %v3126, %v3134
      %v3155 = vsel %vm3149, %v3128, %v3136
      %v3156 = vsel %vm3149, %v3130, %v3138
      %v3157 = vsel %vm3149, %v3132, %v3140
      %v3158 = vsel %vm3149, %v3118, %v3126
      %v3159 = vsel %vm3149, %v3120, %v3128
      %v3160 = vsel %vm3149, %v3122, %v3130
      %v3161 = vsel %vm3149, %v3124, %v3132
      %v3162 = vsel %vm3149, %v3142, %v3118
      %v3163 = vsel %vm3149, %v3144, %v3120
      %v3164 = vsel %vm3149, %v3146, %v3122
      %v3165 = vsel %vm3149, %v3148, %v3124
      %3166 = vset.pattern.permute.xlu0 28
      %3167 = vperm.xlu0 %3166, %v440
      %v3168 = vpop.permute.xlu0 %3167
      %3170 = vset.pattern.permute.xlu0 28
      %3171 = vperm.xlu0 %3170, %v441
      %v3172 = vpop.permute.xlu0 %3171
      %3174 = vset.pattern.permute.xlu0 28
      %3175 = vperm.xlu0 %3174, %v442
      %v3176 = vpop.permute.xlu0 %3175
      %3178 = vset.pattern.permute.xlu0 28
      %3179 = vperm.xlu0 %3178, %v443
      %v3180 = vpop.permute.xlu0 %3179
      %v3182 = vmul.f32 %v3158, %v3168
      %v3183 = vmul.f32 %v3154, %v3168
      %v3184 = vmul.f32 %v3150, %v3168
      %v3185 = vmul.f32 %v3162, %v3168
      %v3186 = vmul.f32 %v3159, %v3172
      %v3187 = vmul.f32 %v3155, %v3172
      %v3188 = vmul.f32 %v3151, %v3172
      %v3189 = vmul.f32 %v3163, %v3172
      %v3190 = vmul.f32 %v3160, %v3176
      %v3191 = vmul.f32 %v3156, %v3176
      %v3192 = vmul.f32 %v3152, %v3176
      %v3193 = vmul.f32 %v3164, %v3176
      %v3194 = vmul.f32 %v3161, %v3180
      %v3195 = vmul.f32 %v3157, %v3180
      %v3196 = vmul.f32 %v3153, %v3180
      %v3197 = vmul.f32 %v3165, %v3180
      %v3198 = vadd.f32 %v3101, %v3182
      %v3199 = vadd.f32 %v3102, %v3183
      %v3200 = vadd.f32 %v3103, %v3184
      %v3201 = vadd.f32 %v3104, %v3185
      %v3202 = vadd.f32 %v3105, %v3186
      %v3203 = vadd.f32 %v3106, %v3187
      %v3204 = vadd.f32 %v3107, %v3188
      %v3205 = vadd.f32 %v3108, %v3189
      %v3206 = vadd.f32 %v3109, %v3190
      %v3207 = vadd.f32 %v3110, %v3191
      %v3208 = vadd.f32 %v3111, %v3192
      %v3209 = vadd.f32 %v3112, %v3193
      %v3210 = vadd.f32 %v3113, %v3194
      %v3211 = vadd.f32 %v3114, %v3195
      %v3212 = vadd.f32 %v3115, %v3196
      %v3213 = vadd.f32 %v3116, %v3197
      %3214 = vrot.lane.b32.xlu0 %v424, 108
      %v3215 = vpop.permute.xlu0 %3214
      %3216 = vrot.lane.b32.xlu0 %v428, 108
      %v3217 = vpop.permute.xlu0 %3216
      %3218 = vrot.lane.b32.xlu0 %v432, 108
      %v3219 = vpop.permute.xlu0 %3218
      %3220 = vrot.lane.b32.xlu0 %v436, 108
      %v3221 = vpop.permute.xlu0 %3220
      %3222 = vrot.lane.b32.xlu0 %v425, 108
      %v3223 = vpop.permute.xlu0 %3222
      %3224 = vrot.lane.b32.xlu0 %v429, 108
      %v3225 = vpop.permute.xlu0 %3224
      %3226 = vrot.lane.b32.xlu0 %v433, 108
      %v3227 = vpop.permute.xlu0 %3226
      %3228 = vrot.lane.b32.xlu0 %v437, 108
      %v3229 = vpop.permute.xlu0 %3228
      %3230 = vrot.lane.b32.xlu0 %v426, 108
      %v3231 = vpop.permute.xlu0 %3230
      %3232 = vrot.lane.b32.xlu0 %v430, 108
      %v3233 = vpop.permute.xlu0 %3232
      %3234 = vrot.lane.b32.xlu0 %v434, 108
      %v3235 = vpop.permute.xlu0 %3234
      %3236 = vrot.lane.b32.xlu0 %v438, 108
      %v3237 = vpop.permute.xlu0 %3236
      %3238 = vrot.lane.b32.xlu0 %v427, 108
      %v3239 = vpop.permute.xlu0 %3238
      %3240 = vrot.lane.b32.xlu0 %v431, 108
      %v3241 = vpop.permute.xlu0 %3240
      %3242 = vrot.lane.b32.xlu0 %v435, 108
      %v3243 = vpop.permute.xlu0 %3242
      %3244 = vrot.lane.b32.xlu0 %v439, 108
      %v3245 = vpop.permute.xlu0 %3244
      %vm3246 = vcmp.lt.s32.totalorder %v477, 108
      %v3247 = vsel %vm3246, %v3231, %v3239
      %v3248 = vsel %vm3246, %v3233, %v3241
      %v3249 = vsel %vm3246, %v3235, %v3243
      %v3250 = vsel %vm3246, %v3237, %v3245
      %v3251 = vsel %vm3246, %v3223, %v3231
      %v3252 = vsel %vm3246, %v3225, %v3233
      %v3253 = vsel %vm3246, %v3227, %v3235
      %v3254 = vsel %vm3246, %v3229, %v3237
      %v3255 = vsel %vm3246, %v3215, %v3223
      %v3256 = vsel %vm3246, %v3217, %v3225
      %v3257 = vsel %vm3246, %v3219, %v3227
      %v3258 = vsel %vm3246, %v3221, %v3229
      %v3259 = vsel %vm3246, %v3239, %v3215
      %v3260 = vsel %vm3246, %v3241, %v3217
      %v3261 = vsel %vm3246, %v3243, %v3219
      %v3262 = vsel %vm3246, %v3245, %v3221
      %3263 = vset.pattern.permute.xlu0 29
      %3264 = vperm.xlu0 %3263, %v440
      %v3265 = vpop.permute.xlu0 %3264
      %3267 = vset.pattern.permute.xlu0 29
      %3268 = vperm.xlu0 %3267, %v441
      %v3269 = vpop.permute.xlu0 %3268
      %3271 = vset.pattern.permute.xlu0 29
      %3272 = vperm.xlu0 %3271, %v442
      %v3273 = vpop.permute.xlu0 %3272
      %3275 = vset.pattern.permute.xlu0 29
      %3276 = vperm.xlu0 %3275, %v443
      %v3277 = vpop.permute.xlu0 %3276
      %v3279 = vmul.f32 %v3255, %v3265
      %v3280 = vmul.f32 %v3251, %v3265
      %v3281 = vmul.f32 %v3247, %v3265
      %v3282 = vmul.f32 %v3259, %v3265
      %v3283 = vmul.f32 %v3256, %v3269
      %v3284 = vmul.f32 %v3252, %v3269
      %v3285 = vmul.f32 %v3248, %v3269
      %v3286 = vmul.f32 %v3260, %v3269
      %v3287 = vmul.f32 %v3257, %v3273
      %v3288 = vmul.f32 %v3253, %v3273
      %v3289 = vmul.f32 %v3249, %v3273
      %v3290 = vmul.f32 %v3261, %v3273
      %v3291 = vmul.f32 %v3258, %v3277
      %v3292 = vmul.f32 %v3254, %v3277
      %v3293 = vmul.f32 %v3250, %v3277
      %v3294 = vmul.f32 %v3262, %v3277
      %v3295 = vadd.f32 %v3198, %v3279
      %v3296 = vadd.f32 %v3199, %v3280
      %v3297 = vadd.f32 %v3200, %v3281
      %v3298 = vadd.f32 %v3201, %v3282
      %v3299 = vadd.f32 %v3202, %v3283
      %v3300 = vadd.f32 %v3203, %v3284
      %v3301 = vadd.f32 %v3204, %v3285
      %v3302 = vadd.f32 %v3205, %v3286
      %v3303 = vadd.f32 %v3206, %v3287
      %v3304 = vadd.f32 %v3207, %v3288
      %v3305 = vadd.f32 %v3208, %v3289
      %v3306 = vadd.f32 %v3209, %v3290
      %v3307 = vadd.f32 %v3210, %v3291
      %v3308 = vadd.f32 %v3211, %v3292
      %v3309 = vadd.f32 %v3212, %v3293
      %v3310 = vadd.f32 %v3213, %v3294
      %3311 = vrot.lane.b32.xlu0 %v424, 107
      %v3312 = vpop.permute.xlu0 %3311
      %3313 = vrot.lane.b32.xlu0 %v428, 107
      %v3314 = vpop.permute.xlu0 %3313
      %3315 = vrot.lane.b32.xlu0 %v432, 107
      %v3316 = vpop.permute.xlu0 %3315
      %3317 = vrot.lane.b32.xlu0 %v436, 107
      %v3318 = vpop.permute.xlu0 %3317
      %3319 = vrot.lane.b32.xlu0 %v425, 107
      %v3320 = vpop.permute.xlu0 %3319
      %3321 = vrot.lane.b32.xlu0 %v429, 107
      %v3322 = vpop.permute.xlu0 %3321
      %3323 = vrot.lane.b32.xlu0 %v433, 107
      %v3324 = vpop.permute.xlu0 %3323
      %3325 = vrot.lane.b32.xlu0 %v437, 107
      %v3326 = vpop.permute.xlu0 %3325
      %3327 = vrot.lane.b32.xlu0 %v426, 107
      %v3328 = vpop.permute.xlu0 %3327
      %3329 = vrot.lane.b32.xlu0 %v430, 107
      %v3330 = vpop.permute.xlu0 %3329
      %3331 = vrot.lane.b32.xlu0 %v434, 107
      %v3332 = vpop.permute.xlu0 %3331
      %3333 = vrot.lane.b32.xlu0 %v438, 107
      %v3334 = vpop.permute.xlu0 %3333
      %3335 = vrot.lane.b32.xlu0 %v427, 107
      %v3336 = vpop.permute.xlu0 %3335
      %3337 = vrot.lane.b32.xlu0 %v431, 107
      %v3338 = vpop.permute.xlu0 %3337
      %3339 = vrot.lane.b32.xlu0 %v435, 107
      %v3340 = vpop.permute.xlu0 %3339
      %3341 = vrot.lane.b32.xlu0 %v439, 107
      %v3342 = vpop.permute.xlu0 %3341
      %vm3343 = vcmp.lt.s32.totalorder %v477, 107
      %v3344 = vsel %vm3343, %v3328, %v3336
      %v3345 = vsel %vm3343, %v3330, %v3338
      %v3346 = vsel %vm3343, %v3332, %v3340
      %v3347 = vsel %vm3343, %v3334, %v3342
      %v3348 = vsel %vm3343, %v3320, %v3328
      %v3349 = vsel %vm3343, %v3322, %v3330
      %v3350 = vsel %vm3343, %v3324, %v3332
      %v3351 = vsel %vm3343, %v3326, %v3334
      %v3352 = vsel %vm3343, %v3312, %v3320
      %v3353 = vsel %vm3343, %v3314, %v3322
      %v3354 = vsel %vm3343, %v3316, %v3324
      %v3355 = vsel %vm3343, %v3318, %v3326
      %v3356 = vsel %vm3343, %v3336, %v3312
      %v3357 = vsel %vm3343, %v3338, %v3314
      %v3358 = vsel %vm3343, %v3340, %v3316
      %v3359 = vsel %vm3343, %v3342, %v3318
      %3360 = vset.pattern.permute.xlu0 30
      %3361 = vperm.xlu0 %3360, %v440
      %v3362 = vpop.permute.xlu0 %3361
      %3364 = vset.pattern.permute.xlu0 30
      %3365 = vperm.xlu0 %3364, %v441
      %v3366 = vpop.permute.xlu0 %3365
      %3368 = vset.pattern.permute.xlu0 30
      %3369 = vperm.xlu0 %3368, %v442
      %v3370 = vpop.permute.xlu0 %3369
      %3372 = vset.pattern.permute.xlu0 30
      %3373 = vperm.xlu0 %3372, %v443
      %v3374 = vpop.permute.xlu0 %3373
      %v3376 = vmul.f32 %v3352, %v3362
      %v3377 = vmul.f32 %v3348, %v3362
      %v3378 = vmul.f32 %v3344, %v3362
      %v3379 = vmul.f32 %v3356, %v3362
      %v3380 = vmul.f32 %v3353, %v3366
      %v3381 = vmul.f32 %v3349, %v3366
      %v3382 = vmul.f32 %v3345, %v3366
      %v3383 = vmul.f32 %v3357, %v3366
      %v3384 = vmul.f32 %v3354, %v3370
      %v3385 = vmul.f32 %v3350, %v3370
      %v3386 = vmul.f32 %v3346, %v3370
      %v3387 = vmul.f32 %v3358, %v3370
      %v3388 = vmul.f32 %v3355, %v3374
      %v3389 = vmul.f32 %v3351, %v3374
      %v3390 = vmul.f32 %v3347, %v3374
      %v3391 = vmul.f32 %v3359, %v3374
      %v3392 = vadd.f32 %v3295, %v3376
      %v3393 = vadd.f32 %v3296, %v3377
      %v3394 = vadd.f32 %v3297, %v3378
      %v3395 = vadd.f32 %v3298, %v3379
      %v3396 = vadd.f32 %v3299, %v3380
      %v3397 = vadd.f32 %v3300, %v3381
      %v3398 = vadd.f32 %v3301, %v3382
      %v3399 = vadd.f32 %v3302, %v3383
      %v3400 = vadd.f32 %v3303, %v3384
      %v3401 = vadd.f32 %v3304, %v3385
      %v3402 = vadd.f32 %v3305, %v3386
      %v3403 = vadd.f32 %v3306, %v3387
      %v3404 = vadd.f32 %v3307, %v3388
      %v3405 = vadd.f32 %v3308, %v3389
      %v3406 = vadd.f32 %v3309, %v3390
      %v3407 = vadd.f32 %v3310, %v3391
      %3408 = vrot.lane.b32.xlu0 %v424, 106
      %v3409 = vpop.permute.xlu0 %3408
      %3410 = vrot.lane.b32.xlu0 %v428, 106
      %v3411 = vpop.permute.xlu0 %3410
      %3412 = vrot.lane.b32.xlu0 %v432, 106
      %v3413 = vpop.permute.xlu0 %3412
      %3414 = vrot.lane.b32.xlu0 %v436, 106
      %v3415 = vpop.permute.xlu0 %3414
      %3416 = vrot.lane.b32.xlu0 %v425, 106
      %v3417 = vpop.permute.xlu0 %3416
      %3418 = vrot.lane.b32.xlu0 %v429, 106
      %v3419 = vpop.permute.xlu0 %3418
      %3420 = vrot.lane.b32.xlu0 %v433, 106
      %v3421 = vpop.permute.xlu0 %3420
      %3422 = vrot.lane.b32.xlu0 %v437, 106
      %v3423 = vpop.permute.xlu0 %3422
      %3424 = vrot.lane.b32.xlu0 %v426, 106
      %v3425 = vpop.permute.xlu0 %3424
      %3426 = vrot.lane.b32.xlu0 %v430, 106
      %v3427 = vpop.permute.xlu0 %3426
      %3428 = vrot.lane.b32.xlu0 %v434, 106
      %v3429 = vpop.permute.xlu0 %3428
      %3430 = vrot.lane.b32.xlu0 %v438, 106
      %v3431 = vpop.permute.xlu0 %3430
      %3432 = vrot.lane.b32.xlu0 %v427, 106
      %v3433 = vpop.permute.xlu0 %3432
      %3434 = vrot.lane.b32.xlu0 %v431, 106
      %v3435 = vpop.permute.xlu0 %3434
      %3436 = vrot.lane.b32.xlu0 %v435, 106
      %v3437 = vpop.permute.xlu0 %3436
      %3438 = vrot.lane.b32.xlu0 %v439, 106
      %v3439 = vpop.permute.xlu0 %3438
      %vm3440 = vcmp.lt.s32.totalorder %v477, 106
      %v3441 = vsel %vm3440, %v3425, %v3433
      %v3442 = vsel %vm3440, %v3427, %v3435
      %v3443 = vsel %vm3440, %v3429, %v3437
      %v3444 = vsel %vm3440, %v3431, %v3439
      %v3445 = vsel %vm3440, %v3417, %v3425
      %v3446 = vsel %vm3440, %v3419, %v3427
      %v3447 = vsel %vm3440, %v3421, %v3429
      %v3448 = vsel %vm3440, %v3423, %v3431
      %v3449 = vsel %vm3440, %v3409, %v3417
      %v3450 = vsel %vm3440, %v3411, %v3419
      %v3451 = vsel %vm3440, %v3413, %v3421
      %v3452 = vsel %vm3440, %v3415, %v3423
      %v3453 = vsel %vm3440, %v3433, %v3409
      %v3454 = vsel %vm3440, %v3435, %v3411
      %v3455 = vsel %vm3440, %v3437, %v3413
      %v3456 = vsel %vm3440, %v3439, %v3415
      %3457 = vset.pattern.permute.xlu0 31
      %3458 = vperm.xlu0 %3457, %v440
      %v3459 = vpop.permute.xlu0 %3458
      %3461 = vset.pattern.permute.xlu0 31
      %3462 = vperm.xlu0 %3461, %v441
      %v3463 = vpop.permute.xlu0 %3462
      %3465 = vset.pattern.permute.xlu0 31
      %3466 = vperm.xlu0 %3465, %v442
      %v3467 = vpop.permute.xlu0 %3466
      %3469 = vset.pattern.permute.xlu0 31
      %3470 = vperm.xlu0 %3469, %v443
      %v3471 = vpop.permute.xlu0 %3470
      %v3473 = vmul.f32 %v3449, %v3459
      %v3474 = vmul.f32 %v3445, %v3459
      %v3475 = vmul.f32 %v3441, %v3459
      %v3476 = vmul.f32 %v3453, %v3459
      %v3477 = vmul.f32 %v3450, %v3463
      %v3478 = vmul.f32 %v3446, %v3463
      %v3479 = vmul.f32 %v3442, %v3463
      %v3480 = vmul.f32 %v3454, %v3463
      %v3481 = vmul.f32 %v3451, %v3467
      %v3482 = vmul.f32 %v3447, %v3467
      %v3483 = vmul.f32 %v3443, %v3467
      %v3484 = vmul.f32 %v3455, %v3467
      %v3485 = vmul.f32 %v3452, %v3471
      %v3486 = vmul.f32 %v3448, %v3471
      %v3487 = vmul.f32 %v3444, %v3471
      %v3488 = vmul.f32 %v3456, %v3471
      %v3489 = vadd.f32 %v3392, %v3473
      %v3490 = vadd.f32 %v3393, %v3474
      %v3491 = vadd.f32 %v3394, %v3475
      %v3492 = vadd.f32 %v3395, %v3476
      %v3493 = vadd.f32 %v3396, %v3477
      %v3494 = vadd.f32 %v3397, %v3478
      %v3495 = vadd.f32 %v3398, %v3479
      %v3496 = vadd.f32 %v3399, %v3480
      %v3497 = vadd.f32 %v3400, %v3481
      %v3498 = vadd.f32 %v3401, %v3482
      %v3499 = vadd.f32 %v3402, %v3483
      %v3500 = vadd.f32 %v3403, %v3484
      %v3501 = vadd.f32 %v3404, %v3485
      %v3502 = vadd.f32 %v3405, %v3486
      %v3503 = vadd.f32 %v3406, %v3487
      %v3504 = vadd.f32 %v3407, %v3488
      %3505 = vrot.lane.b32.xlu0 %v424, 105
      %v3506 = vpop.permute.xlu0 %3505
      %3507 = vrot.lane.b32.xlu0 %v428, 105
      %v3508 = vpop.permute.xlu0 %3507
      %3509 = vrot.lane.b32.xlu0 %v432, 105
      %v3510 = vpop.permute.xlu0 %3509
      %3511 = vrot.lane.b32.xlu0 %v436, 105
      %v3512 = vpop.permute.xlu0 %3511
      %3513 = vrot.lane.b32.xlu0 %v425, 105
      %v3514 = vpop.permute.xlu0 %3513
      %3515 = vrot.lane.b32.xlu0 %v429, 105
      %v3516 = vpop.permute.xlu0 %3515
      %3517 = vrot.lane.b32.xlu0 %v433, 105
      %v3518 = vpop.permute.xlu0 %3517
      %3519 = vrot.lane.b32.xlu0 %v437, 105
      %v3520 = vpop.permute.xlu0 %3519
      %3521 = vrot.lane.b32.xlu0 %v426, 105
      %v3522 = vpop.permute.xlu0 %3521
      %3523 = vrot.lane.b32.xlu0 %v430, 105
      %v3524 = vpop.permute.xlu0 %3523
      %3525 = vrot.lane.b32.xlu0 %v434, 105
      %v3526 = vpop.permute.xlu0 %3525
      %3527 = vrot.lane.b32.xlu0 %v438, 105
      %v3528 = vpop.permute.xlu0 %3527
      %3529 = vrot.lane.b32.xlu0 %v427, 105
      %v3530 = vpop.permute.xlu0 %3529
      %3531 = vrot.lane.b32.xlu0 %v431, 105
      %v3532 = vpop.permute.xlu0 %3531
      %3533 = vrot.lane.b32.xlu0 %v435, 105
      %v3534 = vpop.permute.xlu0 %3533
      %3535 = vrot.lane.b32.xlu0 %v439, 105
      %v3536 = vpop.permute.xlu0 %3535
      %vm3537 = vcmp.lt.s32.totalorder %v477, 105
      %v3538 = vsel %vm3537, %v3522, %v3530
      %v3539 = vsel %vm3537, %v3524, %v3532
      %v3540 = vsel %vm3537, %v3526, %v3534
      %v3541 = vsel %vm3537, %v3528, %v3536
      %v3542 = vsel %vm3537, %v3514, %v3522
      %v3543 = vsel %vm3537, %v3516, %v3524
      %v3544 = vsel %vm3537, %v3518, %v3526
      %v3545 = vsel %vm3537, %v3520, %v3528
      %v3546 = vsel %vm3537, %v3506, %v3514
      %v3547 = vsel %vm3537, %v3508, %v3516
      %v3548 = vsel %vm3537, %v3510, %v3518
      %v3549 = vsel %vm3537, %v3512, %v3520
      %v3550 = vsel %vm3537, %v3530, %v3506
      %v3551 = vsel %vm3537, %v3532, %v3508
      %v3552 = vsel %vm3537, %v3534, %v3510
      %v3553 = vsel %vm3537, %v3536, %v3512
      %3554 = vset.pattern.permute.xlu0 32
      %3555 = vperm.xlu0 %3554, %v440
      %v3556 = vpop.permute.xlu0 %3555
      %3558 = vset.pattern.permute.xlu0 32
      %3559 = vperm.xlu0 %3558, %v441
      %v3560 = vpop.permute.xlu0 %3559
      %3562 = vset.pattern.permute.xlu0 32
      %3563 = vperm.xlu0 %3562, %v442
      %v3564 = vpop.permute.xlu0 %3563
      %3566 = vset.pattern.permute.xlu0 32
      %3567 = vperm.xlu0 %3566, %v443
      %v3568 = vpop.permute.xlu0 %3567
      %v3570 = vmul.f32 %v3546, %v3556
      %v3571 = vmul.f32 %v3542, %v3556
      %v3572 = vmul.f32 %v3538, %v3556
      %v3573 = vmul.f32 %v3550, %v3556
      %v3574 = vmul.f32 %v3547, %v3560
      %v3575 = vmul.f32 %v3543, %v3560
      %v3576 = vmul.f32 %v3539, %v3560
      %v3577 = vmul.f32 %v3551, %v3560
      %v3578 = vmul.f32 %v3548, %v3564
      %v3579 = vmul.f32 %v3544, %v3564
      %v3580 = vmul.f32 %v3540, %v3564
      %v3581 = vmul.f32 %v3552, %v3564
      %v3582 = vmul.f32 %v3549, %v3568
      %v3583 = vmul.f32 %v3545, %v3568
      %v3584 = vmul.f32 %v3541, %v3568
      %v3585 = vmul.f32 %v3553, %v3568
      %v3586 = vadd.f32 %v3489, %v3570
      %v3587 = vadd.f32 %v3490, %v3571
      %v3588 = vadd.f32 %v3491, %v3572
      %v3589 = vadd.f32 %v3492, %v3573
      %v3590 = vadd.f32 %v3493, %v3574
      %v3591 = vadd.f32 %v3494, %v3575
      %v3592 = vadd.f32 %v3495, %v3576
      %v3593 = vadd.f32 %v3496, %v3577
      %v3594 = vadd.f32 %v3497, %v3578
      %v3595 = vadd.f32 %v3498, %v3579
      %v3596 = vadd.f32 %v3499, %v3580
      %v3597 = vadd.f32 %v3500, %v3581
      %v3598 = vadd.f32 %v3501, %v3582
      %v3599 = vadd.f32 %v3502, %v3583
      %v3600 = vadd.f32 %v3503, %v3584
      %v3601 = vadd.f32 %v3504, %v3585
      %3602 = vrot.lane.b32.xlu0 %v424, 104
      %v3603 = vpop.permute.xlu0 %3602
      %3604 = vrot.lane.b32.xlu0 %v428, 104
      %v3605 = vpop.permute.xlu0 %3604
      %3606 = vrot.lane.b32.xlu0 %v432, 104
      %v3607 = vpop.permute.xlu0 %3606
      %3608 = vrot.lane.b32.xlu0 %v436, 104
      %v3609 = vpop.permute.xlu0 %3608
      %3610 = vrot.lane.b32.xlu0 %v425, 104
      %v3611 = vpop.permute.xlu0 %3610
      %3612 = vrot.lane.b32.xlu0 %v429, 104
      %v3613 = vpop.permute.xlu0 %3612
      %3614 = vrot.lane.b32.xlu0 %v433, 104
      %v3615 = vpop.permute.xlu0 %3614
      %3616 = vrot.lane.b32.xlu0 %v437, 104
      %v3617 = vpop.permute.xlu0 %3616
      %3618 = vrot.lane.b32.xlu0 %v426, 104
      %v3619 = vpop.permute.xlu0 %3618
      %3620 = vrot.lane.b32.xlu0 %v430, 104
      %v3621 = vpop.permute.xlu0 %3620
      %3622 = vrot.lane.b32.xlu0 %v434, 104
      %v3623 = vpop.permute.xlu0 %3622
      %3624 = vrot.lane.b32.xlu0 %v438, 104
      %v3625 = vpop.permute.xlu0 %3624
      %3626 = vrot.lane.b32.xlu0 %v427, 104
      %v3627 = vpop.permute.xlu0 %3626
      %3628 = vrot.lane.b32.xlu0 %v431, 104
      %v3629 = vpop.permute.xlu0 %3628
      %3630 = vrot.lane.b32.xlu0 %v435, 104
      %v3631 = vpop.permute.xlu0 %3630
      %3632 = vrot.lane.b32.xlu0 %v439, 104
      %v3633 = vpop.permute.xlu0 %3632
      %vm3634 = vcmp.lt.s32.totalorder %v477, 104
      %v3635 = vsel %vm3634, %v3619, %v3627
      %v3636 = vsel %vm3634, %v3621, %v3629
      %v3637 = vsel %vm3634, %v3623, %v3631
      %v3638 = vsel %vm3634, %v3625, %v3633
      %v3639 = vsel %vm3634, %v3611, %v3619
      %v3640 = vsel %vm3634, %v3613, %v3621
      %v3641 = vsel %vm3634, %v3615, %v3623
      %v3642 = vsel %vm3634, %v3617, %v3625
      %v3643 = vsel %vm3634, %v3603, %v3611
      %v3644 = vsel %vm3634, %v3605, %v3613
      %v3645 = vsel %vm3634, %v3607, %v3615
      %v3646 = vsel %vm3634, %v3609, %v3617
      %v3647 = vsel %vm3634, %v3627, %v3603
      %v3648 = vsel %vm3634, %v3629, %v3605
      %v3649 = vsel %vm3634, %v3631, %v3607
      %v3650 = vsel %vm3634, %v3633, %v3609
      %3651 = vset.pattern.permute.xlu0 33
      %3652 = vperm.xlu0 %3651, %v440
      %v3653 = vpop.permute.xlu0 %3652
      %3655 = vset.pattern.permute.xlu0 33
      %3656 = vperm.xlu0 %3655, %v441
      %v3657 = vpop.permute.xlu0 %3656
      %3659 = vset.pattern.permute.xlu0 33
      %3660 = vperm.xlu0 %3659, %v442
      %v3661 = vpop.permute.xlu0 %3660
      %3663 = vset.pattern.permute.xlu0 33
      %3664 = vperm.xlu0 %3663, %v443
      %v3665 = vpop.permute.xlu0 %3664
      %v3667 = vmul.f32 %v3643, %v3653
      %v3668 = vmul.f32 %v3639, %v3653
      %v3669 = vmul.f32 %v3635, %v3653
      %v3670 = vmul.f32 %v3647, %v3653
      %v3671 = vmul.f32 %v3644, %v3657
      %v3672 = vmul.f32 %v3640, %v3657
      %v3673 = vmul.f32 %v3636, %v3657
      %v3674 = vmul.f32 %v3648, %v3657
      %v3675 = vmul.f32 %v3645, %v3661
      %v3676 = vmul.f32 %v3641, %v3661
      %v3677 = vmul.f32 %v3637, %v3661
      %v3678 = vmul.f32 %v3649, %v3661
      %v3679 = vmul.f32 %v3646, %v3665
      %v3680 = vmul.f32 %v3642, %v3665
      %v3681 = vmul.f32 %v3638, %v3665
      %v3682 = vmul.f32 %v3650, %v3665
      %v3683 = vadd.f32 %v3586, %v3667
      %v3684 = vadd.f32 %v3587, %v3668
      %v3685 = vadd.f32 %v3588, %v3669
      %v3686 = vadd.f32 %v3589, %v3670
      %v3687 = vadd.f32 %v3590, %v3671
      %v3688 = vadd.f32 %v3591, %v3672
      %v3689 = vadd.f32 %v3592, %v3673
      %v3690 = vadd.f32 %v3593, %v3674
      %v3691 = vadd.f32 %v3594, %v3675
      %v3692 = vadd.f32 %v3595, %v3676
      %v3693 = vadd.f32 %v3596, %v3677
      %v3694 = vadd.f32 %v3597, %v3678
      %v3695 = vadd.f32 %v3598, %v3679
      %v3696 = vadd.f32 %v3599, %v3680
      %v3697 = vadd.f32 %v3600, %v3681
      %v3698 = vadd.f32 %v3601, %v3682
      %3699 = vrot.lane.b32.xlu0 %v424, 103
      %v3700 = vpop.permute.xlu0 %3699
      %3701 = vrot.lane.b32.xlu0 %v428, 103
      %v3702 = vpop.permute.xlu0 %3701
      %3703 = vrot.lane.b32.xlu0 %v432, 103
      %v3704 = vpop.permute.xlu0 %3703
      %3705 = vrot.lane.b32.xlu0 %v436, 103
      %v3706 = vpop.permute.xlu0 %3705
      %3707 = vrot.lane.b32.xlu0 %v425, 103
      %v3708 = vpop.permute.xlu0 %3707
      %3709 = vrot.lane.b32.xlu0 %v429, 103
      %v3710 = vpop.permute.xlu0 %3709
      %3711 = vrot.lane.b32.xlu0 %v433, 103
      %v3712 = vpop.permute.xlu0 %3711
      %3713 = vrot.lane.b32.xlu0 %v437, 103
      %v3714 = vpop.permute.xlu0 %3713
      %3715 = vrot.lane.b32.xlu0 %v426, 103
      %v3716 = vpop.permute.xlu0 %3715
      %3717 = vrot.lane.b32.xlu0 %v430, 103
      %v3718 = vpop.permute.xlu0 %3717
      %3719 = vrot.lane.b32.xlu0 %v434, 103
      %v3720 = vpop.permute.xlu0 %3719
      %3721 = vrot.lane.b32.xlu0 %v438, 103
      %v3722 = vpop.permute.xlu0 %3721
      %3723 = vrot.lane.b32.xlu0 %v427, 103
      %v3724 = vpop.permute.xlu0 %3723
      %3725 = vrot.lane.b32.xlu0 %v431, 103
      %v3726 = vpop.permute.xlu0 %3725
      %3727 = vrot.lane.b32.xlu0 %v435, 103
      %v3728 = vpop.permute.xlu0 %3727
      %3729 = vrot.lane.b32.xlu0 %v439, 103
      %v3730 = vpop.permute.xlu0 %3729
      %vm3731 = vcmp.lt.s32.totalorder %v477, 103
      %v3732 = vsel %vm3731, %v3716, %v3724
      %v3733 = vsel %vm3731, %v3718, %v3726
      %v3734 = vsel %vm3731, %v3720, %v3728
      %v3735 = vsel %vm3731, %v3722, %v3730
      %v3736 = vsel %vm3731, %v3708, %v3716
      %v3737 = vsel %vm3731, %v3710, %v3718
      %v3738 = vsel %vm3731, %v3712, %v3720
      %v3739 = vsel %vm3731, %v3714, %v3722
      %v3740 = vsel %vm3731, %v3700, %v3708
      %v3741 = vsel %vm3731, %v3702, %v3710
      %v3742 = vsel %vm3731, %v3704, %v3712
      %v3743 = vsel %vm3731, %v3706, %v3714
      %v3744 = vsel %vm3731, %v3724, %v3700
      %v3745 = vsel %vm3731, %v3726, %v3702
      %v3746 = vsel %vm3731, %v3728, %v3704
      %v3747 = vsel %vm3731, %v3730, %v3706
      %3748 = vset.pattern.permute.xlu0 34
      %3749 = vperm.xlu0 %3748, %v440
      %v3750 = vpop.permute.xlu0 %3749
      %3752 = vset.pattern.permute.xlu0 34
      %3753 = vperm.xlu0 %3752, %v441
      %v3754 = vpop.permute.xlu0 %3753
      %3756 = vset.pattern.permute.xlu0 34
      %3757 = vperm.xlu0 %3756, %v442
      %v3758 = vpop.permute.xlu0 %3757
      %3760 = vset.pattern.permute.xlu0 34
      %3761 = vperm.xlu0 %3760, %v443
      %v3762 = vpop.permute.xlu0 %3761
      %v3764 = vmul.f32 %v3740, %v3750
      %v3765 = vmul.f32 %v3736, %v3750
      %v3766 = vmul.f32 %v3732, %v3750
      %v3767 = vmul.f32 %v3744, %v3750
      %v3768 = vmul.f32 %v3741, %v3754
      %v3769 = vmul.f32 %v3737, %v3754
      %v3770 = vmul.f32 %v3733, %v3754
      %v3771 = vmul.f32 %v3745, %v3754
      %v3772 = vmul.f32 %v3742, %v3758
      %v3773 = vmul.f32 %v3738, %v3758
      %v3774 = vmul.f32 %v3734, %v3758
      %v3775 = vmul.f32 %v3746, %v3758
      %v3776 = vmul.f32 %v3743, %v3762
      %v3777 = vmul.f32 %v3739, %v3762
      %v3778 = vmul.f32 %v3735, %v3762
      %v3779 = vmul.f32 %v3747, %v3762
      %v3780 = vadd.f32 %v3683, %v3764
      %v3781 = vadd.f32 %v3684, %v3765
      %v3782 = vadd.f32 %v3685, %v3766
      %v3783 = vadd.f32 %v3686, %v3767
      %v3784 = vadd.f32 %v3687, %v3768
      %v3785 = vadd.f32 %v3688, %v3769
      %v3786 = vadd.f32 %v3689, %v3770
      %v3787 = vadd.f32 %v3690, %v3771
      %v3788 = vadd.f32 %v3691, %v3772
      %v3789 = vadd.f32 %v3692, %v3773
      %v3790 = vadd.f32 %v3693, %v3774
      %v3791 = vadd.f32 %v3694, %v3775
      %v3792 = vadd.f32 %v3695, %v3776
      %v3793 = vadd.f32 %v3696, %v3777
      %v3794 = vadd.f32 %v3697, %v3778
      %v3795 = vadd.f32 %v3698, %v3779
      %3796 = vrot.lane.b32.xlu0 %v424, 87
      %v3797 = vpop.permute.xlu0 %3796
      %3798 = vrot.lane.b32.xlu0 %v428, 87
      %v3799 = vpop.permute.xlu0 %3798
      %3800 = vrot.lane.b32.xlu0 %v432, 87
      %v3801 = vpop.permute.xlu0 %3800
      %3802 = vrot.lane.b32.xlu0 %v436, 87
      %v3803 = vpop.permute.xlu0 %3802
      %3804 = vrot.lane.b32.xlu0 %v425, 87
      %v3805 = vpop.permute.xlu0 %3804
      %3806 = vrot.lane.b32.xlu0 %v429, 87
      %v3807 = vpop.permute.xlu0 %3806
      %3808 = vrot.lane.b32.xlu0 %v433, 87
      %v3809 = vpop.permute.xlu0 %3808
      %3810 = vrot.lane.b32.xlu0 %v437, 87
      %v3811 = vpop.permute.xlu0 %3810
      %3812 = vrot.lane.b32.xlu0 %v426, 87
      %v3813 = vpop.permute.xlu0 %3812
      %3814 = vrot.lane.b32.xlu0 %v430, 87
      %v3815 = vpop.permute.xlu0 %3814
      %3816 = vrot.lane.b32.xlu0 %v434, 87
      %v3817 = vpop.permute.xlu0 %3816
      %3818 = vrot.lane.b32.xlu0 %v438, 87
      %v3819 = vpop.permute.xlu0 %3818
      %3820 = vrot.lane.b32.xlu0 %v427, 87
      %v3821 = vpop.permute.xlu0 %3820
      %3822 = vrot.lane.b32.xlu0 %v431, 87
      %v3823 = vpop.permute.xlu0 %3822
      %3824 = vrot.lane.b32.xlu0 %v435, 87
      %v3825 = vpop.permute.xlu0 %3824
      %3826 = vrot.lane.b32.xlu0 %v439, 87
      %v3827 = vpop.permute.xlu0 %3826
      %vm3828 = vcmp.lt.s32.totalorder %v477, 87
      %v3829 = vsel %vm3828, %v3813, %v3821
      %v3830 = vsel %vm3828, %v3815, %v3823
      %v3831 = vsel %vm3828, %v3817, %v3825
      %v3832 = vsel %vm3828, %v3819, %v3827
      %v3833 = vsel %vm3828, %v3805, %v3813
      %v3834 = vsel %vm3828, %v3807, %v3815
      %v3835 = vsel %vm3828, %v3809, %v3817
      %v3836 = vsel %vm3828, %v3811, %v3819
      %v3837 = vsel %vm3828, %v3797, %v3805
      %v3838 = vsel %vm3828, %v3799, %v3807
      %v3839 = vsel %vm3828, %v3801, %v3809
      %v3840 = vsel %vm3828, %v3803, %v3811
      %v3841 = vsel %vm3828, %v3821, %v3797
      %v3842 = vsel %vm3828, %v3823, %v3799
      %v3843 = vsel %vm3828, %v3825, %v3801
      %v3844 = vsel %vm3828, %v3827, %v3803
      %3845 = vset.pattern.permute.xlu0 35
      %3846 = vperm.xlu0 %3845, %v440
      %v3847 = vpop.permute.xlu0 %3846
      %3849 = vset.pattern.permute.xlu0 35
      %3850 = vperm.xlu0 %3849, %v441
      %v3851 = vpop.permute.xlu0 %3850
      %3853 = vset.pattern.permute.xlu0 35
      %3854 = vperm.xlu0 %3853, %v442
      %v3855 = vpop.permute.xlu0 %3854
      %3857 = vset.pattern.permute.xlu0 35
      %3858 = vperm.xlu0 %3857, %v443
      %v3859 = vpop.permute.xlu0 %3858
      %v3861 = vmul.f32 %v3837, %v3847
      %v3862 = vmul.f32 %v3833, %v3847
      %v3863 = vmul.f32 %v3829, %v3847
      %v3864 = vmul.f32 %v3841, %v3847
      %v3865 = vmul.f32 %v3838, %v3851
      %v3866 = vmul.f32 %v3834, %v3851
      %v3867 = vmul.f32 %v3830, %v3851
      %v3868 = vmul.f32 %v3842, %v3851
      %v3869 = vmul.f32 %v3839, %v3855
      %v3870 = vmul.f32 %v3835, %v3855
      %v3871 = vmul.f32 %v3831, %v3855
      %v3872 = vmul.f32 %v3843, %v3855
      %v3873 = vmul.f32 %v3840, %v3859
      %v3874 = vmul.f32 %v3836, %v3859
      %v3875 = vmul.f32 %v3832, %v3859
      %v3876 = vmul.f32 %v3844, %v3859
      %v3877 = vadd.f32 %v3780, %v3861
      %v3878 = vadd.f32 %v3781, %v3862
      %v3879 = vadd.f32 %v3782, %v3863
      %v3880 = vadd.f32 %v3783, %v3864
      %v3881 = vadd.f32 %v3784, %v3865
      %v3882 = vadd.f32 %v3785, %v3866
      %v3883 = vadd.f32 %v3786, %v3867
      %v3884 = vadd.f32 %v3787, %v3868
      %v3885 = vadd.f32 %v3788, %v3869
      %v3886 = vadd.f32 %v3789, %v3870
      %v3887 = vadd.f32 %v3790, %v3871
      %v3888 = vadd.f32 %v3791, %v3872
      %v3889 = vadd.f32 %v3792, %v3873
      %v3890 = vadd.f32 %v3793, %v3874
      %v3891 = vadd.f32 %v3794, %v3875
      %v3892 = vadd.f32 %v3795, %v3876
      %3893 = vrot.lane.b32.xlu0 %v424, 86
      %v3894 = vpop.permute.xlu0 %3893
      %3895 = vrot.lane.b32.xlu0 %v428, 86
      %v3896 = vpop.permute.xlu0 %3895
      %3897 = vrot.lane.b32.xlu0 %v432, 86
      %v3898 = vpop.permute.xlu0 %3897
      %3899 = vrot.lane.b32.xlu0 %v436, 86
      %v3900 = vpop.permute.xlu0 %3899
      %3901 = vrot.lane.b32.xlu0 %v425, 86
      %v3902 = vpop.permute.xlu0 %3901
      %3903 = vrot.lane.b32.xlu0 %v429, 86
      %v3904 = vpop.permute.xlu0 %3903
      %3905 = vrot.lane.b32.xlu0 %v433, 86
      %v3906 = vpop.permute.xlu0 %3905
      %3907 = vrot.lane.b32.xlu0 %v437, 86
      %v3908 = vpop.permute.xlu0 %3907
      %3909 = vrot.lane.b32.xlu0 %v426, 86
      %v3910 = vpop.permute.xlu0 %3909
      %3911 = vrot.lane.b32.xlu0 %v430, 86
      %v3912 = vpop.permute.xlu0 %3911
      %3913 = vrot.lane.b32.xlu0 %v434, 86
      %v3914 = vpop.permute.xlu0 %3913
      %3915 = vrot.lane.b32.xlu0 %v438, 86
      %v3916 = vpop.permute.xlu0 %3915
      %3917 = vrot.lane.b32.xlu0 %v427, 86
      %v3918 = vpop.permute.xlu0 %3917
      %3919 = vrot.lane.b32.xlu0 %v431, 86
      %v3920 = vpop.permute.xlu0 %3919
      %3921 = vrot.lane.b32.xlu0 %v435, 86
      %v3922 = vpop.permute.xlu0 %3921
      %3923 = vrot.lane.b32.xlu0 %v439, 86
      %v3924 = vpop.permute.xlu0 %3923
      %vm3925 = vcmp.lt.s32.totalorder %v477, 86
      %v3926 = vsel %vm3925, %v3910, %v3918
      %v3927 = vsel %vm3925, %v3912, %v3920
      %v3928 = vsel %vm3925, %v3914, %v3922
      %v3929 = vsel %vm3925, %v3916, %v3924
      %v3930 = vsel %vm3925, %v3902, %v3910
      %v3931 = vsel %vm3925, %v3904, %v3912
      %v3932 = vsel %vm3925, %v3906, %v3914
      %v3933 = vsel %vm3925, %v3908, %v3916
      %v3934 = vsel %vm3925, %v3894, %v3902
      %v3935 = vsel %vm3925, %v3896, %v3904
      %v3936 = vsel %vm3925, %v3898, %v3906
      %v3937 = vsel %vm3925, %v3900, %v3908
      %v3938 = vsel %vm3925, %v3918, %v3894
      %v3939 = vsel %vm3925, %v3920, %v3896
      %v3940 = vsel %vm3925, %v3922, %v3898
      %v3941 = vsel %vm3925, %v3924, %v3900
      %3942 = vset.pattern.permute.xlu0 36
      %3943 = vperm.xlu0 %3942, %v440
      %v3944 = vpop.permute.xlu0 %3943
      %3946 = vset.pattern.permute.xlu0 36
      %3947 = vperm.xlu0 %3946, %v441
      %v3948 = vpop.permute.xlu0 %3947
      %3950 = vset.pattern.permute.xlu0 36
      %3951 = vperm.xlu0 %3950, %v442
      %v3952 = vpop.permute.xlu0 %3951
      %3954 = vset.pattern.permute.xlu0 36
      %3955 = vperm.xlu0 %3954, %v443
      %v3956 = vpop.permute.xlu0 %3955
      %v3958 = vmul.f32 %v3934, %v3944
      %v3959 = vmul.f32 %v3930, %v3944
      %v3960 = vmul.f32 %v3926, %v3944
      %v3961 = vmul.f32 %v3938, %v3944
      %v3962 = vmul.f32 %v3935, %v3948
      %v3963 = vmul.f32 %v3931, %v3948
      %v3964 = vmul.f32 %v3927, %v3948
      %v3965 = vmul.f32 %v3939, %v3948
      %v3966 = vmul.f32 %v3936, %v3952
      %v3967 = vmul.f32 %v3932, %v3952
      %v3968 = vmul.f32 %v3928, %v3952
      %v3969 = vmul.f32 %v3940, %v3952
      %v3970 = vmul.f32 %v3937, %v3956
      %v3971 = vmul.f32 %v3933, %v3956
      %v3972 = vmul.f32 %v3929, %v3956
      %v3973 = vmul.f32 %v3941, %v3956
      %v3974 = vadd.f32 %v3877, %v3958
      %v3975 = vadd.f32 %v3878, %v3959
      %v3976 = vadd.f32 %v3879, %v3960
      %v3977 = vadd.f32 %v3880, %v3961
      %v3978 = vadd.f32 %v3881, %v3962
      %v3979 = vadd.f32 %v3882, %v3963
      %v3980 = vadd.f32 %v3883, %v3964
      %v3981 = vadd.f32 %v3884, %v3965
      %v3982 = vadd.f32 %v3885, %v3966
      %v3983 = vadd.f32 %v3886, %v3967
      %v3984 = vadd.f32 %v3887, %v3968
      %v3985 = vadd.f32 %v3888, %v3969
      %v3986 = vadd.f32 %v3889, %v3970
      %v3987 = vadd.f32 %v3890, %v3971
      %v3988 = vadd.f32 %v3891, %v3972
      %v3989 = vadd.f32 %v3892, %v3973
      %3990 = vrot.lane.b32.xlu0 %v424, 85
      %v3991 = vpop.permute.xlu0 %3990
      %3992 = vrot.lane.b32.xlu0 %v428, 85
      %v3993 = vpop.permute.xlu0 %3992
      %3994 = vrot.lane.b32.xlu0 %v432, 85
      %v3995 = vpop.permute.xlu0 %3994
      %3996 = vrot.lane.b32.xlu0 %v436, 85
      %v3997 = vpop.permute.xlu0 %3996
      %3998 = vrot.lane.b32.xlu0 %v425, 85
      %v3999 = vpop.permute.xlu0 %3998
      %4000 = vrot.lane.b32.xlu0 %v429, 85
      %v4001 = vpop.permute.xlu0 %4000
      %4002 = vrot.lane.b32.xlu0 %v433, 85
      %v4003 = vpop.permute.xlu0 %4002
      %4004 = vrot.lane.b32.xlu0 %v437, 85
      %v4005 = vpop.permute.xlu0 %4004
      %4006 = vrot.lane.b32.xlu0 %v426, 85
      %v4007 = vpop.permute.xlu0 %4006
      %4008 = vrot.lane.b32.xlu0 %v430, 85
      %v4009 = vpop.permute.xlu0 %4008
      %4010 = vrot.lane.b32.xlu0 %v434, 85
      %v4011 = vpop.permute.xlu0 %4010
      %4012 = vrot.lane.b32.xlu0 %v438, 85
      %v4013 = vpop.permute.xlu0 %4012
      %4014 = vrot.lane.b32.xlu0 %v427, 85
      %v4015 = vpop.permute.xlu0 %4014
      %4016 = vrot.lane.b32.xlu0 %v431, 85
      %v4017 = vpop.permute.xlu0 %4016
      %4018 = vrot.lane.b32.xlu0 %v435, 85
      %v4019 = vpop.permute.xlu0 %4018
      %4020 = vrot.lane.b32.xlu0 %v439, 85
      %v4021 = vpop.permute.xlu0 %4020
      %vm4022 = vcmp.lt.s32.totalorder %v477, 85
      %v4023 = vsel %vm4022, %v4007, %v4015
      %v4024 = vsel %vm4022, %v4009, %v4017
      %v4025 = vsel %vm4022, %v4011, %v4019
      %v4026 = vsel %vm4022, %v4013, %v4021
      %v4027 = vsel %vm4022, %v3999, %v4007
      %v4028 = vsel %vm4022, %v4001, %v4009
      %v4029 = vsel %vm4022, %v4003, %v4011
      %v4030 = vsel %vm4022, %v4005, %v4013
      %v4031 = vsel %vm4022, %v3991, %v3999
      %v4032 = vsel %vm4022, %v3993, %v4001
      %v4033 = vsel %vm4022, %v3995, %v4003
      %v4034 = vsel %vm4022, %v3997, %v4005
      %v4035 = vsel %vm4022, %v4015, %v3991
      %v4036 = vsel %vm4022, %v4017, %v3993
      %v4037 = vsel %vm4022, %v4019, %v3995
      %v4038 = vsel %vm4022, %v4021, %v3997
      %4039 = vset.pattern.permute.xlu0 37
      %4040 = vperm.xlu0 %4039, %v440
      %v4041 = vpop.permute.xlu0 %4040
      %4043 = vset.pattern.permute.xlu0 37
      %4044 = vperm.xlu0 %4043, %v441
      %v4045 = vpop.permute.xlu0 %4044
      %4047 = vset.pattern.permute.xlu0 37
      %4048 = vperm.xlu0 %4047, %v442
      %v4049 = vpop.permute.xlu0 %4048
      %4051 = vset.pattern.permute.xlu0 37
      %4052 = vperm.xlu0 %4051, %v443
      %v4053 = vpop.permute.xlu0 %4052
      %v4055 = vmul.f32 %v4031, %v4041
      %v4056 = vmul.f32 %v4027, %v4041
      %v4057 = vmul.f32 %v4023, %v4041
      %v4058 = vmul.f32 %v4035, %v4041
      %v4059 = vmul.f32 %v4032, %v4045
      %v4060 = vmul.f32 %v4028, %v4045
      %v4061 = vmul.f32 %v4024, %v4045
      %v4062 = vmul.f32 %v4036, %v4045
      %v4063 = vmul.f32 %v4033, %v4049
      %v4064 = vmul.f32 %v4029, %v4049
      %v4065 = vmul.f32 %v4025, %v4049
      %v4066 = vmul.f32 %v4037, %v4049
      %v4067 = vmul.f32 %v4034, %v4053
      %v4068 = vmul.f32 %v4030, %v4053
      %v4069 = vmul.f32 %v4026, %v4053
      %v4070 = vmul.f32 %v4038, %v4053
      %v4071 = vadd.f32 %v3974, %v4055
      %v4072 = vadd.f32 %v3975, %v4056
      %v4073 = vadd.f32 %v3976, %v4057
      %v4074 = vadd.f32 %v3977, %v4058
      %v4075 = vadd.f32 %v3978, %v4059
      %v4076 = vadd.f32 %v3979, %v4060
      %v4077 = vadd.f32 %v3980, %v4061
      %v4078 = vadd.f32 %v3981, %v4062
      %v4079 = vadd.f32 %v3982, %v4063
      %v4080 = vadd.f32 %v3983, %v4064
      %v4081 = vadd.f32 %v3984, %v4065
      %v4082 = vadd.f32 %v3985, %v4066
      %v4083 = vadd.f32 %v3986, %v4067
      %v4084 = vadd.f32 %v3987, %v4068
      %v4085 = vadd.f32 %v3988, %v4069
      %v4086 = vadd.f32 %v3989, %v4070
      %4087 = vrot.lane.b32.xlu0 %v424, 84
      %v4088 = vpop.permute.xlu0 %4087
      %4089 = vrot.lane.b32.xlu0 %v428, 84
      %v4090 = vpop.permute.xlu0 %4089
      %4091 = vrot.lane.b32.xlu0 %v432, 84
      %v4092 = vpop.permute.xlu0 %4091
      %4093 = vrot.lane.b32.xlu0 %v436, 84
      %v4094 = vpop.permute.xlu0 %4093
      %4095 = vrot.lane.b32.xlu0 %v425, 84
      %v4096 = vpop.permute.xlu0 %4095
      %4097 = vrot.lane.b32.xlu0 %v429, 84
      %v4098 = vpop.permute.xlu0 %4097
      %4099 = vrot.lane.b32.xlu0 %v433, 84
      %v4100 = vpop.permute.xlu0 %4099
      %4101 = vrot.lane.b32.xlu0 %v437, 84
      %v4102 = vpop.permute.xlu0 %4101
      %4103 = vrot.lane.b32.xlu0 %v426, 84
      %v4104 = vpop.permute.xlu0 %4103
      %4105 = vrot.lane.b32.xlu0 %v430, 84
      %v4106 = vpop.permute.xlu0 %4105
      %4107 = vrot.lane.b32.xlu0 %v434, 84
      %v4108 = vpop.permute.xlu0 %4107
      %4109 = vrot.lane.b32.xlu0 %v438, 84
      %v4110 = vpop.permute.xlu0 %4109
      %4111 = vrot.lane.b32.xlu0 %v427, 84
      %v4112 = vpop.permute.xlu0 %4111
      %4113 = vrot.lane.b32.xlu0 %v431, 84
      %v4114 = vpop.permute.xlu0 %4113
      %4115 = vrot.lane.b32.xlu0 %v435, 84
      %v4116 = vpop.permute.xlu0 %4115
      %4117 = vrot.lane.b32.xlu0 %v439, 84
      %v4118 = vpop.permute.xlu0 %4117
      %vm4119 = vcmp.lt.s32.totalorder %v477, 84
      %v4120 = vsel %vm4119, %v4104, %v4112
      %v4121 = vsel %vm4119, %v4106, %v4114
      %v4122 = vsel %vm4119, %v4108, %v4116
      %v4123 = vsel %vm4119, %v4110, %v4118
      %v4124 = vsel %vm4119, %v4096, %v4104
      %v4125 = vsel %vm4119, %v4098, %v4106
      %v4126 = vsel %vm4119, %v4100, %v4108
      %v4127 = vsel %vm4119, %v4102, %v4110
      %v4128 = vsel %vm4119, %v4088, %v4096
      %v4129 = vsel %vm4119, %v4090, %v4098
      %v4130 = vsel %vm4119, %v4092, %v4100
      %v4131 = vsel %vm4119, %v4094, %v4102
      %v4132 = vsel %vm4119, %v4112, %v4088
      %v4133 = vsel %vm4119, %v4114, %v4090
      %v4134 = vsel %vm4119, %v4116, %v4092
      %v4135 = vsel %vm4119, %v4118, %v4094
      %4136 = vset.pattern.permute.xlu0 38
      %4137 = vperm.xlu0 %4136, %v440
      %v4138 = vpop.permute.xlu0 %4137
      %4140 = vset.pattern.permute.xlu0 38
      %4141 = vperm.xlu0 %4140, %v441
      %v4142 = vpop.permute.xlu0 %4141
      %4144 = vset.pattern.permute.xlu0 38
      %4145 = vperm.xlu0 %4144, %v442
      %v4146 = vpop.permute.xlu0 %4145
      %4148 = vset.pattern.permute.xlu0 38
      %4149 = vperm.xlu0 %4148, %v443
      %v4150 = vpop.permute.xlu0 %4149
      %v4152 = vmul.f32 %v4128, %v4138
      %v4153 = vmul.f32 %v4124, %v4138
      %v4154 = vmul.f32 %v4120, %v4138
      %v4155 = vmul.f32 %v4132, %v4138
      %v4156 = vmul.f32 %v4129, %v4142
      %v4157 = vmul.f32 %v4125, %v4142
      %v4158 = vmul.f32 %v4121, %v4142
      %v4159 = vmul.f32 %v4133, %v4142
      %v4160 = vmul.f32 %v4130, %v4146
      %v4161 = vmul.f32 %v4126, %v4146
      %v4162 = vmul.f32 %v4122, %v4146
      %v4163 = vmul.f32 %v4134, %v4146
      %v4164 = vmul.f32 %v4131, %v4150
      %v4165 = vmul.f32 %v4127, %v4150
      %v4166 = vmul.f32 %v4123, %v4150
      %v4167 = vmul.f32 %v4135, %v4150
      %v4168 = vadd.f32 %v4071, %v4152
      %v4169 = vadd.f32 %v4072, %v4153
      %v4170 = vadd.f32 %v4073, %v4154
      %v4171 = vadd.f32 %v4074, %v4155
      %v4172 = vadd.f32 %v4075, %v4156
      %v4173 = vadd.f32 %v4076, %v4157
      %v4174 = vadd.f32 %v4077, %v4158
      %v4175 = vadd.f32 %v4078, %v4159
      %v4176 = vadd.f32 %v4079, %v4160
      %v4177 = vadd.f32 %v4080, %v4161
      %v4178 = vadd.f32 %v4081, %v4162
      %v4179 = vadd.f32 %v4082, %v4163
      %v4180 = vadd.f32 %v4083, %v4164
      %v4181 = vadd.f32 %v4084, %v4165
      %v4182 = vadd.f32 %v4085, %v4166
      %v4183 = vadd.f32 %v4086, %v4167
      %4184 = vrot.lane.b32.xlu0 %v424, 83
      %v4185 = vpop.permute.xlu0 %4184
      %4186 = vrot.lane.b32.xlu0 %v428, 83
      %v4187 = vpop.permute.xlu0 %4186
      %4188 = vrot.lane.b32.xlu0 %v432, 83
      %v4189 = vpop.permute.xlu0 %4188
      %4190 = vrot.lane.b32.xlu0 %v436, 83
      %v4191 = vpop.permute.xlu0 %4190
      %4192 = vrot.lane.b32.xlu0 %v425, 83
      %v4193 = vpop.permute.xlu0 %4192
      %4194 = vrot.lane.b32.xlu0 %v429, 83
      %v4195 = vpop.permute.xlu0 %4194
      %4196 = vrot.lane.b32.xlu0 %v433, 83
      %v4197 = vpop.permute.xlu0 %4196
      %4198 = vrot.lane.b32.xlu0 %v437, 83
      %v4199 = vpop.permute.xlu0 %4198
      %4200 = vrot.lane.b32.xlu0 %v426, 83
      %v4201 = vpop.permute.xlu0 %4200
      %4202 = vrot.lane.b32.xlu0 %v430, 83
      %v4203 = vpop.permute.xlu0 %4202
      %4204 = vrot.lane.b32.xlu0 %v434, 83
      %v4205 = vpop.permute.xlu0 %4204
      %4206 = vrot.lane.b32.xlu0 %v438, 83
      %v4207 = vpop.permute.xlu0 %4206
      %4208 = vrot.lane.b32.xlu0 %v427, 83
      %v4209 = vpop.permute.xlu0 %4208
      %4210 = vrot.lane.b32.xlu0 %v431, 83
      %v4211 = vpop.permute.xlu0 %4210
      %4212 = vrot.lane.b32.xlu0 %v435, 83
      %v4213 = vpop.permute.xlu0 %4212
      %4214 = vrot.lane.b32.xlu0 %v439, 83
      %v4215 = vpop.permute.xlu0 %4214
      %vm4216 = vcmp.lt.s32.totalorder %v477, 83
      %v4217 = vsel %vm4216, %v4201, %v4209
      %v4218 = vsel %vm4216, %v4203, %v4211
      %v4219 = vsel %vm4216, %v4205, %v4213
      %v4220 = vsel %vm4216, %v4207, %v4215
      %v4221 = vsel %vm4216, %v4193, %v4201
      %v4222 = vsel %vm4216, %v4195, %v4203
      %v4223 = vsel %vm4216, %v4197, %v4205
      %v4224 = vsel %vm4216, %v4199, %v4207
      %v4225 = vsel %vm4216, %v4185, %v4193
      %v4226 = vsel %vm4216, %v4187, %v4195
      %v4227 = vsel %vm4216, %v4189, %v4197
      %v4228 = vsel %vm4216, %v4191, %v4199
      %v4229 = vsel %vm4216, %v4209, %v4185
      %v4230 = vsel %vm4216, %v4211, %v4187
      %v4231 = vsel %vm4216, %v4213, %v4189
      %v4232 = vsel %vm4216, %v4215, %v4191
      %4233 = vset.pattern.permute.xlu0 39
      %4234 = vperm.xlu0 %4233, %v440
      %v4235 = vpop.permute.xlu0 %4234
      %4237 = vset.pattern.permute.xlu0 39
      %4238 = vperm.xlu0 %4237, %v441
      %v4239 = vpop.permute.xlu0 %4238
      %4241 = vset.pattern.permute.xlu0 39
      %4242 = vperm.xlu0 %4241, %v442
      %v4243 = vpop.permute.xlu0 %4242
      %4245 = vset.pattern.permute.xlu0 39
      %4246 = vperm.xlu0 %4245, %v443
      %v4247 = vpop.permute.xlu0 %4246
      %v4249 = vmul.f32 %v4225, %v4235
      %v4250 = vmul.f32 %v4221, %v4235
      %v4251 = vmul.f32 %v4217, %v4235
      %v4252 = vmul.f32 %v4229, %v4235
      %v4253 = vmul.f32 %v4226, %v4239
      %v4254 = vmul.f32 %v4222, %v4239
      %v4255 = vmul.f32 %v4218, %v4239
      %v4256 = vmul.f32 %v4230, %v4239
      %v4257 = vmul.f32 %v4227, %v4243
      %v4258 = vmul.f32 %v4223, %v4243
      %v4259 = vmul.f32 %v4219, %v4243
      %v4260 = vmul.f32 %v4231, %v4243
      %v4261 = vmul.f32 %v4228, %v4247
      %v4262 = vmul.f32 %v4224, %v4247
      %v4263 = vmul.f32 %v4220, %v4247
      %v4264 = vmul.f32 %v4232, %v4247
      %v4265 = vadd.f32 %v4168, %v4249
      %v4266 = vadd.f32 %v4169, %v4250
      %v4267 = vadd.f32 %v4170, %v4251
      %v4268 = vadd.f32 %v4171, %v4252
      %v4269 = vadd.f32 %v4172, %v4253
      %v4270 = vadd.f32 %v4173, %v4254
      %v4271 = vadd.f32 %v4174, %v4255
      %v4272 = vadd.f32 %v4175, %v4256
      %v4273 = vadd.f32 %v4176, %v4257
      %v4274 = vadd.f32 %v4177, %v4258
      %v4275 = vadd.f32 %v4178, %v4259
      %v4276 = vadd.f32 %v4179, %v4260
      %v4277 = vadd.f32 %v4180, %v4261
      %v4278 = vadd.f32 %v4181, %v4262
      %v4279 = vadd.f32 %v4182, %v4263
      %v4280 = vadd.f32 %v4183, %v4264
      %4281 = vrot.lane.b32.xlu0 %v424, 82
      %v4282 = vpop.permute.xlu0 %4281
      %4283 = vrot.lane.b32.xlu0 %v428, 82
      %v4284 = vpop.permute.xlu0 %4283
      %4285 = vrot.lane.b32.xlu0 %v432, 82
      %v4286 = vpop.permute.xlu0 %4285
      %4287 = vrot.lane.b32.xlu0 %v436, 82
      %v4288 = vpop.permute.xlu0 %4287
      %4289 = vrot.lane.b32.xlu0 %v425, 82
      %v4290 = vpop.permute.xlu0 %4289
      %4291 = vrot.lane.b32.xlu0 %v429, 82
      %v4292 = vpop.permute.xlu0 %4291
      %4293 = vrot.lane.b32.xlu0 %v433, 82
      %v4294 = vpop.permute.xlu0 %4293
      %4295 = vrot.lane.b32.xlu0 %v437, 82
      %v4296 = vpop.permute.xlu0 %4295
      %4297 = vrot.lane.b32.xlu0 %v426, 82
      %v4298 = vpop.permute.xlu0 %4297
      %4299 = vrot.lane.b32.xlu0 %v430, 82
      %v4300 = vpop.permute.xlu0 %4299
      %4301 = vrot.lane.b32.xlu0 %v434, 82
      %v4302 = vpop.permute.xlu0 %4301
      %4303 = vrot.lane.b32.xlu0 %v438, 82
      %v4304 = vpop.permute.xlu0 %4303
      %4305 = vrot.lane.b32.xlu0 %v427, 82
      %v4306 = vpop.permute.xlu0 %4305
      %4307 = vrot.lane.b32.xlu0 %v431, 82
      %v4308 = vpop.permute.xlu0 %4307
      %4309 = vrot.lane.b32.xlu0 %v435, 82
      %v4310 = vpop.permute.xlu0 %4309
      %4311 = vrot.lane.b32.xlu0 %v439, 82
      %v4312 = vpop.permute.xlu0 %4311
      %vm4313 = vcmp.lt.s32.totalorder %v477, 82
      %v4314 = vsel %vm4313, %v4298, %v4306
      %v4315 = vsel %vm4313, %v4300, %v4308
      %v4316 = vsel %vm4313, %v4302, %v4310
      %v4317 = vsel %vm4313, %v4304, %v4312
      %v4318 = vsel %vm4313, %v4290, %v4298
      %v4319 = vsel %vm4313, %v4292, %v4300
      %v4320 = vsel %vm4313, %v4294, %v4302
      %v4321 = vsel %vm4313, %v4296, %v4304
      %v4322 = vsel %vm4313, %v4282, %v4290
      %v4323 = vsel %vm4313, %v4284, %v4292
      %v4324 = vsel %vm4313, %v4286, %v4294
      %v4325 = vsel %vm4313, %v4288, %v4296
      %v4326 = vsel %vm4313, %v4306, %v4282
      %v4327 = vsel %vm4313, %v4308, %v4284
      %v4328 = vsel %vm4313, %v4310, %v4286
      %v4329 = vsel %vm4313, %v4312, %v4288
      %4330 = vset.pattern.permute.xlu0 40
      %4331 = vperm.xlu0 %4330, %v440
      %v4332 = vpop.permute.xlu0 %4331
      %4334 = vset.pattern.permute.xlu0 40
      %4335 = vperm.xlu0 %4334, %v441
      %v4336 = vpop.permute.xlu0 %4335
      %4338 = vset.pattern.permute.xlu0 40
      %4339 = vperm.xlu0 %4338, %v442
      %v4340 = vpop.permute.xlu0 %4339
      %4342 = vset.pattern.permute.xlu0 40
      %4343 = vperm.xlu0 %4342, %v443
      %v4344 = vpop.permute.xlu0 %4343
      %v4346 = vmul.f32 %v4322, %v4332
      %v4347 = vmul.f32 %v4318, %v4332
      %v4348 = vmul.f32 %v4314, %v4332
      %v4349 = vmul.f32 %v4326, %v4332
      %v4350 = vmul.f32 %v4323, %v4336
      %v4351 = vmul.f32 %v4319, %v4336
      %v4352 = vmul.f32 %v4315, %v4336
      %v4353 = vmul.f32 %v4327, %v4336
      %v4354 = vmul.f32 %v4324, %v4340
      %v4355 = vmul.f32 %v4320, %v4340
      %v4356 = vmul.f32 %v4316, %v4340
      %v4357 = vmul.f32 %v4328, %v4340
      %v4358 = vmul.f32 %v4325, %v4344
      %v4359 = vmul.f32 %v4321, %v4344
      %v4360 = vmul.f32 %v4317, %v4344
      %v4361 = vmul.f32 %v4329, %v4344
      %v4362 = vadd.f32 %v4265, %v4346
      %v4363 = vadd.f32 %v4266, %v4347
      %v4364 = vadd.f32 %v4267, %v4348
      %v4365 = vadd.f32 %v4268, %v4349
      %v4366 = vadd.f32 %v4269, %v4350
      %v4367 = vadd.f32 %v4270, %v4351
      %v4368 = vadd.f32 %v4271, %v4352
      %v4369 = vadd.f32 %v4272, %v4353
      %v4370 = vadd.f32 %v4273, %v4354
      %v4371 = vadd.f32 %v4274, %v4355
      %v4372 = vadd.f32 %v4275, %v4356
      %v4373 = vadd.f32 %v4276, %v4357
      %v4374 = vadd.f32 %v4277, %v4358
      %v4375 = vadd.f32 %v4278, %v4359
      %v4376 = vadd.f32 %v4279, %v4360
      %v4377 = vadd.f32 %v4280, %v4361
      %4378 = vrot.lane.b32.xlu0 %v424, 81
      %v4379 = vpop.permute.xlu0 %4378
      %4380 = vrot.lane.b32.xlu0 %v428, 81
      %v4381 = vpop.permute.xlu0 %4380
      %4382 = vrot.lane.b32.xlu0 %v432, 81
      %v4383 = vpop.permute.xlu0 %4382
      %4384 = vrot.lane.b32.xlu0 %v436, 81
      %v4385 = vpop.permute.xlu0 %4384
      %4386 = vrot.lane.b32.xlu0 %v425, 81
      %v4387 = vpop.permute.xlu0 %4386
      %4388 = vrot.lane.b32.xlu0 %v429, 81
      %v4389 = vpop.permute.xlu0 %4388
      %4390 = vrot.lane.b32.xlu0 %v433, 81
      %v4391 = vpop.permute.xlu0 %4390
      %4392 = vrot.lane.b32.xlu0 %v437, 81
      %v4393 = vpop.permute.xlu0 %4392
      %4394 = vrot.lane.b32.xlu0 %v426, 81
      %v4395 = vpop.permute.xlu0 %4394
      %4396 = vrot.lane.b32.xlu0 %v430, 81
      %v4397 = vpop.permute.xlu0 %4396
      %4398 = vrot.lane.b32.xlu0 %v434, 81
      %v4399 = vpop.permute.xlu0 %4398
      %4400 = vrot.lane.b32.xlu0 %v438, 81
      %v4401 = vpop.permute.xlu0 %4400
      %4402 = vrot.lane.b32.xlu0 %v427, 81
      %v4403 = vpop.permute.xlu0 %4402
      %4404 = vrot.lane.b32.xlu0 %v431, 81
      %v4405 = vpop.permute.xlu0 %4404
      %4406 = vrot.lane.b32.xlu0 %v435, 81
      %v4407 = vpop.permute.xlu0 %4406
      %4408 = vrot.lane.b32.xlu0 %v439, 81
      %v4409 = vpop.permute.xlu0 %4408
      %vm4410 = vcmp.lt.s32.totalorder %v477, 81
      %v4411 = vsel %vm4410, %v4395, %v4403
      %v4412 = vsel %vm4410, %v4397, %v4405
      %v4413 = vsel %vm4410, %v4399, %v4407
      %v4414 = vsel %vm4410, %v4401, %v4409
      %v4415 = vsel %vm4410, %v4387, %v4395
      %v4416 = vsel %vm4410, %v4389, %v4397
      %v4417 = vsel %vm4410, %v4391, %v4399
      %v4418 = vsel %vm4410, %v4393, %v4401
      %v4419 = vsel %vm4410, %v4379, %v4387
      %v4420 = vsel %vm4410, %v4381, %v4389
      %v4421 = vsel %vm4410, %v4383, %v4391
      %v4422 = vsel %vm4410, %v4385, %v4393
      %v4423 = vsel %vm4410, %v4403, %v4379
      %v4424 = vsel %vm4410, %v4405, %v4381
      %v4425 = vsel %vm4410, %v4407, %v4383
      %v4426 = vsel %vm4410, %v4409, %v4385
      %4427 = vset.pattern.permute.xlu0 41
      %4428 = vperm.xlu0 %4427, %v440
      %v4429 = vpop.permute.xlu0 %4428
      %4431 = vset.pattern.permute.xlu0 41
      %4432 = vperm.xlu0 %4431, %v441
      %v4433 = vpop.permute.xlu0 %4432
      %4435 = vset.pattern.permute.xlu0 41
      %4436 = vperm.xlu0 %4435, %v442
      %v4437 = vpop.permute.xlu0 %4436
      %4439 = vset.pattern.permute.xlu0 41
      %4440 = vperm.xlu0 %4439, %v443
      %v4441 = vpop.permute.xlu0 %4440
      %v4443 = vmul.f32 %v4419, %v4429
      %v4444 = vmul.f32 %v4415, %v4429
      %v4445 = vmul.f32 %v4411, %v4429
      %v4446 = vmul.f32 %v4423, %v4429
      %v4447 = vmul.f32 %v4420, %v4433
      %v4448 = vmul.f32 %v4416, %v4433
      %v4449 = vmul.f32 %v4412, %v4433
      %v4450 = vmul.f32 %v4424, %v4433
      %v4451 = vmul.f32 %v4421, %v4437
      %v4452 = vmul.f32 %v4417, %v4437
      %v4453 = vmul.f32 %v4413, %v4437
      %v4454 = vmul.f32 %v4425, %v4437
      %v4455 = vmul.f32 %v4422, %v4441
      %v4456 = vmul.f32 %v4418, %v4441
      %v4457 = vmul.f32 %v4414, %v4441
      %v4458 = vmul.f32 %v4426, %v4441
      %v4459 = vadd.f32 %v4362, %v4443
      %v4460 = vadd.f32 %v4363, %v4444
      %v4461 = vadd.f32 %v4364, %v4445
      %v4462 = vadd.f32 %v4365, %v4446
      %v4463 = vadd.f32 %v4366, %v4447
      %v4464 = vadd.f32 %v4367, %v4448
      %v4465 = vadd.f32 %v4368, %v4449
      %v4466 = vadd.f32 %v4369, %v4450
      %v4467 = vadd.f32 %v4370, %v4451
      %v4468 = vadd.f32 %v4371, %v4452
      %v4469 = vadd.f32 %v4372, %v4453
      %v4470 = vadd.f32 %v4373, %v4454
      %v4471 = vadd.f32 %v4374, %v4455
      %v4472 = vadd.f32 %v4375, %v4456
      %v4473 = vadd.f32 %v4376, %v4457
      %v4474 = vadd.f32 %v4377, %v4458
      %4475 = vset.pattern.permute.xlu0 42
      %4476 = vperm.xlu0 %4475, %v440
      %v4477 = vpop.permute.xlu0 %4476
      %4479 = vset.pattern.permute.xlu0 42
      %4480 = vperm.xlu0 %4479, %v441
      %v4481 = vpop.permute.xlu0 %4480
      %4483 = vset.pattern.permute.xlu0 42
      %4484 = vperm.xlu0 %4483, %v442
      %v4485 = vpop.permute.xlu0 %4484
      %4487 = vset.pattern.permute.xlu0 42
      %4488 = vperm.xlu0 %4487, %v443
      %v4489 = vpop.permute.xlu0 %4488
      %v4491 = vmul.f32 %v879, %v4477
      %v4492 = vmul.f32 %v875, %v4477
      %v4493 = vmul.f32 %v871, %v4477
      %v4494 = vmul.f32 %v883, %v4477
      %v4495 = vmul.f32 %v880, %v4481
      %v4496 = vmul.f32 %v876, %v4481
      %v4497 = vmul.f32 %v872, %v4481
      %v4498 = vmul.f32 %v884, %v4481
      %v4499 = vmul.f32 %v881, %v4485
      %v4500 = vmul.f32 %v877, %v4485
      %v4501 = vmul.f32 %v873, %v4485
      %v4502 = vmul.f32 %v885, %v4485
      %v4503 = vmul.f32 %v882, %v4489
      %v4504 = vmul.f32 %v878, %v4489
      %v4505 = vmul.f32 %v874, %v4489
      %v4506 = vmul.f32 %v886, %v4489
      %v4507 = vadd.f32 %v4459, %v4491
      %v4508 = vadd.f32 %v4460, %v4492
      %v4509 = vadd.f32 %v4461, %v4493
      %v4510 = vadd.f32 %v4462, %v4494
      %v4511 = vadd.f32 %v4463, %v4495
      %v4512 = vadd.f32 %v4464, %v4496
      %v4513 = vadd.f32 %v4465, %v4497
      %v4514 = vadd.f32 %v4466, %v4498
      %v4515 = vadd.f32 %v4467, %v4499
      %v4516 = vadd.f32 %v4468, %v4500
      %v4517 = vadd.f32 %v4469, %v4501
      %v4518 = vadd.f32 %v4470, %v4502
      %v4519 = vadd.f32 %v4471, %v4503
      %v4520 = vadd.f32 %v4472, %v4504
      %v4521 = vadd.f32 %v4473, %v4505
      %v4522 = vadd.f32 %v4474, %v4506
      %4523 = vset.pattern.permute.xlu0 43
      %4524 = vperm.xlu0 %4523, %v440
      %v4525 = vpop.permute.xlu0 %4524
      %4527 = vset.pattern.permute.xlu0 43
      %4528 = vperm.xlu0 %4527, %v441
      %v4529 = vpop.permute.xlu0 %4528
      %4531 = vset.pattern.permute.xlu0 43
      %4532 = vperm.xlu0 %4531, %v442
      %v4533 = vpop.permute.xlu0 %4532
      %4535 = vset.pattern.permute.xlu0 43
      %4536 = vperm.xlu0 %4535, %v443
      %v4537 = vpop.permute.xlu0 %4536
      %v4539 = vmul.f32 %v976, %v4525
      %v4540 = vmul.f32 %v972, %v4525
      %v4541 = vmul.f32 %v968, %v4525
      %v4542 = vmul.f32 %v980, %v4525
      %v4543 = vmul.f32 %v977, %v4529
      %v4544 = vmul.f32 %v973, %v4529
      %v4545 = vmul.f32 %v969, %v4529
      %v4546 = vmul.f32 %v981, %v4529
      %v4547 = vmul.f32 %v978, %v4533
      %v4548 = vmul.f32 %v974, %v4533
      %v4549 = vmul.f32 %v970, %v4533
      %v4550 = vmul.f32 %v982, %v4533
      %v4551 = vmul.f32 %v979, %v4537
      %v4552 = vmul.f32 %v975, %v4537
      %v4553 = vmul.f32 %v971, %v4537
      %v4554 = vmul.f32 %v983, %v4537
      %v4555 = vadd.f32 %v4507, %v4539
      %v4556 = vadd.f32 %v4508, %v4540
      %v4557 = vadd.f32 %v4509, %v4541
      %v4558 = vadd.f32 %v4510, %v4542
      %v4559 = vadd.f32 %v4511, %v4543
      %v4560 = vadd.f32 %v4512, %v4544
      %v4561 = vadd.f32 %v4513, %v4545
      %v4562 = vadd.f32 %v4514, %v4546
      %v4563 = vadd.f32 %v4515, %v4547
      %v4564 = vadd.f32 %v4516, %v4548
      %v4565 = vadd.f32 %v4517, %v4549
      %v4566 = vadd.f32 %v4518, %v4550
      %v4567 = vadd.f32 %v4519, %v4551
      %v4568 = vadd.f32 %v4520, %v4552
      %v4569 = vadd.f32 %v4521, %v4553
      %v4570 = vadd.f32 %v4522, %v4554
      %4571 = vset.pattern.permute.xlu0 44
      %4572 = vperm.xlu0 %4571, %v440
      %v4573 = vpop.permute.xlu0 %4572
      %4575 = vset.pattern.permute.xlu0 44
      %4576 = vperm.xlu0 %4575, %v441
      %v4577 = vpop.permute.xlu0 %4576
      %4579 = vset.pattern.permute.xlu0 44
      %4580 = vperm.xlu0 %4579, %v442
      %v4581 = vpop.permute.xlu0 %4580
      %4583 = vset.pattern.permute.xlu0 44
      %4584 = vperm.xlu0 %4583, %v443
      %v4585 = vpop.permute.xlu0 %4584
      %v4587 = vmul.f32 %v1073, %v4573
      %v4588 = vmul.f32 %v1069, %v4573
      %v4589 = vmul.f32 %v1065, %v4573
      %v4590 = vmul.f32 %v1077, %v4573
      %v4591 = vmul.f32 %v1074, %v4577
      %v4592 = vmul.f32 %v1070, %v4577
      %v4593 = vmul.f32 %v1066, %v4577
      %v4594 = vmul.f32 %v1078, %v4577
      %v4595 = vmul.f32 %v1075, %v4581
      %v4596 = vmul.f32 %v1071, %v4581
      %v4597 = vmul.f32 %v1067, %v4581
      %v4598 = vmul.f32 %v1079, %v4581
      %v4599 = vmul.f32 %v1076, %v4585
      %v4600 = vmul.f32 %v1072, %v4585
      %v4601 = vmul.f32 %v1068, %v4585
      %v4602 = vmul.f32 %v1080, %v4585
      %v4603 = vadd.f32 %v4555, %v4587
      %v4604 = vadd.f32 %v4556, %v4588
      %v4605 = vadd.f32 %v4557, %v4589
      %v4606 = vadd.f32 %v4558, %v4590
      %v4607 = vadd.f32 %v4559, %v4591
      %v4608 = vadd.f32 %v4560, %v4592
      %v4609 = vadd.f32 %v4561, %v4593
      %v4610 = vadd.f32 %v4562, %v4594
      %v4611 = vadd.f32 %v4563, %v4595
      %v4612 = vadd.f32 %v4564, %v4596
      %v4613 = vadd.f32 %v4565, %v4597
      %v4614 = vadd.f32 %v4566, %v4598
      %v4615 = vadd.f32 %v4567, %v4599
      %v4616 = vadd.f32 %v4568, %v4600
      %v4617 = vadd.f32 %v4569, %v4601
      %v4618 = vadd.f32 %v4570, %v4602
      %4619 = vrot.lane.b32.xlu0 %v424, 62
      %v4620 = vpop.permute.xlu0 %4619
      %4621 = vrot.lane.b32.xlu0 %v428, 62
      %v4622 = vpop.permute.xlu0 %4621
      %4623 = vrot.lane.b32.xlu0 %v432, 62
      %v4624 = vpop.permute.xlu0 %4623
      %4625 = vrot.lane.b32.xlu0 %v436, 62
      %v4626 = vpop.permute.xlu0 %4625
      %4627 = vrot.lane.b32.xlu0 %v425, 62
      %v4628 = vpop.permute.xlu0 %4627
      %4629 = vrot.lane.b32.xlu0 %v429, 62
      %v4630 = vpop.permute.xlu0 %4629
      %4631 = vrot.lane.b32.xlu0 %v433, 62
      %v4632 = vpop.permute.xlu0 %4631
      %4633 = vrot.lane.b32.xlu0 %v437, 62
      %v4634 = vpop.permute.xlu0 %4633
      %4635 = vrot.lane.b32.xlu0 %v426, 62
      %v4636 = vpop.permute.xlu0 %4635
      %4637 = vrot.lane.b32.xlu0 %v430, 62
      %v4638 = vpop.permute.xlu0 %4637
      %4639 = vrot.lane.b32.xlu0 %v434, 62
      %v4640 = vpop.permute.xlu0 %4639
      %4641 = vrot.lane.b32.xlu0 %v438, 62
      %v4642 = vpop.permute.xlu0 %4641
      %4643 = vrot.lane.b32.xlu0 %v427, 62
      %v4644 = vpop.permute.xlu0 %4643
      %4645 = vrot.lane.b32.xlu0 %v431, 62
      %v4646 = vpop.permute.xlu0 %4645
      %4647 = vrot.lane.b32.xlu0 %v435, 62
      %v4648 = vpop.permute.xlu0 %4647
      %4649 = vrot.lane.b32.xlu0 %v439, 62
      %v4650 = vpop.permute.xlu0 %4649
      %vm4651 = vcmp.lt.s32.totalorder %v477, 62
      %v4652 = vsel %vm4651, %v4636, %v4644
      %v4653 = vsel %vm4651, %v4638, %v4646
      %v4654 = vsel %vm4651, %v4640, %v4648
      %v4655 = vsel %vm4651, %v4642, %v4650
      %v4656 = vsel %vm4651, %v4628, %v4636
      %v4657 = vsel %vm4651, %v4630, %v4638
      %v4658 = vsel %vm4651, %v4632, %v4640
      %v4659 = vsel %vm4651, %v4634, %v4642
      %v4660 = vsel %vm4651, %v4620, %v4628
      %v4661 = vsel %vm4651, %v4622, %v4630
      %v4662 = vsel %vm4651, %v4624, %v4632
      %v4663 = vsel %vm4651, %v4626, %v4634
      %v4664 = vsel %vm4651, %v4644, %v4620
      %v4665 = vsel %vm4651, %v4646, %v4622
      %v4666 = vsel %vm4651, %v4648, %v4624
      %v4667 = vsel %vm4651, %v4650, %v4626
      %4668 = vset.pattern.permute.xlu0 45
      %4669 = vperm.xlu0 %4668, %v440
      %v4670 = vpop.permute.xlu0 %4669
      %4672 = vset.pattern.permute.xlu0 45
      %4673 = vperm.xlu0 %4672, %v441
      %v4674 = vpop.permute.xlu0 %4673
      %4676 = vset.pattern.permute.xlu0 45
      %4677 = vperm.xlu0 %4676, %v442
      %v4678 = vpop.permute.xlu0 %4677
      %4680 = vset.pattern.permute.xlu0 45
      %4681 = vperm.xlu0 %4680, %v443
      %v4682 = vpop.permute.xlu0 %4681
      %v4684 = vmul.f32 %v4660, %v4670
      %v4685 = vmul.f32 %v4656, %v4670
      %v4686 = vmul.f32 %v4652, %v4670
      %v4687 = vmul.f32 %v4664, %v4670
      %v4688 = vmul.f32 %v4661, %v4674
      %v4689 = vmul.f32 %v4657, %v4674
      %v4690 = vmul.f32 %v4653, %v4674
      %v4691 = vmul.f32 %v4665, %v4674
      %v4692 = vmul.f32 %v4662, %v4678
      %v4693 = vmul.f32 %v4658, %v4678
      %v4694 = vmul.f32 %v4654, %v4678
      %v4695 = vmul.f32 %v4666, %v4678
      %v4696 = vmul.f32 %v4663, %v4682
      %v4697 = vmul.f32 %v4659, %v4682
      %v4698 = vmul.f32 %v4655, %v4682
      %v4699 = vmul.f32 %v4667, %v4682
      %v4700 = vadd.f32 %v4603, %v4684
      %v4701 = vadd.f32 %v4604, %v4685
      %v4702 = vadd.f32 %v4605, %v4686
      %v4703 = vadd.f32 %v4606, %v4687
      %v4704 = vadd.f32 %v4607, %v4688
      %v4705 = vadd.f32 %v4608, %v4689
      %v4706 = vadd.f32 %v4609, %v4690
      %v4707 = vadd.f32 %v4610, %v4691
      %v4708 = vadd.f32 %v4611, %v4692
      %v4709 = vadd.f32 %v4612, %v4693
      %v4710 = vadd.f32 %v4613, %v4694
      %v4711 = vadd.f32 %v4614, %v4695
      %v4712 = vadd.f32 %v4615, %v4696
      %v4713 = vadd.f32 %v4616, %v4697
      %v4714 = vadd.f32 %v4617, %v4698
      %v4715 = vadd.f32 %v4618, %v4699
      %4716 = vrot.lane.b32.xlu0 %v424, 61
      %v4717 = vpop.permute.xlu0 %4716
      %4718 = vrot.lane.b32.xlu0 %v428, 61
      %v4719 = vpop.permute.xlu0 %4718
      %4720 = vrot.lane.b32.xlu0 %v432, 61
      %v4721 = vpop.permute.xlu0 %4720
      %4722 = vrot.lane.b32.xlu0 %v436, 61
      %v4723 = vpop.permute.xlu0 %4722
      %4724 = vrot.lane.b32.xlu0 %v425, 61
      %v4725 = vpop.permute.xlu0 %4724
      %4726 = vrot.lane.b32.xlu0 %v429, 61
      %v4727 = vpop.permute.xlu0 %4726
      %4728 = vrot.lane.b32.xlu0 %v433, 61
      %v4729 = vpop.permute.xlu0 %4728
      %4730 = vrot.lane.b32.xlu0 %v437, 61
      %v4731 = vpop.permute.xlu0 %4730
      %4732 = vrot.lane.b32.xlu0 %v426, 61
      %v4733 = vpop.permute.xlu0 %4732
      %4734 = vrot.lane.b32.xlu0 %v430, 61
      %v4735 = vpop.permute.xlu0 %4734
      %4736 = vrot.lane.b32.xlu0 %v434, 61
      %v4737 = vpop.permute.xlu0 %4736
      %4738 = vrot.lane.b32.xlu0 %v438, 61
      %v4739 = vpop.permute.xlu0 %4738
      %4740 = vrot.lane.b32.xlu0 %v427, 61
      %v4741 = vpop.permute.xlu0 %4740
      %4742 = vrot.lane.b32.xlu0 %v431, 61
      %v4743 = vpop.permute.xlu0 %4742
      %4744 = vrot.lane.b32.xlu0 %v435, 61
      %v4745 = vpop.permute.xlu0 %4744
      %4746 = vrot.lane.b32.xlu0 %v439, 61
      %v4747 = vpop.permute.xlu0 %4746
      %vm4748 = vcmp.lt.s32.totalorder %v477, 61
      %v4749 = vsel %vm4748, %v4733, %v4741
      %v4750 = vsel %vm4748, %v4735, %v4743
      %v4751 = vsel %vm4748, %v4737, %v4745
      %v4752 = vsel %vm4748, %v4739, %v4747
      %v4753 = vsel %vm4748, %v4725, %v4733
      %v4754 = vsel %vm4748, %v4727, %v4735
      %v4755 = vsel %vm4748, %v4729, %v4737
      %v4756 = vsel %vm4748, %v4731, %v4739
      %v4757 = vsel %vm4748, %v4717, %v4725
      %v4758 = vsel %vm4748, %v4719, %v4727
      %v4759 = vsel %vm4748, %v4721, %v4729
      %v4760 = vsel %vm4748, %v4723, %v4731
      %v4761 = vsel %vm4748, %v4741, %v4717
      %v4762 = vsel %vm4748, %v4743, %v4719
      %v4763 = vsel %vm4748, %v4745, %v4721
      %v4764 = vsel %vm4748, %v4747, %v4723
      %4765 = vset.pattern.permute.xlu0 46
      %4766 = vperm.xlu0 %4765, %v440
      %v4767 = vpop.permute.xlu0 %4766
      %4769 = vset.pattern.permute.xlu0 46
      %4770 = vperm.xlu0 %4769, %v441
      %v4771 = vpop.permute.xlu0 %4770
      %4773 = vset.pattern.permute.xlu0 46
      %4774 = vperm.xlu0 %4773, %v442
      %v4775 = vpop.permute.xlu0 %4774
      %4777 = vset.pattern.permute.xlu0 46
      %4778 = vperm.xlu0 %4777, %v443
      %v4779 = vpop.permute.xlu0 %4778
      %v4781 = vmul.f32 %v4757, %v4767
      %v4782 = vmul.f32 %v4753, %v4767
      %v4783 = vmul.f32 %v4749, %v4767
      %v4784 = vmul.f32 %v4761, %v4767
      %v4785 = vmul.f32 %v4758, %v4771
      %v4786 = vmul.f32 %v4754, %v4771
      %v4787 = vmul.f32 %v4750, %v4771
      %v4788 = vmul.f32 %v4762, %v4771
      %v4789 = vmul.f32 %v4759, %v4775
      %v4790 = vmul.f32 %v4755, %v4775
      %v4791 = vmul.f32 %v4751, %v4775
      %v4792 = vmul.f32 %v4763, %v4775
      %v4793 = vmul.f32 %v4760, %v4779
      %v4794 = vmul.f32 %v4756, %v4779
      %v4795 = vmul.f32 %v4752, %v4779
      %v4796 = vmul.f32 %v4764, %v4779
      %v4797 = vadd.f32 %v4700, %v4781
      %v4798 = vadd.f32 %v4701, %v4782
      %v4799 = vadd.f32 %v4702, %v4783
      %v4800 = vadd.f32 %v4703, %v4784
      %v4801 = vadd.f32 %v4704, %v4785
      %v4802 = vadd.f32 %v4705, %v4786
      %v4803 = vadd.f32 %v4706, %v4787
      %v4804 = vadd.f32 %v4707, %v4788
      %v4805 = vadd.f32 %v4708, %v4789
      %v4806 = vadd.f32 %v4709, %v4790
      %v4807 = vadd.f32 %v4710, %v4791
      %v4808 = vadd.f32 %v4711, %v4792
      %v4809 = vadd.f32 %v4712, %v4793
      %v4810 = vadd.f32 %v4713, %v4794
      %v4811 = vadd.f32 %v4714, %v4795
      %v4812 = vadd.f32 %v4715, %v4796
      %4813 = vrot.lane.b32.xlu0 %v424, 60
      %v4814 = vpop.permute.xlu0 %4813
      %4815 = vrot.lane.b32.xlu0 %v428, 60
      %v4816 = vpop.permute.xlu0 %4815
      %4817 = vrot.lane.b32.xlu0 %v432, 60
      %v4818 = vpop.permute.xlu0 %4817
      %4819 = vrot.lane.b32.xlu0 %v436, 60
      %v4820 = vpop.permute.xlu0 %4819
      %4821 = vrot.lane.b32.xlu0 %v425, 60
      %v4822 = vpop.permute.xlu0 %4821
      %4823 = vrot.lane.b32.xlu0 %v429, 60
      %v4824 = vpop.permute.xlu0 %4823
      %4825 = vrot.lane.b32.xlu0 %v433, 60
      %v4826 = vpop.permute.xlu0 %4825
      %4827 = vrot.lane.b32.xlu0 %v437, 60
      %v4828 = vpop.permute.xlu0 %4827
      %4829 = vrot.lane.b32.xlu0 %v426, 60
      %v4830 = vpop.permute.xlu0 %4829
      %4831 = vrot.lane.b32.xlu0 %v430, 60
      %v4832 = vpop.permute.xlu0 %4831
      %4833 = vrot.lane.b32.xlu0 %v434, 60
      %v4834 = vpop.permute.xlu0 %4833
      %4835 = vrot.lane.b32.xlu0 %v438, 60
      %v4836 = vpop.permute.xlu0 %4835
      %4837 = vrot.lane.b32.xlu0 %v427, 60
      %v4838 = vpop.permute.xlu0 %4837
      %4839 = vrot.lane.b32.xlu0 %v431, 60
      %v4840 = vpop.permute.xlu0 %4839
      %4841 = vrot.lane.b32.xlu0 %v435, 60
      %v4842 = vpop.permute.xlu0 %4841
      %4843 = vrot.lane.b32.xlu0 %v439, 60
      %v4844 = vpop.permute.xlu0 %4843
      %vm4845 = vcmp.lt.s32.totalorder %v477, 60
      %v4846 = vsel %vm4845, %v4830, %v4838
      %v4847 = vsel %vm4845, %v4832, %v4840
      %v4848 = vsel %vm4845, %v4834, %v4842
      %v4849 = vsel %vm4845, %v4836, %v4844
      %v4850 = vsel %vm4845, %v4822, %v4830
      %v4851 = vsel %vm4845, %v4824, %v4832
      %v4852 = vsel %vm4845, %v4826, %v4834
      %v4853 = vsel %vm4845, %v4828, %v4836
      %v4854 = vsel %vm4845, %v4814, %v4822
      %v4855 = vsel %vm4845, %v4816, %v4824
      %v4856 = vsel %vm4845, %v4818, %v4826
      %v4857 = vsel %vm4845, %v4820, %v4828
      %v4858 = vsel %vm4845, %v4838, %v4814
      %v4859 = vsel %vm4845, %v4840, %v4816
      %v4860 = vsel %vm4845, %v4842, %v4818
      %v4861 = vsel %vm4845, %v4844, %v4820
      %4862 = vset.pattern.permute.xlu0 47
      %4863 = vperm.xlu0 %4862, %v440
      %v4864 = vpop.permute.xlu0 %4863
      %4866 = vset.pattern.permute.xlu0 47
      %4867 = vperm.xlu0 %4866, %v441
      %v4868 = vpop.permute.xlu0 %4867
      %4870 = vset.pattern.permute.xlu0 47
      %4871 = vperm.xlu0 %4870, %v442
      %v4872 = vpop.permute.xlu0 %4871
      %4874 = vset.pattern.permute.xlu0 47
      %4875 = vperm.xlu0 %4874, %v443
      %v4876 = vpop.permute.xlu0 %4875
      %v4878 = vmul.f32 %v4854, %v4864
      %v4879 = vmul.f32 %v4850, %v4864
      %v4880 = vmul.f32 %v4846, %v4864
      %v4881 = vmul.f32 %v4858, %v4864
      %v4882 = vmul.f32 %v4855, %v4868
      %v4883 = vmul.f32 %v4851, %v4868
      %v4884 = vmul.f32 %v4847, %v4868
      %v4885 = vmul.f32 %v4859, %v4868
      %v4886 = vmul.f32 %v4856, %v4872
      %v4887 = vmul.f32 %v4852, %v4872
      %v4888 = vmul.f32 %v4848, %v4872
      %v4889 = vmul.f32 %v4860, %v4872
      %v4890 = vmul.f32 %v4857, %v4876
      %v4891 = vmul.f32 %v4853, %v4876
      %v4892 = vmul.f32 %v4849, %v4876
      %v4893 = vmul.f32 %v4861, %v4876
      %v4894 = vadd.f32 %v4797, %v4878
      %v4895 = vadd.f32 %v4798, %v4879
      %v4896 = vadd.f32 %v4799, %v4880
      %v4897 = vadd.f32 %v4800, %v4881
      %v4898 = vadd.f32 %v4801, %v4882
      %v4899 = vadd.f32 %v4802, %v4883
      %v4900 = vadd.f32 %v4803, %v4884
      %v4901 = vadd.f32 %v4804, %v4885
      %v4902 = vadd.f32 %v4805, %v4886
      %v4903 = vadd.f32 %v4806, %v4887
      %v4904 = vadd.f32 %v4807, %v4888
      %v4905 = vadd.f32 %v4808, %v4889
      %v4906 = vadd.f32 %v4809, %v4890
      %v4907 = vadd.f32 %v4810, %v4891
      %v4908 = vadd.f32 %v4811, %v4892
      %v4909 = vadd.f32 %v4812, %v4893
      %4910 = vrot.lane.b32.xlu0 %v424, 59
      %v4911 = vpop.permute.xlu0 %4910
      %4912 = vrot.lane.b32.xlu0 %v428, 59
      %v4913 = vpop.permute.xlu0 %4912
      %4914 = vrot.lane.b32.xlu0 %v432, 59
      %v4915 = vpop.permute.xlu0 %4914
      %4916 = vrot.lane.b32.xlu0 %v436, 59
      %v4917 = vpop.permute.xlu0 %4916
      %4918 = vrot.lane.b32.xlu0 %v425, 59
      %v4919 = vpop.permute.xlu0 %4918
      %4920 = vrot.lane.b32.xlu0 %v429, 59
      %v4921 = vpop.permute.xlu0 %4920
      %4922 = vrot.lane.b32.xlu0 %v433, 59
      %v4923 = vpop.permute.xlu0 %4922
      %4924 = vrot.lane.b32.xlu0 %v437, 59
      %v4925 = vpop.permute.xlu0 %4924
      %4926 = vrot.lane.b32.xlu0 %v426, 59
      %v4927 = vpop.permute.xlu0 %4926
      %4928 = vrot.lane.b32.xlu0 %v430, 59
      %v4929 = vpop.permute.xlu0 %4928
      %4930 = vrot.lane.b32.xlu0 %v434, 59
      %v4931 = vpop.permute.xlu0 %4930
      %4932 = vrot.lane.b32.xlu0 %v438, 59
      %v4933 = vpop.permute.xlu0 %4932
      %4934 = vrot.lane.b32.xlu0 %v427, 59
      %v4935 = vpop.permute.xlu0 %4934
      %4936 = vrot.lane.b32.xlu0 %v431, 59
      %v4937 = vpop.permute.xlu0 %4936
      %4938 = vrot.lane.b32.xlu0 %v435, 59
      %v4939 = vpop.permute.xlu0 %4938
      %4940 = vrot.lane.b32.xlu0 %v439, 59
      %v4941 = vpop.permute.xlu0 %4940
      %vm4942 = vcmp.lt.s32.totalorder %v477, 59
      %v4943 = vsel %vm4942, %v4927, %v4935
      %v4944 = vsel %vm4942, %v4929, %v4937
      %v4945 = vsel %vm4942, %v4931, %v4939
      %v4946 = vsel %vm4942, %v4933, %v4941
      %v4947 = vsel %vm4942, %v4919, %v4927
      %v4948 = vsel %vm4942, %v4921, %v4929
      %v4949 = vsel %vm4942, %v4923, %v4931
      %v4950 = vsel %vm4942, %v4925, %v4933
      %v4951 = vsel %vm4942, %v4911, %v4919
      %v4952 = vsel %vm4942, %v4913, %v4921
      %v4953 = vsel %vm4942, %v4915, %v4923
      %v4954 = vsel %vm4942, %v4917, %v4925
      %v4955 = vsel %vm4942, %v4935, %v4911
      %v4956 = vsel %vm4942, %v4937, %v4913
      %v4957 = vsel %vm4942, %v4939, %v4915
      %v4958 = vsel %vm4942, %v4941, %v4917
      %4959 = vset.pattern.permute.xlu0 48
      %4960 = vperm.xlu0 %4959, %v440
      %v4961 = vpop.permute.xlu0 %4960
      %4963 = vset.pattern.permute.xlu0 48
      %4964 = vperm.xlu0 %4963, %v441
      %v4965 = vpop.permute.xlu0 %4964
      %4967 = vset.pattern.permute.xlu0 48
      %4968 = vperm.xlu0 %4967, %v442
      %v4969 = vpop.permute.xlu0 %4968
      %4971 = vset.pattern.permute.xlu0 48
      %4972 = vperm.xlu0 %4971, %v443
      %v4973 = vpop.permute.xlu0 %4972
      %v4975 = vmul.f32 %v4951, %v4961
      %v4976 = vmul.f32 %v4947, %v4961
      %v4977 = vmul.f32 %v4943, %v4961
      %v4978 = vmul.f32 %v4955, %v4961
      %v4979 = vmul.f32 %v4952, %v4965
      %v4980 = vmul.f32 %v4948, %v4965
      %v4981 = vmul.f32 %v4944, %v4965
      %v4982 = vmul.f32 %v4956, %v4965
      %v4983 = vmul.f32 %v4953, %v4969
      %v4984 = vmul.f32 %v4949, %v4969
      %v4985 = vmul.f32 %v4945, %v4969
      %v4986 = vmul.f32 %v4957, %v4969
      %v4987 = vmul.f32 %v4954, %v4973
      %v4988 = vmul.f32 %v4950, %v4973
      %v4989 = vmul.f32 %v4946, %v4973
      %v4990 = vmul.f32 %v4958, %v4973
      %v4991 = vadd.f32 %v4894, %v4975
      %v4992 = vadd.f32 %v4895, %v4976
      %v4993 = vadd.f32 %v4896, %v4977
      %v4994 = vadd.f32 %v4897, %v4978
      %v4995 = vadd.f32 %v4898, %v4979
      %v4996 = vadd.f32 %v4899, %v4980
      %v4997 = vadd.f32 %v4900, %v4981
      %v4998 = vadd.f32 %v4901, %v4982
      %v4999 = vadd.f32 %v4902, %v4983
      %v5000 = vadd.f32 %v4903, %v4984
      %v5001 = vadd.f32 %v4904, %v4985
      %v5002 = vadd.f32 %v4905, %v4986
      %v5003 = vadd.f32 %v4906, %v4987
      %v5004 = vadd.f32 %v4907, %v4988
      %v5005 = vadd.f32 %v4908, %v4989
      %v5006 = vadd.f32 %v4909, %v4990
      %v5007 = vld [vmem:[%s5] sm:$0xff]
      %v5008 = vld [vmem:[%s5 + $0x8] sm:$0xff]
      %v5009 = vld [vmem:[%s5 + $0x10] sm:$0xff]
      %v5010 = vld [vmem:[%s5 + $0x18] sm:$0xff]
      %5012 = vset.pattern.permute.xlu0 0
      %5013 = vperm.xlu0 %5012, %v5007
      %v5014 = vpop.permute.xlu0 %5013
      %5017 = vset.pattern.permute.xlu0 0
      %5018 = vperm.xlu0 %5017, %v5008
      %v5019 = vpop.permute.xlu0 %5018
      %5022 = vset.pattern.permute.xlu0 0
      %5023 = vperm.xlu0 %5022, %v5009
      %v5024 = vpop.permute.xlu0 %5023
      %5027 = vset.pattern.permute.xlu0 0
      %5028 = vperm.xlu0 %5027, %v5010
      %v5029 = vpop.permute.xlu0 %5028
      %v5031 = vadd.f32 %v4991, %v5014
      %v5032 = vadd.f32 %v4992, %v5014
      %v5033 = vadd.f32 %v4993, %v5014
      %v5034 = vadd.f32 %v4994, %v5014
      %v5035 = vadd.f32 %v4995, %v5019
      %v5036 = vadd.f32 %v4996, %v5019
      %v5037 = vadd.f32 %v4997, %v5019
      %v5038 = vadd.f32 %v4998, %v5019
      %v5039 = vadd.f32 %v4999, %v5024
      %v5040 = vadd.f32 %v5000, %v5024
      %v5041 = vadd.f32 %v5001, %v5024
      %v5042 = vadd.f32 %v5002, %v5024
      %v5043 = vadd.f32 %v5003, %v5029
      %v5044 = vadd.f32 %v5004, %v5029
      %v5045 = vadd.f32 %v5005, %v5029
      %v5046 = vadd.f32 %v5006, %v5029
      %v5047 = vmax.f32 %v5031, 0.0
      %v5048 = vmax.f32 %v5032, 0.0
      %v5049 = vmax.f32 %v5033, 0.0
      %v5050 = vmax.f32 %v5034, 0.0
      %v5051 = vmax.f32 %v5035, 0.0
      %v5052 = vmax.f32 %v5036, 0.0
      %v5053 = vmax.f32 %v5037, 0.0
      %v5054 = vmax.f32 %v5038, 0.0
      %v5055 = vmax.f32 %v5039, 0.0
      %v5056 = vmax.f32 %v5040, 0.0
      %v5057 = vmax.f32 %v5041, 0.0
      %v5058 = vmax.f32 %v5042, 0.0
      %v5059 = vmax.f32 %v5043, 0.0
      %v5060 = vmax.f32 %v5044, 0.0
      %v5061 = vmax.f32 %v5045, 0.0
      %v5062 = vmax.f32 %v5046, 0.0
      %v5063 = vmul.f32 %v5047, %v407
      %v5064 = vmul.f32 %v5048, %v411
      %v5065 = vmul.f32 %v5049, %v415
      %v5066 = vmul.f32 %v5050, %v419
      %v5067 = vmul.f32 %v5051, %v407
      %v5068 = vmul.f32 %v5052, %v411
      %v5069 = vmul.f32 %v5053, %v415
      %v5070 = vmul.f32 %v5054, %v419
      %v5071 = vmul.f32 %v5055, %v407
      %v5072 = vmul.f32 %v5056, %v411
      %v5073 = vmul.f32 %v5057, %v415
      %v5074 = vmul.f32 %v5058, %v419
      %v5075 = vmul.f32 %v5059, %v407
      %v5076 = vmul.f32 %v5060, %v411
      %v5077 = vmul.f32 %v5061, %v415
      %v5078 = vmul.f32 %v5062, %v419
      %v5079 = vadd.f32 %v306, %v5063
      %v5080 = vadd.f32 %v307, %v5064
      %v5081 = vadd.f32 %v308, %v5065
      %v5082 = vadd.f32 %v309, %v5066
      %v5083 = vadd.f32 %v310, %v5067
      %v5084 = vadd.f32 %v311, %v5068
      %v5085 = vadd.f32 %v312, %v5069
      %v5086 = vadd.f32 %v313, %v5070
      %v5087 = vadd.f32 %v314, %v5071
      %v5088 = vadd.f32 %v315, %v5072
      %v5089 = vadd.f32 %v316, %v5073
      %v5090 = vadd.f32 %v317, %v5074
      %v5091 = vadd.f32 %v318, %v5075
      %v5092 = vadd.f32 %v319, %v5076
      %v5093 = vadd.f32 %v320, %v5077
      %v5094 = vadd.f32 %v321, %v5078
      %v5095 = vadd.f32 %v5079, %v5080
      %v5096 = vadd.f32 %v5095, %v5081
      %v5097 = vadd.f32 %v5096, %v5082
      %5098 = vadd.xlane.f32.xlu0 %v5097
      %v5099 = vpop.xlane.xlu0 %5098
      %v5100 = vadd.f32 %v5083, %v5084
      %v5101 = vadd.f32 %v5100, %v5085
      %v5102 = vadd.f32 %v5101, %v5086
      %5103 = vadd.xlane.f32.xlu0 %v5102
      %v5104 = vpop.xlane.xlu0 %5103
      %v5105 = vadd.f32 %v5087, %v5088
      %v5106 = vadd.f32 %v5105, %v5089
      %v5107 = vadd.f32 %v5106, %v5090
      %5108 = vadd.xlane.f32.xlu0 %v5107
      %v5109 = vpop.xlane.xlu0 %5108
      %v5110 = vadd.f32 %v5091, %v5092
      %v5111 = vadd.f32 %v5110, %v5093
      %v5112 = vadd.f32 %v5111, %v5094
      %5113 = vadd.xlane.f32.xlu0 %v5112
      %v5114 = vpop.xlane.xlu0 %5113
      %v5115 = vmul.f32 %v5099, 0.00390625
      %v5116 = vmul.f32 %v5104, 0.00390625
      %v5117 = vmul.f32 %v5109, 0.00390625
      %v5118 = vmul.f32 %v5114, 0.00390625
      %v5119 = vld [vmem:[%s6] sm:$0xff]
      %v5120 = vld [vmem:[%s6 + $0x8] sm:$0xff]
      %v5121 = vld [vmem:[%s6 + $0x10] sm:$0xff]
      %v5122 = vld [vmem:[%s6 + $0x18] sm:$0xff]
      %v5123 = vmul.f32 %v5115, %v5119
      %v5124 = vmul.f32 %v5116, %v5120
      %v5125 = vmul.f32 %v5117, %v5121
      %v5126 = vmul.f32 %v5118, %v5122
      %vm5127 = vcmask 15360
      %v5128 = vsel %vm5127, %v5123, 0.0
      %v5129 = vsel %vm5127, %v5124, 0.0
      %v5130 = vadd.f32 %v5128, %v5129
      %v5131 = vsel %vm5127, %v5125, 0.0
      %v5132 = vadd.f32 %v5130, %v5131
      %v5133 = vsel %vm5127, %v5126, 0.0
      %v5134 = vadd.f32 %v5132, %v5133
      %v5135 = vrot.slane %v5134, 4
      %v5136 = vadd.f32 %v5134, %v5135
      %v5137 = vrot.slane %v5136, 2
      %v5138 = vadd.f32 %v5136, %v5137
      %v5139 = vrot.slane %v5138, 1
      %v5140 = vadd.f32 %v5138, %v5139
      %v5141 = vmax.f32 %v5140, 0.0
      %v5142 = vld [vmem:[%s7] sm:$0xff]
      %v5143 = vld [vmem:[%s7 + $0x8] sm:$0xff]
      %v5144 = vld [vmem:[%s7 + $0x10] sm:$0xff]
      %v5145 = vld [vmem:[%s7 + $0x18] sm:$0xff]
      %v5146 = vmul.f32 %v5141, %v5142
      %v5147 = vmul.f32 %v5141, %v5143
      %v5148 = vmul.f32 %v5141, %v5144
      %v5149 = vmul.f32 %v5141, %v5145
      %v5150 = vsel %vm5127, %v5146, 0.0
      %5151 = vadd.xlane.f32.xlu0 %v5150
      %v5152 = vpop.xlane.xlu0 %5151
      %v5153 = vsel %vm5127, %v5147, 0.0
      %5154 = vadd.xlane.f32.xlu0 %v5153
      %v5155 = vpop.xlane.xlu0 %5154
      %v5156 = vsel %vm5127, %v5148, 0.0
      %5157 = vadd.xlane.f32.xlu0 %v5156
      %v5158 = vpop.xlane.xlu0 %5157
      %v5159 = vsel %vm5127, %v5149, 0.0
      %5160 = vadd.xlane.f32.xlu0 %v5159
      %v5161 = vpop.xlane.xlu0 %5160
      %v5162 = vxor.u32 %v5152, 2147483648
      %v5163 = vxor.u32 %v5155, 2147483648
      %v5164 = vxor.u32 %v5158, 2147483648
      %v5165 = vxor.u32 %v5161, 2147483648
      %v5166 = vmul.f32 %v5162, 1.442695
      %v5167 = vpow.pop %v5166
      %v5168 = vmul.f32 %v5163, 1.442695
      %v5169 = vpow.pop %v5168
      %v5170 = vmul.f32 %v5164, 1.442695
      %v5171 = vpow.pop %v5170
      %v5172 = vmul.f32 %v5165, 1.442695
      %v5173 = vpow.pop %v5172
      %v5174 = vadd.f32 %v5167, 1.0
      %v5175 = vadd.f32 %v5169, 1.0
      %v5176 = vadd.f32 %v5171, 1.0
      %v5177 = vadd.f32 %v5173, 1.0
      %v5178 = vrcp.pop %v5174
      %v5179 = vmul.f32 1.0, %v5178
      %v5180 = vrcp.pop %v5175
      %v5181 = vmul.f32 1.0, %v5180
      %v5182 = vrcp.pop %v5176
      %v5183 = vmul.f32 1.0, %v5182
      %v5184 = vrcp.pop %v5177
      %v5185 = vmul.f32 1.0, %v5184
      %v5186 = vadd.f32 %v5179, 1.0
      %v5187 = vadd.f32 %v5181, 1.0
      %v5188 = vadd.f32 %v5183, 1.0
      %v5189 = vadd.f32 %v5185, 1.0
      %v5190 = vmul.f32 %v5079, %v5186
      %v5191 = vmul.f32 %v5080, %v5186
      %v5192 = vmul.f32 %v5081, %v5186
      %v5193 = vmul.f32 %v5082, %v5186
      %v5194 = vmul.f32 %v5083, %v5187
      %v5195 = vmul.f32 %v5084, %v5187
      %v5196 = vmul.f32 %v5085, %v5187
      %v5197 = vmul.f32 %v5086, %v5187
      %v5198 = vmul.f32 %v5087, %v5188
      %v5199 = vmul.f32 %v5088, %v5188
      %v5200 = vmul.f32 %v5089, %v5188
      %v5201 = vmul.f32 %v5090, %v5188
      %v5202 = vmul.f32 %v5091, %v5189
      %v5203 = vmul.f32 %v5092, %v5189
      %v5204 = vmul.f32 %v5093, %v5189
      %v5205 = vmul.f32 %v5094, %v5189
      %5206 = vst [vmem:[%s305] sm:$0xff] %v5190
      %5207 = vst [vmem:[%s305 + $0x8] sm:$0xff] %v5191
      %5208 = vst [vmem:[%s305 + $0x10] sm:$0xff] %v5192
      %5209 = vst [vmem:[%s305 + $0x18] sm:$0xff] %v5193
      %5210 = vst [vmem:[%s305 + $0x20] sm:$0xff] %v5194
      %5211 = vst [vmem:[%s305 + $0x28] sm:$0xff] %v5195
      %5212 = vst [vmem:[%s305 + $0x30] sm:$0xff] %v5196
      %5213 = vst [vmem:[%s305 + $0x38] sm:$0xff] %v5197
      %5214 = vst [vmem:[%s305 + $0x40] sm:$0xff] %v5198
      %5215 = vst [vmem:[%s305 + $0x48] sm:$0xff] %v5199
      %5216 = vst [vmem:[%s305 + $0x50] sm:$0xff] %v5200
      %5217 = vst [vmem:[%s305 + $0x58] sm:$0xff] %v5201
      %5218 = vst [vmem:[%s305 + $0x60] sm:$0xff] %v5202
      %5219 = vst [vmem:[%s305 + $0x68] sm:$0xff] %v5203
      %5220 = vst [vmem:[%s305 + $0x70] sm:$0xff] %v5204
      %5221 = vst [vmem:[%s305 + $0x78] sm:$0xff] %v5205
      %p5222 = scmp.lt.s32.totalorder %s19, 1
      %s5223 = scalar_select %p5222, %s19, 1
      %s5224 = smul.addr %s5223, 16
      %s5225 = smul.addr %s5224, 8
      %s5226 = scalar_lea.vmem %s8, %s5225
      // Predicated region
      $region53: #{lfr_forward.1} parent=51 // pred_check
        %p5227 = pneg %p210
      $region54: #{lfr_forward.1} parent=51 // pred_check_branch
        %5229 = sbr.rel (%p5227) target = $region56
      $region55: #{lfr_forward.1} parent=51 // pred_region
        _
      $region56: #{lfr_forward.1} parent=51 // pred_fallthru
        _
    $region52: #{lfr_forward.1} parent=5 // pred_fallthru
      _
    %p5230 = scmp.le.s32.totalorder 2, %s14
    // Predicated region
    $region57: #{lfr_forward.1} parent=5 // pred_check
      %p5231 = pneg %p5230
    $region58: #{lfr_forward.1} parent=5 // pred_check_branch
      %5233 = sbr.rel (%p5231) target = $region60
    $region59: #{lfr_forward.1} parent=5 // pred_region
      %s5234 = ssub.s32 %s14, 2
      // Predicated region
      $region61: #{lfr_forward.1} parent=59 // pred_check
        %p5235 = pneg %p216
      $region62: #{lfr_forward.1} parent=59 // pred_check_branch
        %5237 = sbr.rel (%p5235) target = $region64
      $region63: #{lfr_forward.1} parent=59 // pred_region
        %p5238 = scmp.lt.s32.totalorder %s20, 1
        %s5239 = scalar_select %p5238, %s20, 1
        %s5240 = smul.addr %s5239, 16
        %s5241 = smul.addr %s5240, 8
        %s5242 = scalar_lea.vmem %s8, %s5241
      $region64: #{lfr_forward.1} parent=59 // pred_fallthru
        _
    $region60: #{lfr_forward.1} parent=5 // pred_fallthru
      _
  $region6: #{lfr_forward.1} parent=0 // loop_footer
    %s18 = sadd.s32 1, %s14
  $region7: #{lfr_forward.1} parent=0 // loop_footer_branch
    %13 = sbr.rel target = $region3
  $region8: #{lfr_forward.1} parent=0 // loop_exit
    _

</llo_original>
